<compile_context>
chip_gen: v7x
topology: tpu7x:2x2x1
jax: 0.10.0
libtpu: 0.0.40
codegen_flags: <defaults>
</compile_context>

<pallas_src>
import math
import numpy as np
import jax
import jax.numpy as jnp
from jax.experimental import pallas as pl
from jax.experimental.pallas import tpu as pltpu


# ----------------------------- configuration ---------------------------------
DIM = 32                 # C
WINDOW_SIZE = 4          # W  -> N = W*W = 16 tokens per window
PRETRAINED_WINDOW_SIZE = 4
NUM_HEADS = 4            # H
HEAD_DIM = DIM // NUM_HEADS
N_TOKENS = WINDOW_SIZE * WINDOW_SIZE
BATCH = 2
N_WINDOWS = 2            # nW (mask leading dim)
B_TOTAL = BATCH * N_WINDOWS

NEG_INF = -1e9           # big-finite "masked" value for cross-window score blocks


# ------------------------------- Pallas kernel --------------------------------
def window_attention_kernel(x_ref, wqkv_ref, qkvb_ref, scale_ref, bm_ref,
                            wproj_ref, bproj_ref, out_ref):
    """Single-step kernel over all windows at once (block-diagonal formulation).

    x_ref    : (BN, C)        all window tokens, BN = B_ * N
    wqkv_ref : (C, 3C)        qkv weight (transposed so y = x @ W)
    qkvb_ref : (1, 3C)        qkv bias (q_bias, zeros, v_bias)
    scale_ref: (H,)  SMEM     per-head cosine-attention scale (clamped exp(logit_scale))
    bm_ref   : (H, BN, BN)    block-diagonal 16*sigmoid(rel_bias) + window mask,
                              NEG_INF off the (window, window) diagonal blocks
    wproj_ref: (C, C)         output projection weight (transposed)
    bproj_ref: (1, C)         output projection bias
    out_ref  : (BN, C)
    """
    BN, C = x_ref.shape
    H = bm_ref.shape[0]
    d = C // H

    # ---- qkv projection: one matmul for every token of every window ----
    qkv = jnp.dot(x_ref[...], wqkv_ref[...], preferred_element_type=jnp.float32)
    qkv = qkv + qkvb_ref[...]                                          # (BN, 3C)

    y = jnp.zeros((BN, C), jnp.float32)

    # Per-head loop (H = 4, static).  All tensors stay lane-resident; no head or
    # window axis relayouts.
    for h in range(H):
        q = qkv[:, h * d:(h + 1) * d]                                  # (BN, d)
        k = qkv[:, C + h * d:C + (h + 1) * d]                          # (BN, d)
        v = qkv[:, 2 * C + h * d:2 * C + (h + 1) * d]                  # (BN, d)

        # F.normalize(..., dim=-1): x * rsqrt(max(||x||^2, 1e-24)) == x / max(||x||, 1e-12)
        qn = q * jax.lax.rsqrt(jnp.maximum(jnp.sum(q * q, axis=-1, keepdims=True), 1e-24))
        kn = k * jax.lax.rsqrt(jnp.maximum(jnp.sum(k * k, axis=-1, keepdims=True), 1e-24))

        # fold the per-head cosine-attention scale into q (scalar read from SMEM)
        qn = qn * scale_ref[h]

        # cosine attention scores over ALL tokens; cross-window blocks get NEG_INF
        # from bm_ref and vanish after softmax (exp underflows to exactly 0).
        s = jax.lax.dot_general(qn, kn, (((1,), (1,)), ((), ())),
                                preferred_element_type=jnp.float32)    # (BN, BN)
        s = s + bm_ref[h]

        # softmax over keys (exact divide: restores tight numerics)
        s = s - jnp.max(s, axis=-1, keepdims=True)
        p = jnp.exp(s)
        p = p / jnp.sum(p, axis=-1, keepdims=True)
        # attn_drop has p=0.0 -> identity

        o = jnp.dot(p, v, preferred_element_type=jnp.float32)          # (BN, d)

        # accumulate the output projection per head: no lane-concat of heads
        y = y + jnp.dot(o, wproj_ref[h * d:(h + 1) * d, :],
                        preferred_element_type=jnp.float32)

    # proj_drop has p=0.0 -> identity
    out_ref[...] = y + bproj_ref[...]


# --------------------------- one-time parameter glue --------------------------
def prepare_window_attention(params, mask, B_):
    """Hoisted precompute: everything that does not depend on x."""
    H, N, C = NUM_HEADS, N_TOKENS, DIM
    nW = mask.shape[0]
    BN = B_ * N

    wqkv_t = params["wqkv"].T                                          # (C, 3C)
    qkv_bias = jnp.concatenate([params["q_bias"],
                                jnp.zeros_like(params["v_bias"]),
                                params["v_bias"]])[None, :]            # (1, 3C)
    wproj_t = params["wproj"].T                                        # (C, C)
    bproj = params["bproj"][None, :]                                   # (1, C)

    scale = jnp.exp(jnp.minimum(params["logit_scale"],
                                math.log(1.0 / 0.01))).reshape(H).astype(jnp.float32)

    rel_bias = compute_relative_position_bias(params)                  # (H, N, N)
    bias16 = 16.0 * jax.nn.sigmoid(rel_bias)                           # (H, N, N)
    mask_full = jnp.tile(mask, (B_ // nW, 1, 1))                       # (B_, N, N): mask[b % nW]

    # block-diagonal additive tensor: bias + mask on the diagonal window blocks,
    # NEG_INF everywhere else (so cross-window scores vanish after softmax)
    bm = jnp.full((H, BN, BN), jnp.float32(NEG_INF), jnp.float32)
    for b in range(B_):
        sl = slice(b * N, (b + 1) * N)
        bm = bm.at[:, sl, sl].set(bias16 + mask_full[b][None])

    return {"wqkv_t": wqkv_t, "qkv_bias": qkv_bias, "scale": scale,
            "bm": bm, "wproj_t": wproj_t, "bproj": bproj}


def window_attention_pallas(x, prep):
    """Forward pass: wrapper reshapes + single pallas_call (no grid)."""
    B_, N, C = x.shape
    BN = B_ * N
    x2d = x.reshape(BN, C)

    out2d = pl.pallas_call(
        window_attention_kernel,
        out_shape=jax.ShapeDtypeStruct((BN, C), jnp.float32),
        in_specs=[
            pl.BlockSpec(memory_space=pltpu.MemorySpace.VMEM),   # x2d
            pl.BlockSpec(memory_space=pltpu.MemorySpace.VMEM),   # wqkv_t
            pl.BlockSpec(memory_space=pltpu.MemorySpace.VMEM),   # qkv bias
            pl.BlockSpec(memory_space=pltpu.MemorySpace.SMEM),   # per-head scale (H,)
            pl.BlockSpec(memory_space=pltpu.MemorySpace.VMEM),   # block-diag bias+mask
            pl.BlockSpec(memory_space=pltpu.MemorySpace.VMEM),   # wproj_t
            pl.BlockSpec(memory_space=pltpu.MemorySpace.VMEM),   # proj bias
        ],
        out_specs=pl.BlockSpec(memory_space=pltpu.MemorySpace.VMEM),
    )(x2d, prep["wqkv_t"], prep["qkv_bias"], prep["scale"],
      prep["bm"], prep["wproj_t"], prep["bproj"])

    return out2d.reshape(B_, N, C)


# --------------------------- relative-position buffers -------------------------
def build_relative_coords_table(W, pretrained_W):
    rch = jnp.arange(-(W - 1), W, dtype=jnp.float32)
    rcw = jnp.arange(-(W - 1), W, dtype=jnp.float32)
    table = jnp.stack(jnp.meshgrid(rch, rcw, indexing="ij"), axis=0)   # (2, 2W-1, 2W-1)
    table = jnp.transpose(table, (1, 2, 0))[None]                      # (1, 2W-1, 2W-1, 2)
    table = table / (pretrained_W - 1)
    table = table * 8.0
    table = jnp.sign(table) * jnp.log2(jnp.abs(table) + 1.0) / np.log2(8.0)
    return table


def build_relative_position_index(W):
    coords = jnp.stack(jnp.meshgrid(jnp.arange(W), jnp.arange(W),
                                    indexing="ij"))                    # (2, W, W)
    cf = coords.reshape(2, -1)                                         # (2, N)
    rel = cf[:, :, None] - cf[:, None, :]                              # (2, N, N)
    rel = jnp.transpose(rel, (1, 2, 0))                                # (N, N, 2)
    rel = rel.at[:, :, 0].add(W - 1)
    rel = rel.at[:, :, 1].add(W - 1)
    rel = rel.at[:, :, 0].multiply(2 * W - 1)
    return rel.sum(-1)                                                 # (N, N)


def compute_relative_position_bias(params):
    """cpb_mlp table + relative-position-index gather -> (H, N, N), pre-sigmoid."""
    W, N, H = WINDOW_SIZE, N_TOKENS, NUM_HEADS
    table = build_relative_coords_table(W, PRETRAINED_WINDOW_SIZE)     # (1, 2W-1, 2W-1, 2)
    hdn = jax.nn.relu(table @ params["cpb_w1"].T + params["cpb_b1"])
    rpb_table = (hdn @ params["cpb_w2"].T).reshape(-1, H)              # ((2W-1)^2, H)
    rpi = build_relative_position_index(W).reshape(-1)                 # (N*N,)
    rel_bias = rpb_table[rpi].reshape(N, N, H)
    return jnp.transpose(rel_bias, (2, 0, 1))                          # (H, N, N)


def make_params(key):
    ks = jax.random.split(key, 8)
    p = {}
    p["wqkv"] = 0.05 * jax.random.normal(ks[0], (3 * DIM, DIM), jnp.float32)   # torch (out, in)
    p["q_bias"] = 0.05 * jax.random.normal(ks[1], (DIM,), jnp.float32)
    p["v_bias"] = 0.05 * jax.random.normal(ks[2], (DIM,), jnp.float32)
    p["logit_scale"] = jnp.full((NUM_HEADS, 1, 1), math.log(10.0), jnp.float32)
    p["cpb_w1"] = 0.05 * jax.random.normal(ks[3], (512, 2), jnp.float32)
    p["cpb_b1"] = 0.05 * jax.random.normal(ks[4], (512,), jnp.float32)
    p["cpb_w2"] = 0.05 * jax.random.normal(ks[5], (NUM_HEADS, 512), jnp.float32)
    p["wproj"] = 0.05 * jax.random.normal(ks[6], (DIM, DIM), jnp.float32)      # torch (out, in)
    p["bproj"] = 0.05 * jax.random.normal(ks[7], (DIM,), jnp.float32)
    return p


# ------------------------------ pure-JAX reference ----------------------------
def reference_forward(x, params, mask):
    B_, N, C = x.shape
    H, d = NUM_HEADS, HEAD_DIM
    nW = mask.shape[0]

    qkv_bias = jnp.concatenate(
        [params["q_bias"], jnp.zeros_like(params["v_bias"]), params["v_bias"]])
    qkv = x @ params["wqkv"].T + qkv_bias
    qkv = qkv.reshape(B_, N, 3, H, d).transpose(2, 0, 3, 1, 4)
    q, k, v = qkv[0], qkv[1], qkv[2]

    qn = q / jnp.maximum(jnp.linalg.norm(q, axis=-1, keepdims=True), 1e-12)
    kn = k / jnp.maximum(jnp.linalg.norm(k, axis=-1, keepdims=True), 1e-12)
    attn = qn @ jnp.swapaxes(kn, -2, -1)
    scale = jnp.exp(jnp.minimum(params["logit_scale"], math.log(1.0 / 0.01)))
    attn = attn * scale

    rel_bias = compute_relative_position_bias(params)
    attn = attn + (16.0 * jax.nn.sigmoid(rel_bias))[None]

    attn = attn.reshape(B_ // nW, nW, H, N, N) + mask[None, :, None]
    attn = attn.reshape(-1, H, N, N)
    attn = jax.nn.softmax(attn, axis=-1)

    out = (attn @ v).transpose(0, 2, 1, 3).reshape(B_, N, C)
    out = out @ params["wproj"].T + params["bproj"]
    return out


# ----------------------------------- main --------------------------------------
if __name__ == "__main__":
    key = jax.random.PRNGKey(0)
    k_x, k_m, k_p = jax.random.split(key, 3)

    x = jax.random.normal(k_x, (B_TOTAL, N_TOKENS, DIM), jnp.float32)
    # 0 / -100 additive mask per window (shifted-window style)
    mask_bool = jax.random.bernoulli(k_m, 0.2, (N_WINDOWS, N_TOKENS, N_TOKENS))
    mask = jnp.where(mask_bool, -100.0, 0.0).astype(jnp.float32)

    params = make_params(k_p)

    # one-time precompute (hoisted out of the per-call path)
    prep = prepare_window_attention(params, mask, B_TOTAL)
    prep = jax.tree_util.tree_map(jax.block_until_ready, prep)

    out = window_attention_pallas(x, prep)
    out = jax.block_until_ready(out)

    ref = jax.block_until_ready(reference_forward(x, params, mask))
    # exact softmax divide restored -> tight tolerance
    np.testing.assert_allclose(np.asarray(out), np.asarray(ref),
                               rtol=1e-4, atol=1e-4)

    print("KERNEL_OK")
</pallas_src>

<mosaic_0001>
module attributes {stable_mosaic.version = 11 : i64} {
  func.func @window_attention_kernel(%arg0: memref<64x32xf32, #tpu.memory_space<vmem>>, %arg1: memref<32x96xf32, #tpu.memory_space<vmem>>, %arg2: memref<1x96xf32, #tpu.memory_space<vmem>>, %arg3: memref<4xf32, #tpu.memory_space<smem>>, %arg4: memref<4x64x64xf32, #tpu.memory_space<vmem>>, %arg5: memref<32x32xf32, #tpu.memory_space<vmem>>, %arg6: memref<1x32xf32, #tpu.memory_space<vmem>>, %arg7: memref<64x32xf32, #tpu.memory_space<vmem>>) attributes {dimension_semantics = [], scalar_prefetch = 0 : i64, scratch_operands = 0 : i64, tpu.core_type = #tpu.core_type<tc>} {
    %c0 = arith.constant 0 : index
    %c0_0 = arith.constant 0 : index
    %0 = vector.load %arg0[%c0, %c0_0] : memref<64x32xf32, #tpu.memory_space<vmem>>, vector<64x32xf32>
    %c0_1 = arith.constant 0 : index
    %c0_2 = arith.constant 0 : index
    %1 = vector.load %arg1[%c0_1, %c0_2] : memref<32x96xf32, #tpu.memory_space<vmem>>, vector<32x96xf32>
    %cst = arith.constant dense<0.000000e+00> : vector<64x96xf32>
    %2 = tpu.matmul %0, %1, %cst {dimension_numbers = #tpu.dot_dimension_numbers<[1], [0], [0], [1], [0, 0, 1, 1], [], []>} : vector<64x32xf32>, vector<32x96xf32>, vector<64x96xf32> -> vector<64x96xf32>
    %c0_3 = arith.constant 0 : index
    %c0_4 = arith.constant 0 : index
    %3 = vector.load %arg2[%c0_3, %c0_4] : memref<1x96xf32, #tpu.memory_space<vmem>>, vector<1x96xf32>
    %4 = vector.broadcast %3 : vector<1x96xf32> to vector<64x96xf32>
    %5 = arith.addf %2, %4 : vector<64x96xf32>
    %cst_5 = arith.constant 0.000000e+00 : f32
    %6 = vector.broadcast %cst_5 : f32 to vector<64x32xf32>
    %7 = vector.extract_strided_slice %5 {offsets = [0, 0], sizes = [64, 8], strides = [1, 1]} : vector<64x96xf32> to vector<64x8xf32>
    %8 = vector.extract_strided_slice %5 {offsets = [0, 32], sizes = [64, 8], strides = [1, 1]} : vector<64x96xf32> to vector<64x8xf32>
    %9 = vector.extract_strided_slice %5 {offsets = [0, 64], sizes = [64, 8], strides = [1, 1]} : vector<64x96xf32> to vector<64x8xf32>
    %10 = arith.mulf %7, %7 : vector<64x8xf32>
    %cst_6 = arith.constant dense<0.000000e+00> : vector<64xf32>
    %11 = vector.multi_reduction <add>, %10, %cst_6 [1] : vector<64x8xf32> to vector<64xf32>
    %12 = vector.shape_cast %11 : vector<64xf32> to vector<64x1xf32>
    %cst_7 = arith.constant 1.000000e-24 : f32
    %13 = vector.broadcast %cst_7 : f32 to vector<64x1xf32>
    %14 = arith.maximumf %12, %13 : vector<64x1xf32>
    %15 = math.rsqrt %14 : vector<64x1xf32>
    %16 = vector.broadcast %15 : vector<64x1xf32> to vector<64x8xf32>
    %17 = arith.mulf %7, %16 : vector<64x8xf32>
    %18 = arith.mulf %8, %8 : vector<64x8xf32>
    %cst_8 = arith.constant dense<0.000000e+00> : vector<64xf32>
    %19 = vector.multi_reduction <add>, %18, %cst_8 [1] : vector<64x8xf32> to vector<64xf32>
    %20 = vector.shape_cast %19 : vector<64xf32> to vector<64x1xf32>
    %cst_9 = arith.constant 1.000000e-24 : f32
    %21 = vector.broadcast %cst_9 : f32 to vector<64x1xf32>
    %22 = arith.maximumf %20, %21 : vector<64x1xf32>
    %23 = math.rsqrt %22 : vector<64x1xf32>
    %24 = vector.broadcast %23 : vector<64x1xf32> to vector<64x8xf32>
    %25 = arith.mulf %8, %24 : vector<64x8xf32>
    %c0_10 = arith.constant 0 : index
    %26 = memref.load %arg3[%c0_10] : memref<4xf32, #tpu.memory_space<smem>>
    %27 = vector.broadcast %26 : f32 to vector<64x8xf32>
    %28 = arith.mulf %17, %27 : vector<64x8xf32>
    %cst_11 = arith.constant dense<0.000000e+00> : vector<64x64xf32>
    %29 = tpu.matmul %28, %25, %cst_11 {dimension_numbers = #tpu.dot_dimension_numbers<[1], [1], [0], [0], [0, 0, 1, 0], [], []>} : vector<64x8xf32>, vector<64x8xf32>, vector<64x64xf32> -> vector<64x64xf32>
    %c0_12 = arith.constant 0 : index
    %c0_13 = arith.constant 0 : index
    %c0_14 = arith.constant 0 : index
    %30 = vector.load %arg4[%c0_12, %c0_13, %c0_14] : memref<4x64x64xf32, #tpu.memory_space<vmem>>, vector<1x64x64xf32>
    %31 = vector.shape_cast %30 : vector<1x64x64xf32> to vector<64x64xf32>
    %32 = arith.addf %29, %31 : vector<64x64xf32>
    %cst_15 = arith.constant dense<0xFF800000> : vector<64xf32>
    %33 = vector.multi_reduction <maximumf>, %32, %cst_15 [1] : vector<64x64xf32> to vector<64xf32>
    %34 = vector.shape_cast %33 : vector<64xf32> to vector<64x1xf32>
    %35 = vector.broadcast %34 : vector<64x1xf32> to vector<64x64xf32>
    %36 = arith.subf %32, %35 : vector<64x64xf32>
    %37 = math.exp %36 : vector<64x64xf32>
    %cst_16 = arith.constant dense<0.000000e+00> : vector<64xf32>
    %38 = vector.multi_reduction <add>, %37, %cst_16 [1] : vector<64x64xf32> to vector<64xf32>
    %39 = vector.shape_cast %38 : vector<64xf32> to vector<64x1xf32>
    %40 = vector.broadcast %39 : vector<64x1xf32> to vector<64x64xf32>
    %41 = arith.divf %37, %40 : vector<64x64xf32>
    %cst_17 = arith.constant dense<0.000000e+00> : vector<64x8xf32>
    %42 = tpu.matmul %41, %9, %cst_17 {dimension_numbers = #tpu.dot_dimension_numbers<[1], [0], [0], [1], [0, 0, 1, 1], [], []>} : vector<64x64xf32>, vector<64x8xf32>, vector<64x8xf32> -> vector<64x8xf32>
    %c0_18 = arith.constant 0 : index
    %c0_19 = arith.constant 0 : index
    %43 = vector.load %arg5[%c0_18, %c0_19] : memref<32x32xf32, #tpu.memory_space<vmem>>, vector<8x32xf32>
    %cst_20 = arith.constant dense<0.000000e+00> : vector<64x32xf32>
    %44 = tpu.matmul %42, %43, %cst_20 {dimension_numbers = #tpu.dot_dimension_numbers<[1], [0], [0], [1], [0, 0, 1, 1], [], []>} : vector<64x8xf32>, vector<8x32xf32>, vector<64x32xf32> -> vector<64x32xf32>
    %45 = arith.addf %6, %44 : vector<64x32xf32>
    %46 = vector.extract_strided_slice %5 {offsets = [0, 8], sizes = [64, 8], strides = [1, 1]} : vector<64x96xf32> to vector<64x8xf32>
    %47 = vector.extract_strided_slice %5 {offsets = [0, 40], sizes = [64, 8], strides = [1, 1]} : vector<64x96xf32> to vector<64x8xf32>
    %48 = vector.extract_strided_slice %5 {offsets = [0, 72], sizes = [64, 8], strides = [1, 1]} : vector<64x96xf32> to vector<64x8xf32>
    %49 = arith.mulf %46, %46 : vector<64x8xf32>
    %cst_21 = arith.constant dense<0.000000e+00> : vector<64xf32>
    %50 = vector.multi_reduction <add>, %49, %cst_21 [1] : vector<64x8xf32> to vector<64xf32>
    %51 = vector.shape_cast %50 : vector<64xf32> to vector<64x1xf32>
    %cst_22 = arith.constant 1.000000e-24 : f32
    %52 = vector.broadcast %cst_22 : f32 to vector<64x1xf32>
    %53 = arith.maximumf %51, %52 : vector<64x1xf32>
    %54 = math.rsqrt %53 : vector<64x1xf32>
    %55 = vector.broadcast %54 : vector<64x1xf32> to vector<64x8xf32>
    %56 = arith.mulf %46, %55 : vector<64x8xf32>
    %57 = arith.mulf %47, %47 : vector<64x8xf32>
    %cst_23 = arith.constant dense<0.000000e+00> : vector<64xf32>
    %58 = vector.multi_reduction <add>, %57, %cst_23 [1] : vector<64x8xf32> to vector<64xf32>
    %59 = vector.shape_cast %58 : vector<64xf32> to vector<64x1xf32>
    %cst_24 = arith.constant 1.000000e-24 : f32
    %60 = vector.broadcast %cst_24 : f32 to vector<64x1xf32>
    %61 = arith.maximumf %59, %60 : vector<64x1xf32>
    %62 = math.rsqrt %61 : vector<64x1xf32>
    %63 = vector.broadcast %62 : vector<64x1xf32> to vector<64x8xf32>
    %64 = arith.mulf %47, %63 : vector<64x8xf32>
    %c1 = arith.constant 1 : index
    %65 = memref.load %arg3[%c1] : memref<4xf32, #tpu.memory_space<smem>>
    %66 = vector.broadcast %65 : f32 to vector<64x8xf32>
    %67 = arith.mulf %56, %66 : vector<64x8xf32>
    %cst_25 = arith.constant dense<0.000000e+00> : vector<64x64xf32>
    %68 = tpu.matmul %67, %64, %cst_25 {dimension_numbers = #tpu.dot_dimension_numbers<[1], [1], [0], [0], [0, 0, 1, 0], [], []>} : vector<64x8xf32>, vector<64x8xf32>, vector<64x64xf32> -> vector<64x64xf32>
    %c1_26 = arith.constant 1 : index
    %c0_27 = arith.constant 0 : index
    %c0_28 = arith.constant 0 : index
    %69 = vector.load %arg4[%c1_26, %c0_27, %c0_28] : memref<4x64x64xf32, #tpu.memory_space<vmem>>, vector<1x64x64xf32>
    %70 = vector.shape_cast %69 : vector<1x64x64xf32> to vector<64x64xf32>
    %71 = arith.addf %68, %70 : vector<64x64xf32>
    %cst_29 = arith.constant dense<0xFF800000> : vector<64xf32>
    %72 = vector.multi_reduction <maximumf>, %71, %cst_29 [1] : vector<64x64xf32> to vector<64xf32>
    %73 = vector.shape_cast %72 : vector<64xf32> to vector<64x1xf32>
    %74 = vector.broadcast %73 : vector<64x1xf32> to vector<64x64xf32>
    %75 = arith.subf %71, %74 : vector<64x64xf32>
    %76 = math.exp %75 : vector<64x64xf32>
    %cst_30 = arith.constant dense<0.000000e+00> : vector<64xf32>
    %77 = vector.multi_reduction <add>, %76, %cst_30 [1] : vector<64x64xf32> to vector<64xf32>
    %78 = vector.shape_cast %77 : vector<64xf32> to vector<64x1xf32>
    %79 = vector.broadcast %78 : vector<64x1xf32> to vector<64x64xf32>
    %80 = arith.divf %76, %79 : vector<64x64xf32>
    %cst_31 = arith.constant dense<0.000000e+00> : vector<64x8xf32>
    %81 = tpu.matmul %80, %48, %cst_31 {dimension_numbers = #tpu.dot_dimension_numbers<[1], [0], [0], [1], [0, 0, 1, 1], [], []>} : vector<64x64xf32>, vector<64x8xf32>, vector<64x8xf32> -> vector<64x8xf32>
    %c8 = arith.constant 8 : index
    %c0_32 = arith.constant 0 : index
    %82 = vector.load %arg5[%c8, %c0_32] : memref<32x32xf32, #tpu.memory_space<vmem>>, vector<8x32xf32>
    %cst_33 = arith.constant dense<0.000000e+00> : vector<64x32xf32>
    %83 = tpu.matmul %81, %82, %cst_33 {dimension_numbers = #tpu.dot_dimension_numbers<[1], [0], [0], [1], [0, 0, 1, 1], [], []>} : vector<64x8xf32>, vector<8x32xf32>, vector<64x32xf32> -> vector<64x32xf32>
    %84 = arith.addf %45, %83 : vector<64x32xf32>
    %85 = vector.extract_strided_slice %5 {offsets = [0, 16], sizes = [64, 8], strides = [1, 1]} : vector<64x96xf32> to vector<64x8xf32>
    %86 = vector.extract_strided_slice %5 {offsets = [0, 48], sizes = [64, 8], strides = [1, 1]} : vector<64x96xf32> to vector<64x8xf32>
    %87 = vector.extract_strided_slice %5 {offsets = [0, 80], sizes = [64, 8], strides = [1, 1]} : vector<64x96xf32> to vector<64x8xf32>
    %88 = arith.mulf %85, %85 : vector<64x8xf32>
    %cst_34 = arith.constant dense<0.000000e+00> : vector<64xf32>
    %89 = vector.multi_reduction <add>, %88, %cst_34 [1] : vector<64x8xf32> to vector<64xf32>
    %90 = vector.shape_cast %89 : vector<64xf32> to vector<64x1xf32>
    %cst_35 = arith.constant 1.000000e-24 : f32
    %91 = vector.broadcast %cst_35 : f32 to vector<64x1xf32>
    %92 = arith.maximumf %90, %91 : vector<64x1xf32>
    %93 = math.rsqrt %92 : vector<64x1xf32>
    %94 = vector.broadcast %93 : vector<64x1xf32> to vector<64x8xf32>
    %95 = arith.mulf %85, %94 : vector<64x8xf32>
    %96 = arith.mulf %86, %86 : vector<64x8xf32>
    %cst_36 = arith.constant dense<0.000000e+00> : vector<64xf32>
    %97 = vector.multi_reduction <add>, %96, %cst_36 [1] : vector<64x8xf32> to vector<64xf32>
    %98 = vector.shape_cast %97 : vector<64xf32> to vector<64x1xf32>
    %cst_37 = arith.constant 1.000000e-24 : f32
    %99 = vector.broadcast %cst_37 : f32 to vector<64x1xf32>
    %100 = arith.maximumf %98, %99 : vector<64x1xf32>
    %101 = math.rsqrt %100 : vector<64x1xf32>
    %102 = vector.broadcast %101 : vector<64x1xf32> to vector<64x8xf32>
    %103 = arith.mulf %86, %102 : vector<64x8xf32>
    %c2 = arith.constant 2 : index
    %104 = memref.load %arg3[%c2] : memref<4xf32, #tpu.memory_space<smem>>
    %105 = vector.broadcast %104 : f32 to vector<64x8xf32>
    %106 = arith.mulf %95, %105 : vector<64x8xf32>
    %cst_38 = arith.constant dense<0.000000e+00> : vector<64x64xf32>
    %107 = tpu.matmul %106, %103, %cst_38 {dimension_numbers = #tpu.dot_dimension_numbers<[1], [1], [0], [0], [0, 0, 1, 0], [], []>} : vector<64x8xf32>, vector<64x8xf32>, vector<64x64xf32> -> vector<64x64xf32>
    %c2_39 = arith.constant 2 : index
    %c0_40 = arith.constant 0 : index
    %c0_41 = arith.constant 0 : index
    %108 = vector.load %arg4[%c2_39, %c0_40, %c0_41] : memref<4x64x64xf32, #tpu.memory_space<vmem>>, vector<1x64x64xf32>
    %109 = vector.shape_cast %108 : vector<1x64x64xf32> to vector<64x64xf32>
    %110 = arith.addf %107, %109 : vector<64x64xf32>
    %cst_42 = arith.constant dense<0xFF800000> : vector<64xf32>
    %111 = vector.multi_reduction <maximumf>, %110, %cst_42 [1] : vector<64x64xf32> to vector<64xf32>
    %112 = vector.shape_cast %111 : vector<64xf32> to vector<64x1xf32>
    %113 = vector.broadcast %112 : vector<64x1xf32> to vector<64x64xf32>
    %114 = arith.subf %110, %113 : vector<64x64xf32>
    %115 = math.exp %114 : vector<64x64xf32>
    %cst_43 = arith.constant dense<0.000000e+00> : vector<64xf32>
    %116 = vector.multi_reduction <add>, %115, %cst_43 [1] : vector<64x64xf32> to vector<64xf32>
    %117 = vector.shape_cast %116 : vector<64xf32> to vector<64x1xf32>
    %118 = vector.broadcast %117 : vector<64x1xf32> to vector<64x64xf32>
    %119 = arith.divf %115, %118 : vector<64x64xf32>
    %cst_44 = arith.constant dense<0.000000e+00> : vector<64x8xf32>
    %120 = tpu.matmul %119, %87, %cst_44 {dimension_numbers = #tpu.dot_dimension_numbers<[1], [0], [0], [1], [0, 0, 1, 1], [], []>} : vector<64x64xf32>, vector<64x8xf32>, vector<64x8xf32> -> vector<64x8xf32>
    %c16 = arith.constant 16 : index
    %c0_45 = arith.constant 0 : index
    %121 = vector.load %arg5[%c16, %c0_45] : memref<32x32xf32, #tpu.memory_space<vmem>>, vector<8x32xf32>
    %cst_46 = arith.constant dense<0.000000e+00> : vector<64x32xf32>
    %122 = tpu.matmul %120, %121, %cst_46 {dimension_numbers = #tpu.dot_dimension_numbers<[1], [0], [0], [1], [0, 0, 1, 1], [], []>} : vector<64x8xf32>, vector<8x32xf32>, vector<64x32xf32> -> vector<64x32xf32>
    %123 = arith.addf %84, %122 : vector<64x32xf32>
    %124 = vector.extract_strided_slice %5 {offsets = [0, 24], sizes = [64, 8], strides = [1, 1]} : vector<64x96xf32> to vector<64x8xf32>
    %125 = vector.extract_strided_slice %5 {offsets = [0, 56], sizes = [64, 8], strides = [1, 1]} : vector<64x96xf32> to vector<64x8xf32>
    %126 = vector.extract_strided_slice %5 {offsets = [0, 88], sizes = [64, 8], strides = [1, 1]} : vector<64x96xf32> to vector<64x8xf32>
    %127 = arith.mulf %124, %124 : vector<64x8xf32>
    %cst_47 = arith.constant dense<0.000000e+00> : vector<64xf32>
    %128 = vector.multi_reduction <add>, %127, %cst_47 [1] : vector<64x8xf32> to vector<64xf32>
    %129 = vector.shape_cast %128 : vector<64xf32> to vector<64x1xf32>
    %cst_48 = arith.constant 1.000000e-24 : f32
    %130 = vector.broadcast %cst_48 : f32 to vector<64x1xf32>
    %131 = arith.maximumf %129, %130 : vector<64x1xf32>
    %132 = math.rsqrt %131 : vector<64x1xf32>
    %133 = vector.broadcast %132 : vector<64x1xf32> to vector<64x8xf32>
    %134 = arith.mulf %124, %133 : vector<64x8xf32>
    %135 = arith.mulf %125, %125 : vector<64x8xf32>
    %cst_49 = arith.constant dense<0.000000e+00> : vector<64xf32>
    %136 = vector.multi_reduction <add>, %135, %cst_49 [1] : vector<64x8xf32> to vector<64xf32>
    %137 = vector.shape_cast %136 : vector<64xf32> to vector<64x1xf32>
    %cst_50 = arith.constant 1.000000e-24 : f32
    %138 = vector.broadcast %cst_50 : f32 to vector<64x1xf32>
    %139 = arith.maximumf %137, %138 : vector<64x1xf32>
    %140 = math.rsqrt %139 : vector<64x1xf32>
    %141 = vector.broadcast %140 : vector<64x1xf32> to vector<64x8xf32>
    %142 = arith.mulf %125, %141 : vector<64x8xf32>
    %c3 = arith.constant 3 : index
    %143 = memref.load %arg3[%c3] : memref<4xf32, #tpu.memory_space<smem>>
    %144 = vector.broadcast %143 : f32 to vector<64x8xf32>
    %145 = arith.mulf %134, %144 : vector<64x8xf32>
    %cst_51 = arith.constant dense<0.000000e+00> : vector<64x64xf32>
    %146 = tpu.matmul %145, %142, %cst_51 {dimension_numbers = #tpu.dot_dimension_numbers<[1], [1], [0], [0], [0, 0, 1, 0], [], []>} : vector<64x8xf32>, vector<64x8xf32>, vector<64x64xf32> -> vector<64x64xf32>
    %c3_52 = arith.constant 3 : index
    %c0_53 = arith.constant 0 : index
    %c0_54 = arith.constant 0 : index
    %147 = vector.load %arg4[%c3_52, %c0_53, %c0_54] : memref<4x64x64xf32, #tpu.memory_space<vmem>>, vector<1x64x64xf32>
    %148 = vector.shape_cast %147 : vector<1x64x64xf32> to vector<64x64xf32>
    %149 = arith.addf %146, %148 : vector<64x64xf32>
    %cst_55 = arith.constant dense<0xFF800000> : vector<64xf32>
    %150 = vector.multi_reduction <maximumf>, %149, %cst_55 [1] : vector<64x64xf32> to vector<64xf32>
    %151 = vector.shape_cast %150 : vector<64xf32> to vector<64x1xf32>
    %152 = vector.broadcast %151 : vector<64x1xf32> to vector<64x64xf32>
    %153 = arith.subf %149, %152 : vector<64x64xf32>
    %154 = math.exp %153 : vector<64x64xf32>
    %cst_56 = arith.constant dense<0.000000e+00> : vector<64xf32>
    %155 = vector.multi_reduction <add>, %154, %cst_56 [1] : vector<64x64xf32> to vector<64xf32>
    %156 = vector.shape_cast %155 : vector<64xf32> to vector<64x1xf32>
    %157 = vector.broadcast %156 : vector<64x1xf32> to vector<64x64xf32>
    %158 = arith.divf %154, %157 : vector<64x64xf32>
    %cst_57 = arith.constant dense<0.000000e+00> : vector<64x8xf32>
    %159 = tpu.matmul %158, %126, %cst_57 {dimension_numbers = #tpu.dot_dimension_numbers<[1], [0], [0], [1], [0, 0, 1, 1], [], []>} : vector<64x64xf32>, vector<64x8xf32>, vector<64x8xf32> -> vector<64x8xf32>
    %c24 = arith.constant 24 : index
    %c0_58 = arith.constant 0 : index
    %160 = vector.load %arg5[%c24, %c0_58] : memref<32x32xf32, #tpu.memory_space<vmem>>, vector<8x32xf32>
    %cst_59 = arith.constant dense<0.000000e+00> : vector<64x32xf32>
    %161 = tpu.matmul %159, %160, %cst_59 {dimension_numbers = #tpu.dot_dimension_numbers<[1], [0], [0], [1], [0, 0, 1, 1], [], []>} : vector<64x8xf32>, vector<8x32xf32>, vector<64x32xf32> -> vector<64x32xf32>
    %162 = arith.addf %123, %161 : vector<64x32xf32>
    %c0_60 = arith.constant 0 : index
    %c0_61 = arith.constant 0 : index
    %163 = vector.load %arg6[%c0_60, %c0_61] : memref<1x32xf32, #tpu.memory_space<vmem>>, vector<1x32xf32>
    %164 = vector.broadcast %163 : vector<1x32xf32> to vector<64x32xf32>
    %165 = arith.addf %162, %164 : vector<64x32xf32>
    %c0_62 = arith.constant 0 : index
    %c0_63 = arith.constant 0 : index
    %166 = vector.load %arg7[%c0_62, %c0_63] : memref<64x32xf32, #tpu.memory_space<vmem>>, vector<64x32xf32>
    tpu.vector_store %arg7[%c0_62, %c0_63], %165 {strides = array<i32>} : memref<64x32xf32, #tpu.memory_space<vmem>>, vector<64x32xf32>,
    return
  }
}

</mosaic_0001>

<llo_original>
// kernel: tpu_custom_call.1
$region0: #{tpu_custom_call.1}
  #allocation0 [shape = 'u32[]', space=smem, size = 0x4, offset = 0x4, fixed_abs, tag = 'smem constant byte address 0x4 - core index']
  #allocation1 [shape = 'u32[144,128]{1,0:T(1,128)}', space=vmem, size = 0x12000, scoped, tag = 'internal scratch']
  %s0 = inlined_call_operand.vmem [shape: f32[64,32], index: 0, kind: input, shape index: {}]
  %s1 = inlined_call_operand.vmem [shape: f32[32,96], index: 1, kind: input, shape index: {}]
  %s2 = inlined_call_operand.vmem [shape: f32[1,96], index: 2, kind: input, shape index: {}]
  %s3 = inlined_call_operand.vmem [shape: f32[4], index: 3, kind: input, shape index: {}]
  %s4 = inlined_call_operand.hbm [shape: f32[4,64,64], index: 4, kind: input, shape index: {}]
  %s5 = inlined_call_operand.vmem [shape: f32[32,32], index: 5, kind: input, shape index: {}]
  %s6 = inlined_call_operand.vmem [shape: f32[1,32], index: 6, kind: input, shape index: {}]
  %s7 = inlined_call_operand.vmem [shape: f32[64,32], index: 7, kind: output, shape index: {}]
  %s8 = sld [smem:[#allocation0]]
  $region46: #{tpu_custom_call.1} parent=0
    _
  %s10 = ssub.s32 1, %s8
  %s11 = scalar_select 0, %s10, %s8
  $region1: #{tpu_custom_call.1} parent=0
    #allocation2 [shape = 'u8[512]{0}', space=smem, size = 0x200, scoped, tag = 'input window, operand 3, single buffered']
    #allocation3 [shape = 's32[1]{0}', space=sflag, size = 0x4, scoped, tag = 'scoped memory for tpu_custom_call.1']
    #allocation4 [shape = 's32[1]{0}', space=sflag, size = 0x4, scoped, tag = 'scoped memory for tpu_custom_call.1']
    #allocation5 [shape = 'u8[131072]{0}', space=vmem, size = 0x20000, scoped, tag = 'input window, operand 4, single buffered']
    %12 = vsyncpa [#allocation4], 0
    %13 = vsyncpa [#allocation3], 0
    // Predicated region
    $region2: #{tpu_custom_call.1} parent=1 // pred_check
      _
    $region3: #{tpu_custom_call.1} parent=1 // pred_check_branch
      %15 = sbr.rel (0) target = $region5
    $region4: #{tpu_custom_call.1} parent=1 // pred_region
      _
    $region5: #{tpu_custom_call.1} parent=1 // pred_fallthru
      _
    // Predicated region
    $region6: #{tpu_custom_call.1} parent=1 // pred_check
      _
    $region7: #{tpu_custom_call.1} parent=1 // pred_check_branch
      %17 = sbr.rel (0) target = $region9
    $region8: #{tpu_custom_call.1} parent=1 // pred_region
      _
    $region9: #{tpu_custom_call.1} parent=1 // pred_fallthru
      _
    // Predicated region
    $region10: #{tpu_custom_call.1} parent=1 // pred_check
      _
    $region11: #{tpu_custom_call.1} parent=1 // pred_check_branch
      %19 = sbr.rel (0) target = $region13
    $region12: #{tpu_custom_call.1} parent=1 // pred_region
      _
    $region13: #{tpu_custom_call.1} parent=1 // pred_fallthru
      _
    // Predicated region
    $region14: #{tpu_custom_call.1} parent=1 // pred_check
      _
    $region15: #{tpu_custom_call.1} parent=1 // pred_check_branch
      %21 = sbr.rel (0) target = $region17
    $region16: #{tpu_custom_call.1} parent=1 // pred_region
      %s23 = ssub.s32 16, 16
      %24 = vsyncadd [#allocation4], %s23
      %s26 = sshll.u32 %s3, 4
      %s27 = int_to_ptr.vmem [resolvable:$true] %s26
      %29 = dma.vmem_to_smem %s27, 16, [#allocation2], [#allocation4]
    $region17: #{tpu_custom_call.1} parent=1 // pred_fallthru
      _
    // Predicated region
    $region18: #{tpu_custom_call.1} parent=1 // pred_check
      _
    $region19: #{tpu_custom_call.1} parent=1 // pred_check_branch
      %31 = sbr.rel (0) target = $region21
    $region20: #{tpu_custom_call.1} parent=1 // pred_region
      %s33 = ssub.s32 4096, 4096
      %34 = vsyncadd [#allocation3], %s33
      %s35 = sshll.u32 [#allocation5], 4
      %s36 = int_to_ptr.vmem [resolvable:$true] %s35
      %41 = dma.hbm_to_vmem [thread:$0]  %s4, 4096, %s36, [#allocation3], 128, 128, 8
    $region21: #{tpu_custom_call.1} parent=1 // pred_fallthru
      _
    // Predicated region
    $region22: #{tpu_custom_call.1} parent=1 // pred_check
      _
    $region23: #{tpu_custom_call.1} parent=1 // pred_check_branch
      %43 = sbr.rel (0) target = $region25
    $region24: #{tpu_custom_call.1} parent=1 // pred_region
      _
    $region25: #{tpu_custom_call.1} parent=1 // pred_fallthru
      _
    // Predicated region
    $region26: #{tpu_custom_call.1} parent=1 // pred_check
      _
    $region27: #{tpu_custom_call.1} parent=1 // pred_check_branch
      %45 = sbr.rel (0) target = $region29
    $region28: #{tpu_custom_call.1} parent=1 // pred_region
      _
    $region29: #{tpu_custom_call.1} parent=1 // pred_fallthru
      _
    // Predicated region
    $region30: #{tpu_custom_call.1} parent=1 // pred_check
      _
    $region31: #{tpu_custom_call.1} parent=1 // pred_check_branch
      %47 = sbr.rel (0) target = $region33
    $region32: #{tpu_custom_call.1} parent=1 // pred_region
      %48 = dma.done [#allocation4], 16
    $region33: #{tpu_custom_call.1} parent=1 // pred_fallthru
      _
    // Predicated region
    $region34: #{tpu_custom_call.1} parent=1 // pred_check
      _
    $region35: #{tpu_custom_call.1} parent=1 // pred_check_branch
      %50 = sbr.rel (0) target = $region37
    $region36: #{tpu_custom_call.1} parent=1 // pred_region
      %51 = dma.done [#allocation3], 4096
    $region37: #{tpu_custom_call.1} parent=1 // pred_fallthru
      _
    %52 = sfence
    %v53 = vld [vmem:[%s0] sm:$0xff]
    %v54 = vld [vmem:[%s0 + $0x8] sm:$0xff]
    %v55 = vld [vmem:[%s0 + $0x10] sm:$0xff]
    %v56 = vld [vmem:[%s0 + $0x18] sm:$0xff]
    %v57 = vld [vmem:[%s0 + $0x20] sm:$0xff]
    %v58 = vld [vmem:[%s0 + $0x28] sm:$0xff]
    %v59 = vld [vmem:[%s0 + $0x30] sm:$0xff]
    %v60 = vld [vmem:[%s0 + $0x38] sm:$0xff]
    %v61 = vld [vmem:[%s1] sm:$0xff]
    %v62 = vld [vmem:[%s1 + $0x8] sm:$0xff]
    %v63 = vld [vmem:[%s1 + $0x10] sm:$0xff]
    %v64 = vld [vmem:[%s1 + $0x18] sm:$0xff]
    %v65 = vld [vmem:[%s2] sm:$0x1]
    %v67 = vlaneseq
    %v68 = vshrl.u32 %v67, 7
    %v69 = vsub.s32 0, %v68
    %v70 = vrot.slane %v65, %v69
    %vm72 = vcmask 261120
    %v74 = vsel %vm72, %v53, 0
    %v77 = vsel %vm72, %v54, 0
    %v80 = vsel %vm72, %v55, 0
    %v83 = vsel %vm72, %v56, 0
    %v86 = vsel %vm72, %v57, 0
    %v89 = vsel %vm72, %v58, 0
    %v92 = vsel %vm72, %v59, 0
    %v95 = vsel %vm72, %v60, 0
    %97 = vmatprep.subr.mxu0 0.0
    %98 = vmatpush1.msra.mxu0 %v61
    %99 = vmatprep.subr.mxu0 0.0
    %100 = vmatpush1.msra.mxu0 %v62
    %101 = vmatprep.subr.mxu0 0.0
    %102 = vmatpush1.msra.mxu0 %v63
    %103 = vmatprep.subr.mxu0 0.0
    %104 = vmatpush1.msra.mxu0 %v64
    %105 = vmatprep.subr.mxu0 0.0
    %106 = vmatpush1.msra.mxu0 0.0
    %107 = vmatprep.subr.mxu0 0.0
    %108 = vmatpush1.msra.mxu0 0.0
    %109 = vmatprep.subr.mxu0 0.0
    %110 = vmatpush1.msra.mxu0 0.0
    %111 = vmatprep.subr.mxu0 0.0
    %112 = vmatpush1.msra.mxu0 0.0
    %113 = vmatprep.subr.mxu0 0.0
    %114 = vmatpush1.msra.mxu0 0.0
    %115 = vmatprep.subr.mxu0 0.0
    %116 = vmatpush1.msra.mxu0 0.0
    %117 = vmatprep.subr.mxu0 0.0
    %118 = vmatpush1.msra.mxu0 0.0
    %119 = vmatprep.subr.mxu0 0.0
    %120 = vmatpush1.msra.mxu0 0.0
    %121 = vmatprep.subr.mxu0 0.0
    %122 = vmatpush1.msra.mxu0 0.0
    %123 = vmatprep.subr.mxu0 0.0
    %124 = vmatpush1.msra.mxu0 0.0
    %125 = vmatprep.subr.mxu0 0.0
    %126 = vmatpush1.msra.mxu0 0.0
    %127 = vmatprep.subr.mxu0 0.0
    %128 = vmatpush1.msra.mxu0 0.0
    %129 = vmatprep.subr.mxu0 0.0
    %130 = vmatpush1.msra.mxu0 0.0
    %131 = vmatprep.subr.mxu0 0.0
    %132 = vmatpush1.msra.mxu0 0.0
    %133 = vmatprep.subr.mxu0 0.0
    %134 = vmatpush1.msra.mxu0 0.0
    %135 = vmatprep.subr.mxu0 0.0
    %136 = vmatpush1.msra.mxu0 0.0
    %137 = vmatprep.subr.mxu0 0.0
    %138 = vmatpush1.msra.mxu0 0.0
    %139 = vmatprep.subr.mxu0 0.0
    %140 = vmatpush1.msra.mxu0 0.0
    %141 = vmatprep.subr.mxu0 0.0
    %142 = vmatpush1.msra.mxu0 0.0
    %143 = vmatprep.subr.mxu0 0.0
    %144 = vmatpush1.msra.mxu0 0.0
    %145 = vmatprep.subr.mxu0 0.0
    %146 = vmatpush1.msra.mxu0 0.0
    %147 = vmatprep.subr.mxu0 0.0
    %148 = vmatpush1.msra.mxu0 0.0
    %149 = vmatprep.subr.mxu0 0.0
    %150 = vmatpush1.msra.mxu0 0.0
    %151 = vmatprep.subr.mxu0 0.0
    %152 = vmatpush1.msra.mxu0 0.0
    %153 = vmatprep.subr.mxu0 0.0
    %154 = vmatpush1.msra.mxu0 0.0
    %155 = vmatprep.subr.mxu0 0.0
    %156 = vmatpush1.msra.mxu0 0.0
    %157 = vmatprep.subr.mxu0 0.0
    %158 = vmatpush1.msra.mxu0 0.0
    %159 = vmatprep.subr.mxu0 0.0
    %160 = vmatpush1.msra.mxu0 0.0
    %161 = vmatprep.mubr.f32.mxu0 0.0
    %162 = vmatmul.mubr.f32.gmra.mrb[0].mxu0 %v74
    %v163 = vpop.f32.mrb[0].mxu0
    %v164 = vadd.f32 %v70, %v163
    %v165 = vpop.f32.mrb[0].mxu0
    %166 = vmatprep.mubr.f32.mxu0 0.0
    %167 = vmatmul.mubr.f32.gmra.mrb[0].mxu0 %v77
    %v168 = vpop.f32.mrb[0].mxu0
    %v169 = vadd.f32 %v70, %v168
    %v170 = vpop.f32.mrb[0].mxu0
    %171 = vmatprep.mubr.f32.mxu0 0.0
    %172 = vmatmul.mubr.f32.gmra.mrb[0].mxu0 %v80
    %v173 = vpop.f32.mrb[0].mxu0
    %v174 = vadd.f32 %v70, %v173
    %v175 = vpop.f32.mrb[0].mxu0
    %176 = vmatprep.mubr.f32.mxu0 0.0
    %177 = vmatmul.mubr.f32.gmra.mrb[0].mxu0 %v83
    %v178 = vpop.f32.mrb[0].mxu0
    %v179 = vadd.f32 %v70, %v178
    %v180 = vpop.f32.mrb[0].mxu0
    %181 = vmatprep.mubr.f32.mxu0 0.0
    %182 = vmatmul.mubr.f32.gmra.mrb[0].mxu0 %v86
    %v183 = vpop.f32.mrb[0].mxu0
    %v184 = vadd.f32 %v70, %v183
    %v185 = vpop.f32.mrb[0].mxu0
    %186 = vmatprep.mubr.f32.mxu0 0.0
    %187 = vmatmul.mubr.f32.gmra.mrb[0].mxu0 %v89
    %v188 = vpop.f32.mrb[0].mxu0
    %v189 = vadd.f32 %v70, %v188
    %v190 = vpop.f32.mrb[0].mxu0
    %191 = vmatprep.mubr.f32.mxu0 0.0
    %192 = vmatmul.mubr.f32.gmra.mrb[0].mxu0 %v92
    %v193 = vpop.f32.mrb[0].mxu0
    %v194 = vadd.f32 %v70, %v193
    %v195 = vpop.f32.mrb[0].mxu0
    %196 = vmatprep.mubr.f32.mxu0 0.0
    %197 = vmatmul.mubr.f32.gmra.mrb[0].mxu0 %v95
    %v198 = vpop.f32.mrb[0].mxu0
    %v199 = vadd.f32 %v70, %v198
    %v200 = vpop.f32.mrb[0].mxu0
    %201 = vdwg.mxu0
    %v202 = vmul.f32 %v164, %v164
    %v203 = vmul.f32 %v169, %v169
    %v204 = vmul.f32 %v174, %v174
    %v205 = vmul.f32 %v179, %v179
    %v206 = vmul.f32 %v184, %v184
    %v207 = vmul.f32 %v189, %v189
    %v208 = vmul.f32 %v194, %v194
    %v209 = vmul.f32 %v199, %v199
    %vm210 = vcmask 64512
    %v211 = vsel %vm210, %v202, 0.0
    %212 = vadd.xlane.f32.xlu0 %v211
    %v213 = vpop.xlane.xlu0 %212
    %v214 = vsel %vm210, %v203, 0.0
    %215 = vadd.xlane.f32.xlu0 %v214
    %v216 = vpop.xlane.xlu0 %215
    %v217 = vsel %vm210, %v204, 0.0
    %218 = vadd.xlane.f32.xlu0 %v217
    %v219 = vpop.xlane.xlu0 %218
    %v220 = vsel %vm210, %v205, 0.0
    %221 = vadd.xlane.f32.xlu0 %v220
    %v222 = vpop.xlane.xlu0 %221
    %v223 = vsel %vm210, %v206, 0.0
    %224 = vadd.xlane.f32.xlu0 %v223
    %v225 = vpop.xlane.xlu0 %224
    %v226 = vsel %vm210, %v207, 0.0
    %227 = vadd.xlane.f32.xlu0 %v226
    %v228 = vpop.xlane.xlu0 %227
    %v229 = vsel %vm210, %v208, 0.0
    %230 = vadd.xlane.f32.xlu0 %v229
    %v231 = vpop.xlane.xlu0 %230
    %v232 = vsel %vm210, %v209, 0.0
    %233 = vadd.xlane.f32.xlu0 %v232
    %v234 = vpop.xlane.xlu0 %233
    %v235 = vmax.f32 %v213, 1e-24
    %v236 = vmax.f32 %v216, 1e-24
    %v237 = vmax.f32 %v219, 1e-24
    %v238 = vmax.f32 %v222, 1e-24
    %v239 = vmax.f32 %v225, 1e-24
    %v240 = vmax.f32 %v228, 1e-24
    %v241 = vmax.f32 %v231, 1e-24
    %v242 = vmax.f32 %v234, 1e-24
    %v243 = vrsqrt.pop %v235
    %v244 = vrsqrt.pop %v236
    %v245 = vrsqrt.pop %v237
    %v246 = vrsqrt.pop %v238
    %v247 = vrsqrt.pop %v239
    %v248 = vrsqrt.pop %v240
    %v249 = vrsqrt.pop %v241
    %v250 = vrsqrt.pop %v242
    %v251 = vmul.f32 %v164, %v243
    %v252 = vmul.f32 %v169, %v244
    %v253 = vmul.f32 %v174, %v245
    %v254 = vmul.f32 %v179, %v246
    %v255 = vmul.f32 %v184, %v247
    %v256 = vmul.f32 %v189, %v248
    %v257 = vmul.f32 %v194, %v249
    %v258 = vmul.f32 %v199, %v250
    %267 = vrot.lane.b32.xlu0 %v202, 96
    %v268 = vpop.permute.xlu0 %267
    %269 = vrot.lane.b32.xlu0 %v203, 96
    %v270 = vpop.permute.xlu0 %269
    %271 = vrot.lane.b32.xlu0 %v204, 96
    %v272 = vpop.permute.xlu0 %271
    %273 = vrot.lane.b32.xlu0 %v205, 96
    %v274 = vpop.permute.xlu0 %273
    %275 = vrot.lane.b32.xlu0 %v206, 96
    %v276 = vpop.permute.xlu0 %275
    %277 = vrot.lane.b32.xlu0 %v207, 96
    %v278 = vpop.permute.xlu0 %277
    %279 = vrot.lane.b32.xlu0 %v208, 96
    %v280 = vpop.permute.xlu0 %279
    %281 = vrot.lane.b32.xlu0 %v209, 96
    %v282 = vpop.permute.xlu0 %281
    %v291 = vsel %vm210, %v268, 0.0
    %292 = vadd.xlane.f32.xlu0 %v291
    %v293 = vpop.xlane.xlu0 %292
    %v294 = vsel %vm210, %v270, 0.0
    %295 = vadd.xlane.f32.xlu0 %v294
    %v296 = vpop.xlane.xlu0 %295
    %v297 = vsel %vm210, %v272, 0.0
    %298 = vadd.xlane.f32.xlu0 %v297
    %v299 = vpop.xlane.xlu0 %298
    %v300 = vsel %vm210, %v274, 0.0
    %301 = vadd.xlane.f32.xlu0 %v300
    %v302 = vpop.xlane.xlu0 %301
    %v303 = vsel %vm210, %v276, 0.0
    %304 = vadd.xlane.f32.xlu0 %v303
    %v305 = vpop.xlane.xlu0 %304
    %v306 = vsel %vm210, %v278, 0.0
    %307 = vadd.xlane.f32.xlu0 %v306
    %v308 = vpop.xlane.xlu0 %307
    %v309 = vsel %vm210, %v280, 0.0
    %310 = vadd.xlane.f32.xlu0 %v309
    %v311 = vpop.xlane.xlu0 %310
    %v312 = vsel %vm210, %v282, 0.0
    %313 = vadd.xlane.f32.xlu0 %v312
    %v314 = vpop.xlane.xlu0 %313
    %v315 = vmax.f32 %v293, 1e-24
    %v316 = vmax.f32 %v296, 1e-24
    %v317 = vmax.f32 %v299, 1e-24
    %v318 = vmax.f32 %v302, 1e-24
    %v319 = vmax.f32 %v305, 1e-24
    %v320 = vmax.f32 %v308, 1e-24
    %v321 = vmax.f32 %v311, 1e-24
    %v322 = vmax.f32 %v314, 1e-24
    %v323 = vrsqrt.pop %v315
    %v324 = vrsqrt.pop %v316
    %v325 = vrsqrt.pop %v317
    %v326 = vrsqrt.pop %v318
    %v327 = vrsqrt.pop %v319
    %v328 = vrsqrt.pop %v320
    %v329 = vrsqrt.pop %v321
    %v330 = vrsqrt.pop %v322
    %v331 = vmul.f32 %v164, %v323
    %v332 = vmul.f32 %v169, %v324
    %v333 = vmul.f32 %v174, %v325
    %v334 = vmul.f32 %v179, %v326
    %v335 = vmul.f32 %v184, %v327
    %v336 = vmul.f32 %v189, %v328
    %v337 = vmul.f32 %v194, %v329
    %v338 = vmul.f32 %v199, %v330
    %s339 = sld [smem:[#allocation2]]
    %v340 = vstv %s339
    %v341 = vmul.f32 %v251, %v340
    %v342 = vmul.f32 %v252, %v340
    %v343 = vmul.f32 %v253, %v340
    %v344 = vmul.f32 %v254, %v340
    %v345 = vmul.f32 %v255, %v340
    %v346 = vmul.f32 %v256, %v340
    %v347 = vmul.f32 %v257, %v340
    %v348 = vmul.f32 %v258, %v340
    %v349 = vld [vmem:[#allocation5] sm:$0xff]
    %v350 = vld [vmem:[#allocation5 + $0x8] sm:$0xff]
    %v351 = vld [vmem:[#allocation5 + $0x10] sm:$0xff]
    %v352 = vld [vmem:[#allocation5 + $0x18] sm:$0xff]
    %v353 = vld [vmem:[#allocation5 + $0x20] sm:$0xff]
    %v354 = vld [vmem:[#allocation5 + $0x28] sm:$0xff]
    %v355 = vld [vmem:[#allocation5 + $0x30] sm:$0xff]
    %v356 = vld [vmem:[#allocation5 + $0x38] sm:$0xff]
    %365 = vrot.lane.b32.xlu0 %v331, 96
    %v366 = vpop.permute.xlu0 %365
    %367 = vrot.lane.b32.xlu0 %v332, 96
    %v368 = vpop.permute.xlu0 %367
    %369 = vrot.lane.b32.xlu0 %v333, 96
    %v370 = vpop.permute.xlu0 %369
    %371 = vrot.lane.b32.xlu0 %v334, 96
    %v372 = vpop.permute.xlu0 %371
    %373 = vrot.lane.b32.xlu0 %v335, 96
    %v374 = vpop.permute.xlu0 %373
    %375 = vrot.lane.b32.xlu0 %v336, 96
    %v376 = vpop.permute.xlu0 %375
    %377 = vrot.lane.b32.xlu0 %v337, 96
    %v378 = vpop.permute.xlu0 %377
    %379 = vrot.lane.b32.xlu0 %v338, 96
    %v380 = vpop.permute.xlu0 %379
    %v382 = vsel %vm210, %v341, 0
    %v385 = vsel %vm210, %v342, 0
    %v388 = vsel %vm210, %v343, 0
    %v391 = vsel %vm210, %v344, 0
    %v394 = vsel %vm210, %v345, 0
    %v397 = vsel %vm210, %v346, 0
    %v400 = vsel %vm210, %v347, 0
    %v403 = vsel %vm210, %v348, 0
    %v405 = vsel %vm210, %v366, 0
    %v407 = vsel %vm210, %v368, 0
    %v409 = vsel %vm210, %v370, 0
    %v411 = vsel %vm210, %v372, 0
    %v413 = vsel %vm210, %v374, 0
    %v415 = vsel %vm210, %v376, 0
    %v417 = vsel %vm210, %v378, 0
    %v419 = vsel %vm210, %v380, 0
    %421 = vmatprep.subr.mxu0 0.0
    %422 = vmatpush1.xpose.msra.mxu0 %v405
    %423 = vmatprep.subr.mxu0 0.0
    %424 = vmatpush1.xpose.msra.mxu0 %v407
    %425 = vmatprep.subr.mxu0 0.0
    %426 = vmatpush1.xpose.msra.mxu0 %v409
    %427 = vmatprep.subr.mxu0 0.0
    %428 = vmatpush1.xpose.msra.mxu0 %v411
    %429 = vmatprep.subr.mxu0 0.0
    %430 = vmatpush1.xpose.msra.mxu0 %v413
    %431 = vmatprep.subr.mxu0 0.0
    %432 = vmatpush1.xpose.msra.mxu0 %v415
    %433 = vmatprep.subr.mxu0 0.0
    %434 = vmatpush1.xpose.msra.mxu0 %v417
    %435 = vmatprep.subr.mxu0 0.0
    %436 = vmatpush1.xpose.msra.mxu0 %v419
    %437 = vmatprep.subr.mxu0 0.0
    %438 = vmatpush1.xpose.msra.mxu0 0.0
    %439 = vmatprep.subr.mxu0 0.0
    %440 = vmatpush1.xpose.msra.mxu0 0.0
    %441 = vmatprep.subr.mxu0 0.0
    %442 = vmatpush1.xpose.msra.mxu0 0.0
    %443 = vmatprep.subr.mxu0 0.0
    %444 = vmatpush1.xpose.msra.mxu0 0.0
    %445 = vmatprep.subr.mxu0 0.0
    %446 = vmatpush1.xpose.msra.mxu0 0.0
    %447 = vmatprep.subr.mxu0 0.0
    %448 = vmatpush1.xpose.msra.mxu0 0.0
    %449 = vmatprep.subr.mxu0 0.0
    %450 = vmatpush1.xpose.msra.mxu0 0.0
    %451 = vmatprep.subr.mxu0 0.0
    %452 = vmatpush1.xpose.msra.mxu0 0.0
    %453 = vmatprep.subr.mxu0 0.0
    %454 = vmatpush1.xpose.msra.mxu0 0.0
    %455 = vmatprep.subr.mxu0 0.0
    %456 = vmatpush1.xpose.msra.mxu0 0.0
    %457 = vmatprep.subr.mxu0 0.0
    %458 = vmatpush1.xpose.msra.mxu0 0.0
    %459 = vmatprep.subr.mxu0 0.0
    %460 = vmatpush1.xpose.msra.mxu0 0.0
    %461 = vmatprep.subr.mxu0 0.0
    %462 = vmatpush1.xpose.msra.mxu0 0.0
    %463 = vmatprep.subr.mxu0 0.0
    %464 = vmatpush1.xpose.msra.mxu0 0.0
    %465 = vmatprep.subr.mxu0 0.0
    %466 = vmatpush1.xpose.msra.mxu0 0.0
    %467 = vmatprep.subr.mxu0 0.0
    %468 = vmatpush1.xpose.msra.mxu0 0.0
    %469 = vmatprep.subr.mxu0 0.0
    %470 = vmatpush1.xpose.msra.mxu0 0.0
    %471 = vmatprep.subr.mxu0 0.0
    %472 = vmatpush1.xpose.msra.mxu0 0.0
    %473 = vmatprep.subr.mxu0 0.0
    %474 = vmatpush1.xpose.msra.mxu0 0.0
    %475 = vmatprep.subr.mxu0 0.0
    %476 = vmatpush1.xpose.msra.mxu0 0.0
    %477 = vmatprep.subr.mxu0 0.0
    %478 = vmatpush1.xpose.msra.mxu0 0.0
    %479 = vmatprep.subr.mxu0 0.0
    %480 = vmatpush1.xpose.msra.mxu0 0.0
    %481 = vmatprep.subr.mxu0 0.0
    %482 = vmatpush1.xpose.msra.mxu0 0.0
    %483 = vmatprep.subr.mxu0 0.0
    %484 = vmatpush1.xpose.msra.mxu0 0.0
    %485 = vmatprep.mubr.f32.mxu0 0.0
    %486 = vmatmul.mubr.f32.gmra.mrb[0].mxu0 %v382
    %v487 = vpop.f32.mrb[0].mxu0
    %v488 = vadd.f32 %v349, %v487
    %v489 = vpop.f32.mrb[0].mxu0
    %490 = vmatprep.mubr.f32.mxu0 0.0
    %491 = vmatmul.mubr.f32.gmra.mrb[0].mxu0 %v385
    %v492 = vpop.f32.mrb[0].mxu0
    %v493 = vadd.f32 %v350, %v492
    %v494 = vpop.f32.mrb[0].mxu0
    %495 = vmatprep.mubr.f32.mxu0 0.0
    %496 = vmatmul.mubr.f32.gmra.mrb[0].mxu0 %v388
    %v497 = vpop.f32.mrb[0].mxu0
    %v498 = vadd.f32 %v351, %v497
    %v499 = vpop.f32.mrb[0].mxu0
    %500 = vmatprep.mubr.f32.mxu0 0.0
    %501 = vmatmul.mubr.f32.gmra.mrb[0].mxu0 %v391
    %v502 = vpop.f32.mrb[0].mxu0
    %v503 = vadd.f32 %v352, %v502
    %v504 = vpop.f32.mrb[0].mxu0
    %505 = vmatprep.mubr.f32.mxu0 0.0
    %506 = vmatmul.mubr.f32.gmra.mrb[0].mxu0 %v394
    %v507 = vpop.f32.mrb[0].mxu0
    %v508 = vadd.f32 %v353, %v507
    %v509 = vpop.f32.mrb[0].mxu0
    %510 = vmatprep.mubr.f32.mxu0 0.0
    %511 = vmatmul.mubr.f32.gmra.mrb[0].mxu0 %v397
    %v512 = vpop.f32.mrb[0].mxu0
    %v513 = vadd.f32 %v354, %v512
    %v514 = vpop.f32.mrb[0].mxu0
    %515 = vmatprep.mubr.f32.mxu0 0.0
    %516 = vmatmul.mubr.f32.gmra.mrb[0].mxu0 %v400
    %v517 = vpop.f32.mrb[0].mxu0
    %v518 = vadd.f32 %v355, %v517
    %v519 = vpop.f32.mrb[0].mxu0
    %520 = vmatprep.mubr.f32.mxu0 0.0
    %521 = vmatmul.mubr.f32.gmra.mrb[0].mxu0 %v403
    %v522 = vpop.f32.mrb[0].mxu0
    %v523 = vadd.f32 %v356, %v522
    %v524 = vpop.f32.mrb[0].mxu0
    %525 = vdwg.mxu0
    %vm526 = vcmask 523264
    %v527 = vsel %vm526, %v488, -inf
    %528 = vmax.xlane.f32.xlu0 %v527
    %v529 = vpop.xlane.xlu0 %528
    %v530 = vsel %vm526, %v493, -inf
    %531 = vmax.xlane.f32.xlu0 %v530
    %v532 = vpop.xlane.xlu0 %531
    %v533 = vsel %vm526, %v498, -inf
    %534 = vmax.xlane.f32.xlu0 %v533
    %v535 = vpop.xlane.xlu0 %534
    %v536 = vsel %vm526, %v503, -inf
    %537 = vmax.xlane.f32.xlu0 %v536
    %v538 = vpop.xlane.xlu0 %537
    %v539 = vsel %vm526, %v508, -inf
    %540 = vmax.xlane.f32.xlu0 %v539
    %v541 = vpop.xlane.xlu0 %540
    %v542 = vsel %vm526, %v513, -inf
    %543 = vmax.xlane.f32.xlu0 %v542
    %v544 = vpop.xlane.xlu0 %543
    %v545 = vsel %vm526, %v518, -inf
    %546 = vmax.xlane.f32.xlu0 %v545
    %v547 = vpop.xlane.xlu0 %546
    %v548 = vsel %vm526, %v523, -inf
    %549 = vmax.xlane.f32.xlu0 %v548
    %v550 = vpop.xlane.xlu0 %549
    %v551 = vsub.f32 %v488, %v529
    %v552 = vsub.f32 %v493, %v532
    %v553 = vsub.f32 %v498, %v535
    %v554 = vsub.f32 %v503, %v538
    %v555 = vsub.f32 %v508, %v541
    %v556 = vsub.f32 %v513, %v544
    %v557 = vsub.f32 %v518, %v547
    %v558 = vsub.f32 %v523, %v550
    %v559 = vmul.f32 %v551, 1.442695
    %v560 = vpow.pop %v559
    %v561 = vmul.f32 %v552, 1.442695
    %v562 = vpow.pop %v561
    %v563 = vmul.f32 %v553, 1.442695
    %v564 = vpow.pop %v563
    %v565 = vmul.f32 %v554, 1.442695
    %v566 = vpow.pop %v565
    %v567 = vmul.f32 %v555, 1.442695
    %v568 = vpow.pop %v567
    %v569 = vmul.f32 %v556, 1.442695
    %v570 = vpow.pop %v569
    %v571 = vmul.f32 %v557, 1.442695
    %v572 = vpow.pop %v571
    %v573 = vmul.f32 %v558, 1.442695
    %v574 = vpow.pop %v573
    %v575 = vsel %vm526, %v560, 0.0
    %576 = vadd.xlane.f32.xlu0 %v575
    %v577 = vpop.xlane.xlu0 %576
    %v578 = vsel %vm526, %v562, 0.0
    %579 = vadd.xlane.f32.xlu0 %v578
    %v580 = vpop.xlane.xlu0 %579
    %v581 = vsel %vm526, %v564, 0.0
    %582 = vadd.xlane.f32.xlu0 %v581
    %v583 = vpop.xlane.xlu0 %582
    %v584 = vsel %vm526, %v566, 0.0
    %585 = vadd.xlane.f32.xlu0 %v584
    %v586 = vpop.xlane.xlu0 %585
    %v587 = vsel %vm526, %v568, 0.0
    %588 = vadd.xlane.f32.xlu0 %v587
    %v589 = vpop.xlane.xlu0 %588
    %v590 = vsel %vm526, %v570, 0.0
    %591 = vadd.xlane.f32.xlu0 %v590
    %v592 = vpop.xlane.xlu0 %591
    %v593 = vsel %vm526, %v572, 0.0
    %594 = vadd.xlane.f32.xlu0 %v593
    %v595 = vpop.xlane.xlu0 %594
    %v596 = vsel %vm526, %v574, 0.0
    %597 = vadd.xlane.f32.xlu0 %v596
    %v598 = vpop.xlane.xlu0 %597
    %v599 = vrcp.pop %v577
    %v600 = vmul.f32 %v560, %v599
    %v601 = vrcp.pop %v580
    %v602 = vmul.f32 %v562, %v601
    %v603 = vrcp.pop %v583
    %v604 = vmul.f32 %v564, %v603
    %v605 = vrcp.pop %v586
    %v606 = vmul.f32 %v566, %v605
    %v607 = vrcp.pop %v589
    %v608 = vmul.f32 %v568, %v607
    %v609 = vrcp.pop %v592
    %v610 = vmul.f32 %v570, %v609
    %v611 = vrcp.pop %v595
    %v612 = vmul.f32 %v572, %v611
    %v613 = vrcp.pop %v598
    %v614 = vmul.f32 %v574, %v613
    %623 = vrot.lane.b32.xlu0 %v164, 64
    %v624 = vpop.permute.xlu0 %623
    %625 = vrot.lane.b32.xlu0 %v169, 64
    %v626 = vpop.permute.xlu0 %625
    %627 = vrot.lane.b32.xlu0 %v174, 64
    %v628 = vpop.permute.xlu0 %627
    %629 = vrot.lane.b32.xlu0 %v179, 64
    %v630 = vpop.permute.xlu0 %629
    %631 = vrot.lane.b32.xlu0 %v184, 64
    %v632 = vpop.permute.xlu0 %631
    %633 = vrot.lane.b32.xlu0 %v189, 64
    %v634 = vpop.permute.xlu0 %633
    %635 = vrot.lane.b32.xlu0 %v194, 64
    %v636 = vpop.permute.xlu0 %635
    %637 = vrot.lane.b32.xlu0 %v199, 64
    %v638 = vpop.permute.xlu0 %637
    %v648 = vsel %vm526, %v600, 0
    %v651 = vsel %vm526, %v602, 0
    %v654 = vsel %vm526, %v604, 0
    %v657 = vsel %vm526, %v606, 0
    %v660 = vsel %vm526, %v608, 0
    %v663 = vsel %vm526, %v610, 0
    %v666 = vsel %vm526, %v612, 0
    %v669 = vsel %vm526, %v614, 0
    %671 = vmatprep.subr.mxu0 0.0
    %672 = vmatpush1.msra.mxu0 %v624
    %673 = vmatprep.subr.mxu0 0.0
    %674 = vmatpush1.msra.mxu0 %v626
    %675 = vmatprep.subr.mxu0 0.0
    %676 = vmatpush1.msra.mxu0 %v628
    %677 = vmatprep.subr.mxu0 0.0
    %678 = vmatpush1.msra.mxu0 %v630
    %679 = vmatprep.subr.mxu0 0.0
    %680 = vmatpush1.msra.mxu0 %v632
    %681 = vmatprep.subr.mxu0 0.0
    %682 = vmatpush1.msra.mxu0 %v634
    %683 = vmatprep.subr.mxu0 0.0
    %684 = vmatpush1.msra.mxu0 %v636
    %685 = vmatprep.subr.mxu0 0.0
    %686 = vmatpush1.msra.mxu0 %v638
    %687 = vmatprep.subr.mxu0 0.0
    %688 = vmatpush1.msra.mxu0 0.0
    %689 = vmatprep.subr.mxu0 0.0
    %690 = vmatpush1.msra.mxu0 0.0
    %691 = vmatprep.subr.mxu0 0.0
    %692 = vmatpush1.msra.mxu0 0.0
    %693 = vmatprep.subr.mxu0 0.0
    %694 = vmatpush1.msra.mxu0 0.0
    %695 = vmatprep.subr.mxu0 0.0
    %696 = vmatpush1.msra.mxu0 0.0
    %697 = vmatprep.subr.mxu0 0.0
    %698 = vmatpush1.msra.mxu0 0.0
    %699 = vmatprep.subr.mxu0 0.0
    %700 = vmatpush1.msra.mxu0 0.0
    %701 = vmatprep.subr.mxu0 0.0
    %702 = vmatpush1.msra.mxu0 0.0
    %703 = vmatprep.subr.mxu0 0.0
    %704 = vmatpush1.msra.mxu0 0.0
    %705 = vmatprep.subr.mxu0 0.0
    %706 = vmatpush1.msra.mxu0 0.0
    %707 = vmatprep.subr.mxu0 0.0
    %708 = vmatpush1.msra.mxu0 0.0
    %709 = vmatprep.subr.mxu0 0.0
    %710 = vmatpush1.msra.mxu0 0.0
    %711 = vmatprep.subr.mxu0 0.0
    %712 = vmatpush1.msra.mxu0 0.0
    %713 = vmatprep.subr.mxu0 0.0
    %714 = vmatpush1.msra.mxu0 0.0
    %715 = vmatprep.subr.mxu0 0.0
    %716 = vmatpush1.msra.mxu0 0.0
    %717 = vmatprep.subr.mxu0 0.0
    %718 = vmatpush1.msra.mxu0 0.0
    %719 = vmatprep.subr.mxu0 0.0
    %720 = vmatpush1.msra.mxu0 0.0
    %721 = vmatprep.subr.mxu0 0.0
    %722 = vmatpush1.msra.mxu0 0.0
    %723 = vmatprep.subr.mxu0 0.0
    %724 = vmatpush1.msra.mxu0 0.0
    %725 = vmatprep.subr.mxu0 0.0
    %726 = vmatpush1.msra.mxu0 0.0
    %727 = vmatprep.subr.mxu0 0.0
    %728 = vmatpush1.msra.mxu0 0.0
    %729 = vmatprep.subr.mxu0 0.0
    %730 = vmatpush1.msra.mxu0 0.0
    %731 = vmatprep.subr.mxu0 0.0
    %732 = vmatpush1.msra.mxu0 0.0
    %733 = vmatprep.subr.mxu0 0.0
    %734 = vmatpush1.msra.mxu0 0.0
    %735 = vmatprep.mubr.f32.mxu0 0.0
    %736 = vmatmul.mubr.f32.gmra.mrb[0].mxu0 %v648
    %v737 = vpop.f32.mrb[0].mxu0
    %v738 = vadd.f32 0.0, %v737
    %v739 = vpop.f32.mrb[0].mxu0
    %740 = vmatprep.mubr.f32.mxu0 0.0
    %741 = vmatmul.mubr.f32.gmra.mrb[0].mxu0 %v651
    %v742 = vpop.f32.mrb[0].mxu0
    %v743 = vadd.f32 0.0, %v742
    %v744 = vpop.f32.mrb[0].mxu0
    %745 = vmatprep.mubr.f32.mxu0 0.0
    %746 = vmatmul.mubr.f32.gmra.mrb[0].mxu0 %v654
    %v747 = vpop.f32.mrb[0].mxu0
    %v748 = vadd.f32 0.0, %v747
    %v749 = vpop.f32.mrb[0].mxu0
    %750 = vmatprep.mubr.f32.mxu0 0.0
    %751 = vmatmul.mubr.f32.gmra.mrb[0].mxu0 %v657
    %v752 = vpop.f32.mrb[0].mxu0
    %v753 = vadd.f32 0.0, %v752
    %v754 = vpop.f32.mrb[0].mxu0
    %755 = vmatprep.mubr.f32.mxu0 0.0
    %756 = vmatmul.mubr.f32.gmra.mrb[0].mxu0 %v660
    %v757 = vpop.f32.mrb[0].mxu0
    %v758 = vadd.f32 0.0, %v757
    %v759 = vpop.f32.mrb[0].mxu0
    %760 = vmatprep.mubr.f32.mxu0 0.0
    %761 = vmatmul.mubr.f32.gmra.mrb[0].mxu0 %v663
    %v762 = vpop.f32.mrb[0].mxu0
    %v763 = vadd.f32 0.0, %v762
    %v764 = vpop.f32.mrb[0].mxu0
    %765 = vmatprep.mubr.f32.mxu0 0.0
    %766 = vmatmul.mubr.f32.gmra.mrb[0].mxu0 %v666
    %v767 = vpop.f32.mrb[0].mxu0
    %v768 = vadd.f32 0.0, %v767
    %v769 = vpop.f32.mrb[0].mxu0
    %770 = vmatprep.mubr.f32.mxu0 0.0
    %771 = vmatmul.mubr.f32.gmra.mrb[0].mxu0 %v669
    %v772 = vpop.f32.mrb[0].mxu0
    %v773 = vadd.f32 0.0, %v772
    %v774 = vpop.f32.mrb[0].mxu0
    %775 = vdwg.mxu0
    %v776 = vld [vmem:[%s5] sm:$0xff]
    %777 = vrot.lane.b32.xlu0 %v202, 120
    %v778 = vpop.permute.xlu0 %777
    %779 = vrot.lane.b32.xlu0 %v203, 120
    %v780 = vpop.permute.xlu0 %779
    %781 = vrot.lane.b32.xlu0 %v204, 120
    %v782 = vpop.permute.xlu0 %781
    %783 = vrot.lane.b32.xlu0 %v205, 120
    %v784 = vpop.permute.xlu0 %783
    %785 = vrot.lane.b32.xlu0 %v206, 120
    %v786 = vpop.permute.xlu0 %785
    %787 = vrot.lane.b32.xlu0 %v207, 120
    %v788 = vpop.permute.xlu0 %787
    %789 = vrot.lane.b32.xlu0 %v208, 120
    %v790 = vpop.permute.xlu0 %789
    %791 = vrot.lane.b32.xlu0 %v209, 120
    %v792 = vpop.permute.xlu0 %791
    %v801 = vsel %vm210, %v778, 0.0
    %802 = vadd.xlane.f32.xlu0 %v801
    %v803 = vpop.xlane.xlu0 %802
    %v804 = vsel %vm210, %v780, 0.0
    %805 = vadd.xlane.f32.xlu0 %v804
    %v806 = vpop.xlane.xlu0 %805
    %v807 = vsel %vm210, %v782, 0.0
    %808 = vadd.xlane.f32.xlu0 %v807
    %v809 = vpop.xlane.xlu0 %808
    %v810 = vsel %vm210, %v784, 0.0
    %811 = vadd.xlane.f32.xlu0 %v810
    %v812 = vpop.xlane.xlu0 %811
    %v813 = vsel %vm210, %v786, 0.0
    %814 = vadd.xlane.f32.xlu0 %v813
    %v815 = vpop.xlane.xlu0 %814
    %v816 = vsel %vm210, %v788, 0.0
    %817 = vadd.xlane.f32.xlu0 %v816
    %v818 = vpop.xlane.xlu0 %817
    %v819 = vsel %vm210, %v790, 0.0
    %820 = vadd.xlane.f32.xlu0 %v819
    %v821 = vpop.xlane.xlu0 %820
    %v822 = vsel %vm210, %v792, 0.0
    %823 = vadd.xlane.f32.xlu0 %v822
    %v824 = vpop.xlane.xlu0 %823
    %v825 = vmax.f32 %v803, 1e-24
    %v826 = vmax.f32 %v806, 1e-24
    %v827 = vmax.f32 %v809, 1e-24
    %v828 = vmax.f32 %v812, 1e-24
    %v829 = vmax.f32 %v815, 1e-24
    %v830 = vmax.f32 %v818, 1e-24
    %v831 = vmax.f32 %v821, 1e-24
    %v832 = vmax.f32 %v824, 1e-24
    %v833 = vrsqrt.pop %v825
    %v834 = vrsqrt.pop %v826
    %v835 = vrsqrt.pop %v827
    %v836 = vrsqrt.pop %v828
    %v837 = vrsqrt.pop %v829
    %v838 = vrsqrt.pop %v830
    %v839 = vrsqrt.pop %v831
    %v840 = vrsqrt.pop %v832
    %v841 = vmul.f32 %v164, %v833
    %v842 = vmul.f32 %v169, %v834
    %v843 = vmul.f32 %v174, %v835
    %v844 = vmul.f32 %v179, %v836
    %v845 = vmul.f32 %v184, %v837
    %v846 = vmul.f32 %v189, %v838
    %v847 = vmul.f32 %v194, %v839
    %v848 = vmul.f32 %v199, %v840
    %849 = vrot.lane.b32.xlu0 %v202, 88
    %v850 = vpop.permute.xlu0 %849
    %851 = vrot.lane.b32.xlu0 %v203, 88
    %v852 = vpop.permute.xlu0 %851
    %853 = vrot.lane.b32.xlu0 %v204, 88
    %v854 = vpop.permute.xlu0 %853
    %855 = vrot.lane.b32.xlu0 %v205, 88
    %v856 = vpop.permute.xlu0 %855
    %857 = vrot.lane.b32.xlu0 %v206, 88
    %v858 = vpop.permute.xlu0 %857
    %859 = vrot.lane.b32.xlu0 %v207, 88
    %v860 = vpop.permute.xlu0 %859
    %861 = vrot.lane.b32.xlu0 %v208, 88
    %v862 = vpop.permute.xlu0 %861
    %863 = vrot.lane.b32.xlu0 %v209, 88
    %v864 = vpop.permute.xlu0 %863
    %v873 = vsel %vm210, %v850, 0.0
    %874 = vadd.xlane.f32.xlu0 %v873
    %v875 = vpop.xlane.xlu0 %874
    %v876 = vsel %vm210, %v852, 0.0
    %877 = vadd.xlane.f32.xlu0 %v876
    %v878 = vpop.xlane.xlu0 %877
    %v879 = vsel %vm210, %v854, 0.0
    %880 = vadd.xlane.f32.xlu0 %v879
    %v881 = vpop.xlane.xlu0 %880
    %v882 = vsel %vm210, %v856, 0.0
    %883 = vadd.xlane.f32.xlu0 %v882
    %v884 = vpop.xlane.xlu0 %883
    %v885 = vsel %vm210, %v858, 0.0
    %886 = vadd.xlane.f32.xlu0 %v885
    %v887 = vpop.xlane.xlu0 %886
    %v888 = vsel %vm210, %v860, 0.0
    %889 = vadd.xlane.f32.xlu0 %v888
    %v890 = vpop.xlane.xlu0 %889
    %v891 = vsel %vm210, %v862, 0.0
    %892 = vadd.xlane.f32.xlu0 %v891
    %v893 = vpop.xlane.xlu0 %892
    %v894 = vsel %vm210, %v864, 0.0
    %895 = vadd.xlane.f32.xlu0 %v894
    %v896 = vpop.xlane.xlu0 %895
    %v897 = vmax.f32 %v875, 1e-24
    %v898 = vmax.f32 %v878, 1e-24
    %v899 = vmax.f32 %v881, 1e-24
    %v900 = vmax.f32 %v884, 1e-24
    %v901 = vmax.f32 %v887, 1e-24
    %v902 = vmax.f32 %v890, 1e-24
    %v903 = vmax.f32 %v893, 1e-24
    %v904 = vmax.f32 %v896, 1e-24
    %v905 = vrsqrt.pop %v897
    %v906 = vrsqrt.pop %v898
    %v907 = vrsqrt.pop %v899
    %v908 = vrsqrt.pop %v900
    %v909 = vrsqrt.pop %v901
    %v910 = vrsqrt.pop %v902
    %v911 = vrsqrt.pop %v903
    %v912 = vrsqrt.pop %v904
    %v913 = vmul.f32 %v164, %v905
    %v914 = vmul.f32 %v169, %v906
    %v915 = vmul.f32 %v174, %v907
    %v916 = vmul.f32 %v179, %v908
    %v917 = vmul.f32 %v184, %v909
    %v918 = vmul.f32 %v189, %v910
    %v919 = vmul.f32 %v194, %v911
    %v920 = vmul.f32 %v199, %v912
    %s921 = sld [smem:[#allocation2 + $0x1]]
    %v922 = vstv %s921
    %v923 = vmul.f32 %v841, %v922
    %v924 = vmul.f32 %v842, %v922
    %v925 = vmul.f32 %v843, %v922
    %v926 = vmul.f32 %v844, %v922
    %v927 = vmul.f32 %v845, %v922
    %v928 = vmul.f32 %v846, %v922
    %v929 = vmul.f32 %v847, %v922
    %v930 = vmul.f32 %v848, %v922
    %s931 = scalar_lea.vmem [#allocation5], 64
    %v932 = vld [vmem:[%s931] sm:$0xff]
    %v933 = vld [vmem:[%s931 + $0x8] sm:$0xff]
    %v934 = vld [vmem:[%s931 + $0x10] sm:$0xff]
    %v935 = vld [vmem:[%s931 + $0x18] sm:$0xff]
    %v936 = vld [vmem:[%s931 + $0x20] sm:$0xff]
    %v937 = vld [vmem:[%s931 + $0x28] sm:$0xff]
    %v938 = vld [vmem:[%s931 + $0x30] sm:$0xff]
    %v939 = vld [vmem:[%s931 + $0x38] sm:$0xff]
    %948 = vrot.lane.b32.xlu0 %v923, 120
    %v949 = vpop.permute.xlu0 %948
    %950 = vrot.lane.b32.xlu0 %v924, 120
    %v951 = vpop.permute.xlu0 %950
    %952 = vrot.lane.b32.xlu0 %v925, 120
    %v953 = vpop.permute.xlu0 %952
    %954 = vrot.lane.b32.xlu0 %v926, 120
    %v955 = vpop.permute.xlu0 %954
    %956 = vrot.lane.b32.xlu0 %v927, 120
    %v957 = vpop.permute.xlu0 %956
    %958 = vrot.lane.b32.xlu0 %v928, 120
    %v959 = vpop.permute.xlu0 %958
    %960 = vrot.lane.b32.xlu0 %v929, 120
    %v961 = vpop.permute.xlu0 %960
    %962 = vrot.lane.b32.xlu0 %v930, 120
    %v963 = vpop.permute.xlu0 %962
    %972 = vrot.lane.b32.xlu0 %v913, 88
    %v973 = vpop.permute.xlu0 %972
    %974 = vrot.lane.b32.xlu0 %v914, 88
    %v975 = vpop.permute.xlu0 %974
    %976 = vrot.lane.b32.xlu0 %v915, 88
    %v977 = vpop.permute.xlu0 %976
    %978 = vrot.lane.b32.xlu0 %v916, 88
    %v979 = vpop.permute.xlu0 %978
    %980 = vrot.lane.b32.xlu0 %v917, 88
    %v981 = vpop.permute.xlu0 %980
    %982 = vrot.lane.b32.xlu0 %v918, 88
    %v983 = vpop.permute.xlu0 %982
    %984 = vrot.lane.b32.xlu0 %v919, 88
    %v985 = vpop.permute.xlu0 %984
    %986 = vrot.lane.b32.xlu0 %v920, 88
    %v987 = vpop.permute.xlu0 %986
    %v988 = vsel %vm210, %v949, 0
    %v990 = vsel %vm210, %v951, 0
    %v992 = vsel %vm210, %v953, 0
    %v994 = vsel %vm210, %v955, 0
    %v996 = vsel %vm210, %v957, 0
    %v998 = vsel %vm210, %v959, 0
    %v1000 = vsel %vm210, %v961, 0
    %v1002 = vsel %vm210, %v963, 0
    %v1004 = vsel %vm210, %v973, 0
    %v1006 = vsel %vm210, %v975, 0
    %v1008 = vsel %vm210, %v977, 0
    %v1010 = vsel %vm210, %v979, 0
    %v1012 = vsel %vm210, %v981, 0
    %v1014 = vsel %vm210, %v983, 0
    %v1016 = vsel %vm210, %v985, 0
    %v1018 = vsel %vm210, %v987, 0
    %1020 = vmatprep.subr.mxu0 0.0
    %1021 = vmatpush1.xpose.msra.mxu0 %v1004
    %1022 = vmatprep.subr.mxu0 0.0
    %1023 = vmatpush1.xpose.msra.mxu0 %v1006
    %1024 = vmatprep.subr.mxu0 0.0
    %1025 = vmatpush1.xpose.msra.mxu0 %v1008
    %1026 = vmatprep.subr.mxu0 0.0
    %1027 = vmatpush1.xpose.msra.mxu0 %v1010
    %1028 = vmatprep.subr.mxu0 0.0
    %1029 = vmatpush1.xpose.msra.mxu0 %v1012
    %1030 = vmatprep.subr.mxu0 0.0
    %1031 = vmatpush1.xpose.msra.mxu0 %v1014
    %1032 = vmatprep.subr.mxu0 0.0
    %1033 = vmatpush1.xpose.msra.mxu0 %v1016
    %1034 = vmatprep.subr.mxu0 0.0
    %1035 = vmatpush1.xpose.msra.mxu0 %v1018
    %1036 = vmatprep.subr.mxu0 0.0
    %1037 = vmatpush1.xpose.msra.mxu0 0.0
    %1038 = vmatprep.subr.mxu0 0.0
    %1039 = vmatpush1.xpose.msra.mxu0 0.0
    %1040 = vmatprep.subr.mxu0 0.0
    %1041 = vmatpush1.xpose.msra.mxu0 0.0
    %1042 = vmatprep.subr.mxu0 0.0
    %1043 = vmatpush1.xpose.msra.mxu0 0.0
    %1044 = vmatprep.subr.mxu0 0.0
    %1045 = vmatpush1.xpose.msra.mxu0 0.0
    %1046 = vmatprep.subr.mxu0 0.0
    %1047 = vmatpush1.xpose.msra.mxu0 0.0
    %1048 = vmatprep.subr.mxu0 0.0
    %1049 = vmatpush1.xpose.msra.mxu0 0.0
    %1050 = vmatprep.subr.mxu0 0.0
    %1051 = vmatpush1.xpose.msra.mxu0 0.0
    %1052 = vmatprep.subr.mxu0 0.0
    %1053 = vmatpush1.xpose.msra.mxu0 0.0
    %1054 = vmatprep.subr.mxu0 0.0
    %1055 = vmatpush1.xpose.msra.mxu0 0.0
    %1056 = vmatprep.subr.mxu0 0.0
    %1057 = vmatpush1.xpose.msra.mxu0 0.0
    %1058 = vmatprep.subr.mxu0 0.0
    %1059 = vmatpush1.xpose.msra.mxu0 0.0
    %1060 = vmatprep.subr.mxu0 0.0
    %1061 = vmatpush1.xpose.msra.mxu0 0.0
    %1062 = vmatprep.subr.mxu0 0.0
    %1063 = vmatpush1.xpose.msra.mxu0 0.0
    %1064 = vmatprep.subr.mxu0 0.0
    %1065 = vmatpush1.xpose.msra.mxu0 0.0
    %1066 = vmatprep.subr.mxu0 0.0
    %1067 = vmatpush1.xpose.msra.mxu0 0.0
    %1068 = vmatprep.subr.mxu0 0.0
    %1069 = vmatpush1.xpose.msra.mxu0 0.0
    %1070 = vmatprep.subr.mxu0 0.0
    %1071 = vmatpush1.xpose.msra.mxu0 0.0
    %1072 = vmatprep.subr.mxu0 0.0
    %1073 = vmatpush1.xpose.msra.mxu0 0.0
    %1074 = vmatprep.subr.mxu0 0.0
    %1075 = vmatpush1.xpose.msra.mxu0 0.0
    %1076 = vmatprep.subr.mxu0 0.0
    %1077 = vmatpush1.xpose.msra.mxu0 0.0
    %1078 = vmatprep.subr.mxu0 0.0
    %1079 = vmatpush1.xpose.msra.mxu0 0.0
    %1080 = vmatprep.subr.mxu0 0.0
    %1081 = vmatpush1.xpose.msra.mxu0 0.0
    %1082 = vmatprep.subr.mxu0 0.0
    %1083 = vmatpush1.xpose.msra.mxu0 0.0
    %1084 = vmatprep.mubr.f32.mxu0 0.0
    %1085 = vmatmul.mubr.f32.gmra.mrb[0].mxu0 %v988
    %v1086 = vpop.f32.mrb[0].mxu0
    %v1087 = vadd.f32 %v932, %v1086
    %v1088 = vpop.f32.mrb[0].mxu0
    %1089 = vmatprep.mubr.f32.mxu0 0.0
    %1090 = vmatmul.mubr.f32.gmra.mrb[0].mxu0 %v990
    %v1091 = vpop.f32.mrb[0].mxu0
    %v1092 = vadd.f32 %v933, %v1091
    %v1093 = vpop.f32.mrb[0].mxu0
    %1094 = vmatprep.mubr.f32.mxu0 0.0
    %1095 = vmatmul.mubr.f32.gmra.mrb[0].mxu0 %v992
    %v1096 = vpop.f32.mrb[0].mxu0
    %v1097 = vadd.f32 %v934, %v1096
    %v1098 = vpop.f32.mrb[0].mxu0
    %1099 = vmatprep.mubr.f32.mxu0 0.0
    %1100 = vmatmul.mubr.f32.gmra.mrb[0].mxu0 %v994
    %v1101 = vpop.f32.mrb[0].mxu0
    %v1102 = vadd.f32 %v935, %v1101
    %v1103 = vpop.f32.mrb[0].mxu0
    %1104 = vmatprep.mubr.f32.mxu0 0.0
    %1105 = vmatmul.mubr.f32.gmra.mrb[0].mxu0 %v996
    %v1106 = vpop.f32.mrb[0].mxu0
    %v1107 = vadd.f32 %v936, %v1106
    %v1108 = vpop.f32.mrb[0].mxu0
    %1109 = vmatprep.mubr.f32.mxu0 0.0
    %1110 = vmatmul.mubr.f32.gmra.mrb[0].mxu0 %v998
    %v1111 = vpop.f32.mrb[0].mxu0
    %v1112 = vadd.f32 %v937, %v1111
    %v1113 = vpop.f32.mrb[0].mxu0
    %1114 = vmatprep.mubr.f32.mxu0 0.0
    %1115 = vmatmul.mubr.f32.gmra.mrb[0].mxu0 %v1000
    %v1116 = vpop.f32.mrb[0].mxu0
    %v1117 = vadd.f32 %v938, %v1116
    %v1118 = vpop.f32.mrb[0].mxu0
    %1119 = vmatprep.mubr.f32.mxu0 0.0
    %1120 = vmatmul.mubr.f32.gmra.mrb[0].mxu0 %v1002
    %v1121 = vpop.f32.mrb[0].mxu0
    %v1122 = vadd.f32 %v939, %v1121
    %v1123 = vpop.f32.mrb[0].mxu0
    %1124 = vdwg.mxu0
    %v1125 = vsel %vm526, %v1087, -inf
    %1126 = vmax.xlane.f32.xlu0 %v1125
    %v1127 = vpop.xlane.xlu0 %1126
    %v1128 = vsel %vm526, %v1092, -inf
    %1129 = vmax.xlane.f32.xlu0 %v1128
    %v1130 = vpop.xlane.xlu0 %1129
    %v1131 = vsel %vm526, %v1097, -inf
    %1132 = vmax.xlane.f32.xlu0 %v1131
    %v1133 = vpop.xlane.xlu0 %1132
    %v1134 = vsel %vm526, %v1102, -inf
    %1135 = vmax.xlane.f32.xlu0 %v1134
    %v1136 = vpop.xlane.xlu0 %1135
    %v1137 = vsel %vm526, %v1107, -inf
    %1138 = vmax.xlane.f32.xlu0 %v1137
    %v1139 = vpop.xlane.xlu0 %1138
    %v1140 = vsel %vm526, %v1112, -inf
    %1141 = vmax.xlane.f32.xlu0 %v1140
    %v1142 = vpop.xlane.xlu0 %1141
    %v1143 = vsel %vm526, %v1117, -inf
    %1144 = vmax.xlane.f32.xlu0 %v1143
    %v1145 = vpop.xlane.xlu0 %1144
    %v1146 = vsel %vm526, %v1122, -inf
    %1147 = vmax.xlane.f32.xlu0 %v1146
    %v1148 = vpop.xlane.xlu0 %1147
    %v1149 = vsub.f32 %v1087, %v1127
    %v1150 = vsub.f32 %v1092, %v1130
    %v1151 = vsub.f32 %v1097, %v1133
    %v1152 = vsub.f32 %v1102, %v1136
    %v1153 = vsub.f32 %v1107, %v1139
    %v1154 = vsub.f32 %v1112, %v1142
    %v1155 = vsub.f32 %v1117, %v1145
    %v1156 = vsub.f32 %v1122, %v1148
    %v1157 = vmul.f32 %v1149, 1.442695
    %v1158 = vpow.pop %v1157
    %v1159 = vmul.f32 %v1150, 1.442695
    %v1160 = vpow.pop %v1159
    %v1161 = vmul.f32 %v1151, 1.442695
    %v1162 = vpow.pop %v1161
    %v1163 = vmul.f32 %v1152, 1.442695
    %v1164 = vpow.pop %v1163
    %v1165 = vmul.f32 %v1153, 1.442695
    %v1166 = vpow.pop %v1165
    %v1167 = vmul.f32 %v1154, 1.442695
    %v1168 = vpow.pop %v1167
    %v1169 = vmul.f32 %v1155, 1.442695
    %v1170 = vpow.pop %v1169
    %v1171 = vmul.f32 %v1156, 1.442695
    %v1172 = vpow.pop %v1171
    %v1173 = vsel %vm526, %v1158, 0.0
    %1174 = vadd.xlane.f32.xlu0 %v1173
    %v1175 = vpop.xlane.xlu0 %1174
    %v1176 = vsel %vm526, %v1160, 0.0
    %1177 = vadd.xlane.f32.xlu0 %v1176
    %v1178 = vpop.xlane.xlu0 %1177
    %v1179 = vsel %vm526, %v1162, 0.0
    %1180 = vadd.xlane.f32.xlu0 %v1179
    %v1181 = vpop.xlane.xlu0 %1180
    %v1182 = vsel %vm526, %v1164, 0.0
    %1183 = vadd.xlane.f32.xlu0 %v1182
    %v1184 = vpop.xlane.xlu0 %1183
    %v1185 = vsel %vm526, %v1166, 0.0
    %1186 = vadd.xlane.f32.xlu0 %v1185
    %v1187 = vpop.xlane.xlu0 %1186
    %v1188 = vsel %vm526, %v1168, 0.0
    %1189 = vadd.xlane.f32.xlu0 %v1188
    %v1190 = vpop.xlane.xlu0 %1189
    %v1191 = vsel %vm526, %v1170, 0.0
    %1192 = vadd.xlane.f32.xlu0 %v1191
    %v1193 = vpop.xlane.xlu0 %1192
    %v1194 = vsel %vm526, %v1172, 0.0
    %1195 = vadd.xlane.f32.xlu0 %v1194
    %v1196 = vpop.xlane.xlu0 %1195
    %v1197 = vrcp.pop %v1175
    %v1198 = vmul.f32 %v1158, %v1197
    %v1199 = vrcp.pop %v1178
    %v1200 = vmul.f32 %v1160, %v1199
    %v1201 = vrcp.pop %v1181
    %v1202 = vmul.f32 %v1162, %v1201
    %v1203 = vrcp.pop %v1184
    %v1204 = vmul.f32 %v1164, %v1203
    %v1205 = vrcp.pop %v1187
    %v1206 = vmul.f32 %v1166, %v1205
    %v1207 = vrcp.pop %v1190
    %v1208 = vmul.f32 %v1168, %v1207
    %v1209 = vrcp.pop %v1193
    %v1210 = vmul.f32 %v1170, %v1209
    %v1211 = vrcp.pop %v1196
    %v1212 = vmul.f32 %v1172, %v1211
    %1213 = vrot.lane.b32.xlu0 %v164, 56
    %v1214 = vpop.permute.xlu0 %1213
    %1215 = vrot.lane.b32.xlu0 %v169, 56
    %v1216 = vpop.permute.xlu0 %1215
    %1217 = vrot.lane.b32.xlu0 %v174, 56
    %v1218 = vpop.permute.xlu0 %1217
    %1219 = vrot.lane.b32.xlu0 %v179, 56
    %v1220 = vpop.permute.xlu0 %1219
    %1221 = vrot.lane.b32.xlu0 %v184, 56
    %v1222 = vpop.permute.xlu0 %1221
    %1223 = vrot.lane.b32.xlu0 %v189, 56
    %v1224 = vpop.permute.xlu0 %1223
    %1225 = vrot.lane.b32.xlu0 %v194, 56
    %v1226 = vpop.permute.xlu0 %1225
    %1227 = vrot.lane.b32.xlu0 %v199, 56
    %v1228 = vpop.permute.xlu0 %1227
    %v1238 = vsel %vm526, %v1198, 0
    %v1241 = vsel %vm526, %v1200, 0
    %v1244 = vsel %vm526, %v1202, 0
    %v1247 = vsel %vm526, %v1204, 0
    %v1250 = vsel %vm526, %v1206, 0
    %v1253 = vsel %vm526, %v1208, 0
    %v1256 = vsel %vm526, %v1210, 0
    %v1259 = vsel %vm526, %v1212, 0
    %1261 = vmatprep.subr.mxu0 0.0
    %1262 = vmatpush1.msra.mxu0 %v1214
    %1263 = vmatprep.subr.mxu0 0.0
    %1264 = vmatpush1.msra.mxu0 %v1216
    %1265 = vmatprep.subr.mxu0 0.0
    %1266 = vmatpush1.msra.mxu0 %v1218
    %1267 = vmatprep.subr.mxu0 0.0
    %1268 = vmatpush1.msra.mxu0 %v1220
    %1269 = vmatprep.subr.mxu0 0.0
    %1270 = vmatpush1.msra.mxu0 %v1222
    %1271 = vmatprep.subr.mxu0 0.0
    %1272 = vmatpush1.msra.mxu0 %v1224
    %1273 = vmatprep.subr.mxu0 0.0
    %1274 = vmatpush1.msra.mxu0 %v1226
    %1275 = vmatprep.subr.mxu0 0.0
    %1276 = vmatpush1.msra.mxu0 %v1228
    %1277 = vmatprep.subr.mxu0 0.0
    %1278 = vmatpush1.msra.mxu0 0.0
    %1279 = vmatprep.subr.mxu0 0.0
    %1280 = vmatpush1.msra.mxu0 0.0
    %1281 = vmatprep.subr.mxu0 0.0
    %1282 = vmatpush1.msra.mxu0 0.0
    %1283 = vmatprep.subr.mxu0 0.0
    %1284 = vmatpush1.msra.mxu0 0.0
    %1285 = vmatprep.subr.mxu0 0.0
    %1286 = vmatpush1.msra.mxu0 0.0
    %1287 = vmatprep.subr.mxu0 0.0
    %1288 = vmatpush1.msra.mxu0 0.0
    %1289 = vmatprep.subr.mxu0 0.0
    %1290 = vmatpush1.msra.mxu0 0.0
    %1291 = vmatprep.subr.mxu0 0.0
    %1292 = vmatpush1.msra.mxu0 0.0
    %1293 = vmatprep.subr.mxu0 0.0
    %1294 = vmatpush1.msra.mxu0 0.0
    %1295 = vmatprep.subr.mxu0 0.0
    %1296 = vmatpush1.msra.mxu0 0.0
    %1297 = vmatprep.subr.mxu0 0.0
    %1298 = vmatpush1.msra.mxu0 0.0
    %1299 = vmatprep.subr.mxu0 0.0
    %1300 = vmatpush1.msra.mxu0 0.0
    %1301 = vmatprep.subr.mxu0 0.0
    %1302 = vmatpush1.msra.mxu0 0.0
    %1303 = vmatprep.subr.mxu0 0.0
    %1304 = vmatpush1.msra.mxu0 0.0
    %1305 = vmatprep.subr.mxu0 0.0
    %1306 = vmatpush1.msra.mxu0 0.0
    %1307 = vmatprep.subr.mxu0 0.0
    %1308 = vmatpush1.msra.mxu0 0.0
    %1309 = vmatprep.subr.mxu0 0.0
    %1310 = vmatpush1.msra.mxu0 0.0
    %1311 = vmatprep.subr.mxu0 0.0
    %1312 = vmatpush1.msra.mxu0 0.0
    %1313 = vmatprep.subr.mxu0 0.0
    %1314 = vmatpush1.msra.mxu0 0.0
    %1315 = vmatprep.subr.mxu0 0.0
    %1316 = vmatpush1.msra.mxu0 0.0
    %1317 = vmatprep.subr.mxu0 0.0
    %1318 = vmatpush1.msra.mxu0 0.0
    %1319 = vmatprep.subr.mxu0 0.0
    %1320 = vmatpush1.msra.mxu0 0.0
    %1321 = vmatprep.subr.mxu0 0.0
    %1322 = vmatpush1.msra.mxu0 0.0
    %1323 = vmatprep.subr.mxu0 0.0
    %1324 = vmatpush1.msra.mxu0 0.0
    %1325 = vmatprep.mubr.f32.mxu0 0.0
    %1326 = vmatmul.mubr.f32.gmra.mrb[0].mxu0 %v1238
    %v1327 = vpop.f32.mrb[0].mxu0
    %v1328 = vadd.f32 0.0, %v1327
    %v1329 = vpop.f32.mrb[0].mxu0
    %1330 = vmatprep.mubr.f32.mxu0 0.0
    %1331 = vmatmul.mubr.f32.gmra.mrb[0].mxu0 %v1241
    %v1332 = vpop.f32.mrb[0].mxu0
    %v1333 = vadd.f32 0.0, %v1332
    %v1334 = vpop.f32.mrb[0].mxu0
    %1335 = vmatprep.mubr.f32.mxu0 0.0
    %1336 = vmatmul.mubr.f32.gmra.mrb[0].mxu0 %v1244
    %v1337 = vpop.f32.mrb[0].mxu0
    %v1338 = vadd.f32 0.0, %v1337
    %v1339 = vpop.f32.mrb[0].mxu0
    %1340 = vmatprep.mubr.f32.mxu0 0.0
    %1341 = vmatmul.mubr.f32.gmra.mrb[0].mxu0 %v1247
    %v1342 = vpop.f32.mrb[0].mxu0
    %v1343 = vadd.f32 0.0, %v1342
    %v1344 = vpop.f32.mrb[0].mxu0
    %1345 = vmatprep.mubr.f32.mxu0 0.0
    %1346 = vmatmul.mubr.f32.gmra.mrb[0].mxu0 %v1250
    %v1347 = vpop.f32.mrb[0].mxu0
    %v1348 = vadd.f32 0.0, %v1347
    %v1349 = vpop.f32.mrb[0].mxu0
    %1350 = vmatprep.mubr.f32.mxu0 0.0
    %1351 = vmatmul.mubr.f32.gmra.mrb[0].mxu0 %v1253
    %v1352 = vpop.f32.mrb[0].mxu0
    %v1353 = vadd.f32 0.0, %v1352
    %v1354 = vpop.f32.mrb[0].mxu0
    %1355 = vmatprep.mubr.f32.mxu0 0.0
    %1356 = vmatmul.mubr.f32.gmra.mrb[0].mxu0 %v1256
    %v1357 = vpop.f32.mrb[0].mxu0
    %v1358 = vadd.f32 0.0, %v1357
    %v1359 = vpop.f32.mrb[0].mxu0
    %1360 = vmatprep.mubr.f32.mxu0 0.0
    %1361 = vmatmul.mubr.f32.gmra.mrb[0].mxu0 %v1259
    %v1362 = vpop.f32.mrb[0].mxu0
    %v1363 = vadd.f32 0.0, %v1362
    %v1364 = vpop.f32.mrb[0].mxu0
    %1365 = vdwg.mxu0
    %v1366 = vld [vmem:[%s5 + $0x8] sm:$0xff]
    %v1368 = vsel %vm210, %v1328, 0
    %v1371 = vsel %vm210, %v1333, 0
    %v1374 = vsel %vm210, %v1338, 0
    %v1377 = vsel %vm210, %v1343, 0
    %v1380 = vsel %vm210, %v1348, 0
    %v1383 = vsel %vm210, %v1353, 0
    %v1386 = vsel %vm210, %v1358, 0
    %v1389 = vsel %vm210, %v1363, 0
    %1391 = vmatprep.subr.mxu0 0.0
    %1392 = vmatpush1.msra.mxu0 %v1366
    %1393 = vmatprep.subr.mxu0 0.0
    %1394 = vmatpush1.msra.mxu0 0.0
    %1395 = vmatprep.subr.mxu0 0.0
    %1396 = vmatpush1.msra.mxu0 0.0
    %1397 = vmatprep.subr.mxu0 0.0
    %1398 = vmatpush1.msra.mxu0 0.0
    %1399 = vmatprep.subr.mxu0 0.0
    %1400 = vmatpush1.msra.mxu0 0.0
    %1401 = vmatprep.subr.mxu0 0.0
    %1402 = vmatpush1.msra.mxu0 0.0
    %1403 = vmatprep.subr.mxu0 0.0
    %1404 = vmatpush1.msra.mxu0 0.0
    %1405 = vmatprep.subr.mxu0 0.0
    %1406 = vmatpush1.msra.mxu0 0.0
    %1407 = vmatprep.subr.mxu0 0.0
    %1408 = vmatpush1.msra.mxu0 0.0
    %1409 = vmatprep.subr.mxu0 0.0
    %1410 = vmatpush1.msra.mxu0 0.0
    %1411 = vmatprep.subr.mxu0 0.0
    %1412 = vmatpush1.msra.mxu0 0.0
    %1413 = vmatprep.subr.mxu0 0.0
    %1414 = vmatpush1.msra.mxu0 0.0
    %1415 = vmatprep.subr.mxu0 0.0
    %1416 = vmatpush1.msra.mxu0 0.0
    %1417 = vmatprep.subr.mxu0 0.0
    %1418 = vmatpush1.msra.mxu0 0.0
    %1419 = vmatprep.subr.mxu0 0.0
    %1420 = vmatpush1.msra.mxu0 0.0
    %1421 = vmatprep.subr.mxu0 0.0
    %1422 = vmatpush1.msra.mxu0 0.0
    %1423 = vmatprep.subr.mxu0 0.0
    %1424 = vmatpush1.msra.mxu0 0.0
    %1425 = vmatprep.subr.mxu0 0.0
    %1426 = vmatpush1.msra.mxu0 0.0
    %1427 = vmatprep.subr.mxu0 0.0
    %1428 = vmatpush1.msra.mxu0 0.0
    %1429 = vmatprep.subr.mxu0 0.0
    %1430 = vmatpush1.msra.mxu0 0.0
    %1431 = vmatprep.subr.mxu0 0.0
    %1432 = vmatpush1.msra.mxu0 0.0
    %1433 = vmatprep.subr.mxu0 0.0
    %1434 = vmatpush1.msra.mxu0 0.0
    %1435 = vmatprep.subr.mxu0 0.0
    %1436 = vmatpush1.msra.mxu0 0.0
    %1437 = vmatprep.subr.mxu0 0.0
    %1438 = vmatpush1.msra.mxu0 0.0
    %1439 = vmatprep.subr.mxu0 0.0
    %1440 = vmatpush1.msra.mxu0 0.0
    %1441 = vmatprep.subr.mxu0 0.0
    %1442 = vmatpush1.msra.mxu0 0.0
    %1443 = vmatprep.subr.mxu0 0.0
    %1444 = vmatpush1.msra.mxu0 0.0
    %1445 = vmatprep.subr.mxu0 0.0
    %1446 = vmatpush1.msra.mxu0 0.0
    %1447 = vmatprep.subr.mxu0 0.0
    %1448 = vmatpush1.msra.mxu0 0.0
    %1449 = vmatprep.subr.mxu0 0.0
    %1450 = vmatpush1.msra.mxu0 0.0
    %1451 = vmatprep.subr.mxu0 0.0
    %1452 = vmatpush1.msra.mxu0 0.0
    %1453 = vmatprep.subr.mxu0 0.0
    %1454 = vmatpush1.msra.mxu0 0.0
    %1455 = vmatprep.mubr.f32.mxu0 0.0
    %1456 = vmatmul.mubr.f32.gmra.mrb[0].mxu0 %v1368
    %v1457 = vpop.f32.mrb[0].mxu0
    %v1458 = vadd.f32 0.0, %v1457
    %v1459 = vpop.f32.mrb[0].mxu0
    %1460 = vmatprep.mubr.f32.mxu0 0.0
    %1461 = vmatmul.mubr.f32.gmra.mrb[0].mxu0 %v1371
    %v1462 = vpop.f32.mrb[0].mxu0
    %v1463 = vadd.f32 0.0, %v1462
    %v1464 = vpop.f32.mrb[0].mxu0
    %1465 = vmatprep.mubr.f32.mxu0 0.0
    %1466 = vmatmul.mubr.f32.gmra.mrb[0].mxu0 %v1374
    %v1467 = vpop.f32.mrb[0].mxu0
    %v1468 = vadd.f32 0.0, %v1467
    %v1469 = vpop.f32.mrb[0].mxu0
    %1470 = vmatprep.mubr.f32.mxu0 0.0
    %1471 = vmatmul.mubr.f32.gmra.mrb[0].mxu0 %v1377
    %v1472 = vpop.f32.mrb[0].mxu0
    %v1473 = vadd.f32 0.0, %v1472
    %v1474 = vpop.f32.mrb[0].mxu0
    %1475 = vmatprep.mubr.f32.mxu0 0.0
    %1476 = vmatmul.mubr.f32.gmra.mrb[0].mxu0 %v1380
    %v1477 = vpop.f32.mrb[0].mxu0
    %v1478 = vadd.f32 0.0, %v1477
    %v1479 = vpop.f32.mrb[0].mxu0
    %1480 = vmatprep.mubr.f32.mxu0 0.0
    %1481 = vmatmul.mubr.f32.gmra.mrb[0].mxu0 %v1383
    %v1482 = vpop.f32.mrb[0].mxu0
    %v1483 = vadd.f32 0.0, %v1482
    %v1484 = vpop.f32.mrb[0].mxu0
    %1485 = vmatprep.mubr.f32.mxu0 0.0
    %1486 = vmatmul.mubr.f32.gmra.mrb[0].mxu0 %v1386
    %v1487 = vpop.f32.mrb[0].mxu0
    %v1488 = vadd.f32 0.0, %v1487
    %v1489 = vpop.f32.mrb[0].mxu0
    %1490 = vmatprep.mubr.f32.mxu0 0.0
    %1491 = vmatmul.mubr.f32.gmra.mrb[0].mxu0 %v1389
    %v1492 = vpop.f32.mrb[0].mxu0
    %v1493 = vadd.f32 0.0, %v1492
    %v1494 = vpop.f32.mrb[0].mxu0
    %1495 = vdwg.mxu0
    %v1497 = vsel %vm210, %v738, 0
    %v1500 = vsel %vm210, %v743, 0
    %v1503 = vsel %vm210, %v748, 0
    %v1506 = vsel %vm210, %v753, 0
    %v1509 = vsel %vm210, %v758, 0
    %v1512 = vsel %vm210, %v763, 0
    %v1515 = vsel %vm210, %v768, 0
    %v1518 = vsel %vm210, %v773, 0
    %1520 = vmatprep.subr.mxu0 0.0
    %1521 = vmatpush1.msra.mxu0 %v776
    %1522 = vmatprep.subr.mxu0 0.0
    %1523 = vmatpush1.msra.mxu0 0.0
    %1524 = vmatprep.subr.mxu0 0.0
    %1525 = vmatpush1.msra.mxu0 0.0
    %1526 = vmatprep.subr.mxu0 0.0
    %1527 = vmatpush1.msra.mxu0 0.0
    %1528 = vmatprep.subr.mxu0 0.0
    %1529 = vmatpush1.msra.mxu0 0.0
    %1530 = vmatprep.subr.mxu0 0.0
    %1531 = vmatpush1.msra.mxu0 0.0
    %1532 = vmatprep.subr.mxu0 0.0
    %1533 = vmatpush1.msra.mxu0 0.0
    %1534 = vmatprep.subr.mxu0 0.0
    %1535 = vmatpush1.msra.mxu0 0.0
    %1536 = vmatprep.subr.mxu0 0.0
    %1537 = vmatpush1.msra.mxu0 0.0
    %1538 = vmatprep.subr.mxu0 0.0
    %1539 = vmatpush1.msra.mxu0 0.0
    %1540 = vmatprep.subr.mxu0 0.0
    %1541 = vmatpush1.msra.mxu0 0.0
    %1542 = vmatprep.subr.mxu0 0.0
    %1543 = vmatpush1.msra.mxu0 0.0
    %1544 = vmatprep.subr.mxu0 0.0
    %1545 = vmatpush1.msra.mxu0 0.0
    %1546 = vmatprep.subr.mxu0 0.0
    %1547 = vmatpush1.msra.mxu0 0.0
    %1548 = vmatprep.subr.mxu0 0.0
    %1549 = vmatpush1.msra.mxu0 0.0
    %1550 = vmatprep.subr.mxu0 0.0
    %1551 = vmatpush1.msra.mxu0 0.0
    %1552 = vmatprep.subr.mxu0 0.0
    %1553 = vmatpush1.msra.mxu0 0.0
    %1554 = vmatprep.subr.mxu0 0.0
    %1555 = vmatpush1.msra.mxu0 0.0
    %1556 = vmatprep.subr.mxu0 0.0
    %1557 = vmatpush1.msra.mxu0 0.0
    %1558 = vmatprep.subr.mxu0 0.0
    %1559 = vmatpush1.msra.mxu0 0.0
    %1560 = vmatprep.subr.mxu0 0.0
    %1561 = vmatpush1.msra.mxu0 0.0
    %1562 = vmatprep.subr.mxu0 0.0
    %1563 = vmatpush1.msra.mxu0 0.0
    %1564 = vmatprep.subr.mxu0 0.0
    %1565 = vmatpush1.msra.mxu0 0.0
    %1566 = vmatprep.subr.mxu0 0.0
    %1567 = vmatpush1.msra.mxu0 0.0
    %1568 = vmatprep.subr.mxu0 0.0
    %1569 = vmatpush1.msra.mxu0 0.0
    %1570 = vmatprep.subr.mxu0 0.0
    %1571 = vmatpush1.msra.mxu0 0.0
    %1572 = vmatprep.subr.mxu0 0.0
    %1573 = vmatpush1.msra.mxu0 0.0
    %1574 = vmatprep.subr.mxu0 0.0
    %1575 = vmatpush1.msra.mxu0 0.0
    %1576 = vmatprep.subr.mxu0 0.0
    %1577 = vmatpush1.msra.mxu0 0.0
    %1578 = vmatprep.subr.mxu0 0.0
    %1579 = vmatpush1.msra.mxu0 0.0
    %1580 = vmatprep.subr.mxu0 0.0
    %1581 = vmatpush1.msra.mxu0 0.0
    %1582 = vmatprep.subr.mxu0 0.0
    %1583 = vmatpush1.msra.mxu0 0.0
    %1584 = vmatprep.mubr.f32.mxu0 0.0
    %1585 = vmatmul.mubr.f32.gmra.mrb[0].mxu0 %v1497
    %v1586 = vpop.f32.mrb[0].mxu0
    %v1587 = vadd.f32 %v1458, %v1586
    %v1588 = vpop.f32.mrb[0].mxu0
    %1589 = vmatprep.mubr.f32.mxu0 0.0
    %1590 = vmatmul.mubr.f32.gmra.mrb[0].mxu0 %v1500
    %v1591 = vpop.f32.mrb[0].mxu0
    %v1592 = vadd.f32 %v1463, %v1591
    %v1593 = vpop.f32.mrb[0].mxu0
    %1594 = vmatprep.mubr.f32.mxu0 0.0
    %1595 = vmatmul.mubr.f32.gmra.mrb[0].mxu0 %v1503
    %v1596 = vpop.f32.mrb[0].mxu0
    %v1597 = vadd.f32 %v1468, %v1596
    %v1598 = vpop.f32.mrb[0].mxu0
    %1599 = vmatprep.mubr.f32.mxu0 0.0
    %1600 = vmatmul.mubr.f32.gmra.mrb[0].mxu0 %v1506
    %v1601 = vpop.f32.mrb[0].mxu0
    %v1602 = vadd.f32 %v1473, %v1601
    %v1603 = vpop.f32.mrb[0].mxu0
    %1604 = vmatprep.mubr.f32.mxu0 0.0
    %1605 = vmatmul.mubr.f32.gmra.mrb[0].mxu0 %v1509
    %v1606 = vpop.f32.mrb[0].mxu0
    %v1607 = vadd.f32 %v1478, %v1606
    %v1608 = vpop.f32.mrb[0].mxu0
    %1609 = vmatprep.mubr.f32.mxu0 0.0
    %1610 = vmatmul.mubr.f32.gmra.mrb[0].mxu0 %v1512
    %v1611 = vpop.f32.mrb[0].mxu0
    %v1612 = vadd.f32 %v1483, %v1611
    %v1613 = vpop.f32.mrb[0].mxu0
    %1614 = vmatprep.mubr.f32.mxu0 0.0
    %1615 = vmatmul.mubr.f32.gmra.mrb[0].mxu0 %v1515
    %v1616 = vpop.f32.mrb[0].mxu0
    %v1617 = vadd.f32 %v1488, %v1616
    %v1618 = vpop.f32.mrb[0].mxu0
    %1619 = vmatprep.mubr.f32.mxu0 0.0
    %1620 = vmatmul.mubr.f32.gmra.mrb[0].mxu0 %v1518
    %v1621 = vpop.f32.mrb[0].mxu0
    %v1622 = vadd.f32 %v1493, %v1621
    %v1623 = vpop.f32.mrb[0].mxu0
    %1624 = vdwg.mxu0
    %1625 = vrot.lane.b32.xlu0 %v202, 112
    %v1626 = vpop.permute.xlu0 %1625
    %1627 = vrot.lane.b32.xlu0 %v203, 112
    %v1628 = vpop.permute.xlu0 %1627
    %1629 = vrot.lane.b32.xlu0 %v204, 112
    %v1630 = vpop.permute.xlu0 %1629
    %1631 = vrot.lane.b32.xlu0 %v205, 112
    %v1632 = vpop.permute.xlu0 %1631
    %1633 = vrot.lane.b32.xlu0 %v206, 112
    %v1634 = vpop.permute.xlu0 %1633
    %1635 = vrot.lane.b32.xlu0 %v207, 112
    %v1636 = vpop.permute.xlu0 %1635
    %1637 = vrot.lane.b32.xlu0 %v208, 112
    %v1638 = vpop.permute.xlu0 %1637
    %1639 = vrot.lane.b32.xlu0 %v209, 112
    %v1640 = vpop.permute.xlu0 %1639
    %v1649 = vsel %vm210, %v1626, 0.0
    %1650 = vadd.xlane.f32.xlu0 %v1649
    %v1651 = vpop.xlane.xlu0 %1650
    %v1652 = vsel %vm210, %v1628, 0.0
    %1653 = vadd.xlane.f32.xlu0 %v1652
    %v1654 = vpop.xlane.xlu0 %1653
    %v1655 = vsel %vm210, %v1630, 0.0
    %1656 = vadd.xlane.f32.xlu0 %v1655
    %v1657 = vpop.xlane.xlu0 %1656
    %v1658 = vsel %vm210, %v1632, 0.0
    %1659 = vadd.xlane.f32.xlu0 %v1658
    %v1660 = vpop.xlane.xlu0 %1659
    %v1661 = vsel %vm210, %v1634, 0.0
    %1662 = vadd.xlane.f32.xlu0 %v1661
    %v1663 = vpop.xlane.xlu0 %1662
    %v1664 = vsel %vm210, %v1636, 0.0
    %1665 = vadd.xlane.f32.xlu0 %v1664
    %v1666 = vpop.xlane.xlu0 %1665
    %v1667 = vsel %vm210, %v1638, 0.0
    %1668 = vadd.xlane.f32.xlu0 %v1667
    %v1669 = vpop.xlane.xlu0 %1668
    %v1670 = vsel %vm210, %v1640, 0.0
    %1671 = vadd.xlane.f32.xlu0 %v1670
    %v1672 = vpop.xlane.xlu0 %1671
    %v1673 = vmax.f32 %v1651, 1e-24
    %v1674 = vmax.f32 %v1654, 1e-24
    %v1675 = vmax.f32 %v1657, 1e-24
    %v1676 = vmax.f32 %v1660, 1e-24
    %v1677 = vmax.f32 %v1663, 1e-24
    %v1678 = vmax.f32 %v1666, 1e-24
    %v1679 = vmax.f32 %v1669, 1e-24
    %v1680 = vmax.f32 %v1672, 1e-24
    %v1681 = vrsqrt.pop %v1673
    %v1682 = vrsqrt.pop %v1674
    %v1683 = vrsqrt.pop %v1675
    %v1684 = vrsqrt.pop %v1676
    %v1685 = vrsqrt.pop %v1677
    %v1686 = vrsqrt.pop %v1678
    %v1687 = vrsqrt.pop %v1679
    %v1688 = vrsqrt.pop %v1680
    %v1689 = vmul.f32 %v164, %v1681
    %v1690 = vmul.f32 %v169, %v1682
    %v1691 = vmul.f32 %v174, %v1683
    %v1692 = vmul.f32 %v179, %v1684
    %v1693 = vmul.f32 %v184, %v1685
    %v1694 = vmul.f32 %v189, %v1686
    %v1695 = vmul.f32 %v194, %v1687
    %v1696 = vmul.f32 %v199, %v1688
    %1697 = vrot.lane.b32.xlu0 %v202, 80
    %v1698 = vpop.permute.xlu0 %1697
    %1699 = vrot.lane.b32.xlu0 %v203, 80
    %v1700 = vpop.permute.xlu0 %1699
    %1701 = vrot.lane.b32.xlu0 %v204, 80
    %v1702 = vpop.permute.xlu0 %1701
    %1703 = vrot.lane.b32.xlu0 %v205, 80
    %v1704 = vpop.permute.xlu0 %1703
    %1705 = vrot.lane.b32.xlu0 %v206, 80
    %v1706 = vpop.permute.xlu0 %1705
    %1707 = vrot.lane.b32.xlu0 %v207, 80
    %v1708 = vpop.permute.xlu0 %1707
    %1709 = vrot.lane.b32.xlu0 %v208, 80
    %v1710 = vpop.permute.xlu0 %1709
    %1711 = vrot.lane.b32.xlu0 %v209, 80
    %v1712 = vpop.permute.xlu0 %1711
    %v1721 = vsel %vm210, %v1698, 0.0
    %1722 = vadd.xlane.f32.xlu0 %v1721
    %v1723 = vpop.xlane.xlu0 %1722
    %v1724 = vsel %vm210, %v1700, 0.0
    %1725 = vadd.xlane.f32.xlu0 %v1724
    %v1726 = vpop.xlane.xlu0 %1725
    %v1727 = vsel %vm210, %v1702, 0.0
    %1728 = vadd.xlane.f32.xlu0 %v1727
    %v1729 = vpop.xlane.xlu0 %1728
    %v1730 = vsel %vm210, %v1704, 0.0
    %1731 = vadd.xlane.f32.xlu0 %v1730
    %v1732 = vpop.xlane.xlu0 %1731
    %v1733 = vsel %vm210, %v1706, 0.0
    %1734 = vadd.xlane.f32.xlu0 %v1733
    %v1735 = vpop.xlane.xlu0 %1734
    %v1736 = vsel %vm210, %v1708, 0.0
    %1737 = vadd.xlane.f32.xlu0 %v1736
    %v1738 = vpop.xlane.xlu0 %1737
    %v1739 = vsel %vm210, %v1710, 0.0
    %1740 = vadd.xlane.f32.xlu0 %v1739
    %v1741 = vpop.xlane.xlu0 %1740
    %v1742 = vsel %vm210, %v1712, 0.0
    %1743 = vadd.xlane.f32.xlu0 %v1742
    %v1744 = vpop.xlane.xlu0 %1743
    %v1745 = vmax.f32 %v1723, 1e-24
    %v1746 = vmax.f32 %v1726, 1e-24
    %v1747 = vmax.f32 %v1729, 1e-24
    %v1748 = vmax.f32 %v1732, 1e-24
    %v1749 = vmax.f32 %v1735, 1e-24
    %v1750 = vmax.f32 %v1738, 1e-24
    %v1751 = vmax.f32 %v1741, 1e-24
    %v1752 = vmax.f32 %v1744, 1e-24
    %v1753 = vrsqrt.pop %v1745
    %v1754 = vrsqrt.pop %v1746
    %v1755 = vrsqrt.pop %v1747
    %v1756 = vrsqrt.pop %v1748
    %v1757 = vrsqrt.pop %v1749
    %v1758 = vrsqrt.pop %v1750
    %v1759 = vrsqrt.pop %v1751
    %v1760 = vrsqrt.pop %v1752
    %v1761 = vmul.f32 %v164, %v1753
    %v1762 = vmul.f32 %v169, %v1754
    %v1763 = vmul.f32 %v174, %v1755
    %v1764 = vmul.f32 %v179, %v1756
    %v1765 = vmul.f32 %v184, %v1757
    %v1766 = vmul.f32 %v189, %v1758
    %v1767 = vmul.f32 %v194, %v1759
    %v1768 = vmul.f32 %v199, %v1760
    %s1769 = sld [smem:[#allocation2 + $0x2]]
    %v1770 = vstv %s1769
    %v1771 = vmul.f32 %v1689, %v1770
    %v1772 = vmul.f32 %v1690, %v1770
    %v1773 = vmul.f32 %v1691, %v1770
    %v1774 = vmul.f32 %v1692, %v1770
    %v1775 = vmul.f32 %v1693, %v1770
    %v1776 = vmul.f32 %v1694, %v1770
    %v1777 = vmul.f32 %v1695, %v1770
    %v1778 = vmul.f32 %v1696, %v1770
    %s1779 = scalar_lea.vmem [#allocation5], 128
    %v1780 = vld [vmem:[%s1779] sm:$0xff]
    %v1781 = vld [vmem:[%s1779 + $0x8] sm:$0xff]
    %v1782 = vld [vmem:[%s1779 + $0x10] sm:$0xff]
    %v1783 = vld [vmem:[%s1779 + $0x18] sm:$0xff]
    %v1784 = vld [vmem:[%s1779 + $0x20] sm:$0xff]
    %v1785 = vld [vmem:[%s1779 + $0x28] sm:$0xff]
    %v1786 = vld [vmem:[%s1779 + $0x30] sm:$0xff]
    %v1787 = vld [vmem:[%s1779 + $0x38] sm:$0xff]
    %1796 = vrot.lane.b32.xlu0 %v1771, 112
    %v1797 = vpop.permute.xlu0 %1796
    %1798 = vrot.lane.b32.xlu0 %v1772, 112
    %v1799 = vpop.permute.xlu0 %1798
    %1800 = vrot.lane.b32.xlu0 %v1773, 112
    %v1801 = vpop.permute.xlu0 %1800
    %1802 = vrot.lane.b32.xlu0 %v1774, 112
    %v1803 = vpop.permute.xlu0 %1802
    %1804 = vrot.lane.b32.xlu0 %v1775, 112
    %v1805 = vpop.permute.xlu0 %1804
    %1806 = vrot.lane.b32.xlu0 %v1776, 112
    %v1807 = vpop.permute.xlu0 %1806
    %1808 = vrot.lane.b32.xlu0 %v1777, 112
    %v1809 = vpop.permute.xlu0 %1808
    %1810 = vrot.lane.b32.xlu0 %v1778, 112
    %v1811 = vpop.permute.xlu0 %1810
    %1820 = vrot.lane.b32.xlu0 %v1761, 80
    %v1821 = vpop.permute.xlu0 %1820
    %1822 = vrot.lane.b32.xlu0 %v1762, 80
    %v1823 = vpop.permute.xlu0 %1822
    %1824 = vrot.lane.b32.xlu0 %v1763, 80
    %v1825 = vpop.permute.xlu0 %1824
    %1826 = vrot.lane.b32.xlu0 %v1764, 80
    %v1827 = vpop.permute.xlu0 %1826
    %1828 = vrot.lane.b32.xlu0 %v1765, 80
    %v1829 = vpop.permute.xlu0 %1828
    %1830 = vrot.lane.b32.xlu0 %v1766, 80
    %v1831 = vpop.permute.xlu0 %1830
    %1832 = vrot.lane.b32.xlu0 %v1767, 80
    %v1833 = vpop.permute.xlu0 %1832
    %1834 = vrot.lane.b32.xlu0 %v1768, 80
    %v1835 = vpop.permute.xlu0 %1834
    %v1836 = vsel %vm210, %v1797, 0
    %v1838 = vsel %vm210, %v1799, 0
    %v1840 = vsel %vm210, %v1801, 0
    %v1842 = vsel %vm210, %v1803, 0
    %v1844 = vsel %vm210, %v1805, 0
    %v1846 = vsel %vm210, %v1807, 0
    %v1848 = vsel %vm210, %v1809, 0
    %v1850 = vsel %vm210, %v1811, 0
    %v1852 = vsel %vm210, %v1821, 0
    %v1854 = vsel %vm210, %v1823, 0
    %v1856 = vsel %vm210, %v1825, 0
    %v1858 = vsel %vm210, %v1827, 0
    %v1860 = vsel %vm210, %v1829, 0
    %v1862 = vsel %vm210, %v1831, 0
    %v1864 = vsel %vm210, %v1833, 0
    %v1866 = vsel %vm210, %v1835, 0
    %1868 = vmatprep.subr.mxu0 0.0
    %1869 = vmatpush1.xpose.msra.mxu0 %v1852
    %1870 = vmatprep.subr.mxu0 0.0
    %1871 = vmatpush1.xpose.msra.mxu0 %v1854
    %1872 = vmatprep.subr.mxu0 0.0
    %1873 = vmatpush1.xpose.msra.mxu0 %v1856
    %1874 = vmatprep.subr.mxu0 0.0
    %1875 = vmatpush1.xpose.msra.mxu0 %v1858
    %1876 = vmatprep.subr.mxu0 0.0
    %1877 = vmatpush1.xpose.msra.mxu0 %v1860
    %1878 = vmatprep.subr.mxu0 0.0
    %1879 = vmatpush1.xpose.msra.mxu0 %v1862
    %1880 = vmatprep.subr.mxu0 0.0
    %1881 = vmatpush1.xpose.msra.mxu0 %v1864
    %1882 = vmatprep.subr.mxu0 0.0
    %1883 = vmatpush1.xpose.msra.mxu0 %v1866
    %1884 = vmatprep.subr.mxu0 0.0
    %1885 = vmatpush1.xpose.msra.mxu0 0.0
    %1886 = vmatprep.subr.mxu0 0.0
    %1887 = vmatpush1.xpose.msra.mxu0 0.0
    %1888 = vmatprep.subr.mxu0 0.0
    %1889 = vmatpush1.xpose.msra.mxu0 0.0
    %1890 = vmatprep.subr.mxu0 0.0
    %1891 = vmatpush1.xpose.msra.mxu0 0.0
    %1892 = vmatprep.subr.mxu0 0.0
    %1893 = vmatpush1.xpose.msra.mxu0 0.0
    %1894 = vmatprep.subr.mxu0 0.0
    %1895 = vmatpush1.xpose.msra.mxu0 0.0
    %1896 = vmatprep.subr.mxu0 0.0
    %1897 = vmatpush1.xpose.msra.mxu0 0.0
    %1898 = vmatprep.subr.mxu0 0.0
    %1899 = vmatpush1.xpose.msra.mxu0 0.0
    %1900 = vmatprep.subr.mxu0 0.0
    %1901 = vmatpush1.xpose.msra.mxu0 0.0
    %1902 = vmatprep.subr.mxu0 0.0
    %1903 = vmatpush1.xpose.msra.mxu0 0.0
    %1904 = vmatprep.subr.mxu0 0.0
    %1905 = vmatpush1.xpose.msra.mxu0 0.0
    %1906 = vmatprep.subr.mxu0 0.0
    %1907 = vmatpush1.xpose.msra.mxu0 0.0
    %1908 = vmatprep.subr.mxu0 0.0
    %1909 = vmatpush1.xpose.msra.mxu0 0.0
    %1910 = vmatprep.subr.mxu0 0.0
    %1911 = vmatpush1.xpose.msra.mxu0 0.0
    %1912 = vmatprep.subr.mxu0 0.0
    %1913 = vmatpush1.xpose.msra.mxu0 0.0
    %1914 = vmatprep.subr.mxu0 0.0
    %1915 = vmatpush1.xpose.msra.mxu0 0.0
    %1916 = vmatprep.subr.mxu0 0.0
    %1917 = vmatpush1.xpose.msra.mxu0 0.0
    %1918 = vmatprep.subr.mxu0 0.0
    %1919 = vmatpush1.xpose.msra.mxu0 0.0
    %1920 = vmatprep.subr.mxu0 0.0
    %1921 = vmatpush1.xpose.msra.mxu0 0.0
    %1922 = vmatprep.subr.mxu0 0.0
    %1923 = vmatpush1.xpose.msra.mxu0 0.0
    %1924 = vmatprep.subr.mxu0 0.0
    %1925 = vmatpush1.xpose.msra.mxu0 0.0
    %1926 = vmatprep.subr.mxu0 0.0
    %1927 = vmatpush1.xpose.msra.mxu0 0.0
    %1928 = vmatprep.subr.mxu0 0.0
    %1929 = vmatpush1.xpose.msra.mxu0 0.0
    %1930 = vmatprep.subr.mxu0 0.0
    %1931 = vmatpush1.xpose.msra.mxu0 0.0
    %1932 = vmatprep.mubr.f32.mxu0 0.0
    %1933 = vmatmul.mubr.f32.gmra.mrb[0].mxu0 %v1836
    %v1934 = vpop.f32.mrb[0].mxu0
    %v1935 = vadd.f32 %v1780, %v1934
    %v1936 = vpop.f32.mrb[0].mxu0
    %1937 = vmatprep.mubr.f32.mxu0 0.0
    %1938 = vmatmul.mubr.f32.gmra.mrb[0].mxu0 %v1838
    %v1939 = vpop.f32.mrb[0].mxu0
    %v1940 = vadd.f32 %v1781, %v1939
    %v1941 = vpop.f32.mrb[0].mxu0
    %1942 = vmatprep.mubr.f32.mxu0 0.0
    %1943 = vmatmul.mubr.f32.gmra.mrb[0].mxu0 %v1840
    %v1944 = vpop.f32.mrb[0].mxu0
    %v1945 = vadd.f32 %v1782, %v1944
    %v1946 = vpop.f32.mrb[0].mxu0
    %1947 = vmatprep.mubr.f32.mxu0 0.0
    %1948 = vmatmul.mubr.f32.gmra.mrb[0].mxu0 %v1842
    %v1949 = vpop.f32.mrb[0].mxu0
    %v1950 = vadd.f32 %v1783, %v1949
    %v1951 = vpop.f32.mrb[0].mxu0
    %1952 = vmatprep.mubr.f32.mxu0 0.0
    %1953 = vmatmul.mubr.f32.gmra.mrb[0].mxu0 %v1844
    %v1954 = vpop.f32.mrb[0].mxu0
    %v1955 = vadd.f32 %v1784, %v1954
    %v1956 = vpop.f32.mrb[0].mxu0
    %1957 = vmatprep.mubr.f32.mxu0 0.0
    %1958 = vmatmul.mubr.f32.gmra.mrb[0].mxu0 %v1846
    %v1959 = vpop.f32.mrb[0].mxu0
    %v1960 = vadd.f32 %v1785, %v1959
    %v1961 = vpop.f32.mrb[0].mxu0
    %1962 = vmatprep.mubr.f32.mxu0 0.0
    %1963 = vmatmul.mubr.f32.gmra.mrb[0].mxu0 %v1848
    %v1964 = vpop.f32.mrb[0].mxu0
    %v1965 = vadd.f32 %v1786, %v1964
    %v1966 = vpop.f32.mrb[0].mxu0
    %1967 = vmatprep.mubr.f32.mxu0 0.0
    %1968 = vmatmul.mubr.f32.gmra.mrb[0].mxu0 %v1850
    %v1969 = vpop.f32.mrb[0].mxu0
    %v1970 = vadd.f32 %v1787, %v1969
    %v1971 = vpop.f32.mrb[0].mxu0
    %1972 = vdwg.mxu0
    %v1973 = vsel %vm526, %v1935, -inf
    %1974 = vmax.xlane.f32.xlu0 %v1973
    %v1975 = vpop.xlane.xlu0 %1974
    %v1976 = vsel %vm526, %v1940, -inf
    %1977 = vmax.xlane.f32.xlu0 %v1976
    %v1978 = vpop.xlane.xlu0 %1977
    %v1979 = vsel %vm526, %v1945, -inf
    %1980 = vmax.xlane.f32.xlu0 %v1979
    %v1981 = vpop.xlane.xlu0 %1980
    %v1982 = vsel %vm526, %v1950, -inf
    %1983 = vmax.xlane.f32.xlu0 %v1982
    %v1984 = vpop.xlane.xlu0 %1983
    %v1985 = vsel %vm526, %v1955, -inf
    %1986 = vmax.xlane.f32.xlu0 %v1985
    %v1987 = vpop.xlane.xlu0 %1986
    %v1988 = vsel %vm526, %v1960, -inf
    %1989 = vmax.xlane.f32.xlu0 %v1988
    %v1990 = vpop.xlane.xlu0 %1989
    %v1991 = vsel %vm526, %v1965, -inf
    %1992 = vmax.xlane.f32.xlu0 %v1991
    %v1993 = vpop.xlane.xlu0 %1992
    %v1994 = vsel %vm526, %v1970, -inf
    %1995 = vmax.xlane.f32.xlu0 %v1994
    %v1996 = vpop.xlane.xlu0 %1995
    %v1997 = vsub.f32 %v1935, %v1975
    %v1998 = vsub.f32 %v1940, %v1978
    %v1999 = vsub.f32 %v1945, %v1981
    %v2000 = vsub.f32 %v1950, %v1984
    %v2001 = vsub.f32 %v1955, %v1987
    %v2002 = vsub.f32 %v1960, %v1990
    %v2003 = vsub.f32 %v1965, %v1993
    %v2004 = vsub.f32 %v1970, %v1996
    %v2005 = vmul.f32 %v1997, 1.442695
    %v2006 = vpow.pop %v2005
    %v2007 = vmul.f32 %v1998, 1.442695
    %v2008 = vpow.pop %v2007
    %v2009 = vmul.f32 %v1999, 1.442695
    %v2010 = vpow.pop %v2009
    %v2011 = vmul.f32 %v2000, 1.442695
    %v2012 = vpow.pop %v2011
    %v2013 = vmul.f32 %v2001, 1.442695
    %v2014 = vpow.pop %v2013
    %v2015 = vmul.f32 %v2002, 1.442695
    %v2016 = vpow.pop %v2015
    %v2017 = vmul.f32 %v2003, 1.442695
    %v2018 = vpow.pop %v2017
    %v2019 = vmul.f32 %v2004, 1.442695
    %v2020 = vpow.pop %v2019
    %v2021 = vsel %vm526, %v2006, 0.0
    %2022 = vadd.xlane.f32.xlu0 %v2021
    %v2023 = vpop.xlane.xlu0 %2022
    %v2024 = vsel %vm526, %v2008, 0.0
    %2025 = vadd.xlane.f32.xlu0 %v2024
    %v2026 = vpop.xlane.xlu0 %2025
    %v2027 = vsel %vm526, %v2010, 0.0
    %2028 = vadd.xlane.f32.xlu0 %v2027
    %v2029 = vpop.xlane.xlu0 %2028
    %v2030 = vsel %vm526, %v2012, 0.0
    %2031 = vadd.xlane.f32.xlu0 %v2030
    %v2032 = vpop.xlane.xlu0 %2031
    %v2033 = vsel %vm526, %v2014, 0.0
    %2034 = vadd.xlane.f32.xlu0 %v2033
    %v2035 = vpop.xlane.xlu0 %2034
    %v2036 = vsel %vm526, %v2016, 0.0
    %2037 = vadd.xlane.f32.xlu0 %v2036
    %v2038 = vpop.xlane.xlu0 %2037
    %v2039 = vsel %vm526, %v2018, 0.0
    %2040 = vadd.xlane.f32.xlu0 %v2039
    %v2041 = vpop.xlane.xlu0 %2040
    %v2042 = vsel %vm526, %v2020, 0.0
    %2043 = vadd.xlane.f32.xlu0 %v2042
    %v2044 = vpop.xlane.xlu0 %2043
    %v2045 = vrcp.pop %v2023
    %v2046 = vmul.f32 %v2006, %v2045
    %v2047 = vrcp.pop %v2026
    %v2048 = vmul.f32 %v2008, %v2047
    %v2049 = vrcp.pop %v2029
    %v2050 = vmul.f32 %v2010, %v2049
    %v2051 = vrcp.pop %v2032
    %v2052 = vmul.f32 %v2012, %v2051
    %v2053 = vrcp.pop %v2035
    %v2054 = vmul.f32 %v2014, %v2053
    %v2055 = vrcp.pop %v2038
    %v2056 = vmul.f32 %v2016, %v2055
    %v2057 = vrcp.pop %v2041
    %v2058 = vmul.f32 %v2018, %v2057
    %v2059 = vrcp.pop %v2044
    %v2060 = vmul.f32 %v2020, %v2059
    %2061 = vrot.lane.b32.xlu0 %v164, 48
    %v2062 = vpop.permute.xlu0 %2061
    %2063 = vrot.lane.b32.xlu0 %v169, 48
    %v2064 = vpop.permute.xlu0 %2063
    %2065 = vrot.lane.b32.xlu0 %v174, 48
    %v2066 = vpop.permute.xlu0 %2065
    %2067 = vrot.lane.b32.xlu0 %v179, 48
    %v2068 = vpop.permute.xlu0 %2067
    %2069 = vrot.lane.b32.xlu0 %v184, 48
    %v2070 = vpop.permute.xlu0 %2069
    %2071 = vrot.lane.b32.xlu0 %v189, 48
    %v2072 = vpop.permute.xlu0 %2071
    %2073 = vrot.lane.b32.xlu0 %v194, 48
    %v2074 = vpop.permute.xlu0 %2073
    %2075 = vrot.lane.b32.xlu0 %v199, 48
    %v2076 = vpop.permute.xlu0 %2075
    %v2086 = vsel %vm526, %v2046, 0
    %v2089 = vsel %vm526, %v2048, 0
    %v2092 = vsel %vm526, %v2050, 0
    %v2095 = vsel %vm526, %v2052, 0
    %v2098 = vsel %vm526, %v2054, 0
    %v2101 = vsel %vm526, %v2056, 0
    %v2104 = vsel %vm526, %v2058, 0
    %v2107 = vsel %vm526, %v2060, 0
    %2109 = vmatprep.subr.mxu0 0.0
    %2110 = vmatpush1.msra.mxu0 %v2062
    %2111 = vmatprep.subr.mxu0 0.0
    %2112 = vmatpush1.msra.mxu0 %v2064
    %2113 = vmatprep.subr.mxu0 0.0
    %2114 = vmatpush1.msra.mxu0 %v2066
    %2115 = vmatprep.subr.mxu0 0.0
    %2116 = vmatpush1.msra.mxu0 %v2068
    %2117 = vmatprep.subr.mxu0 0.0
    %2118 = vmatpush1.msra.mxu0 %v2070
    %2119 = vmatprep.subr.mxu0 0.0
    %2120 = vmatpush1.msra.mxu0 %v2072
    %2121 = vmatprep.subr.mxu0 0.0
    %2122 = vmatpush1.msra.mxu0 %v2074
    %2123 = vmatprep.subr.mxu0 0.0
    %2124 = vmatpush1.msra.mxu0 %v2076
    %2125 = vmatprep.subr.mxu0 0.0
    %2126 = vmatpush1.msra.mxu0 0.0
    %2127 = vmatprep.subr.mxu0 0.0
    %2128 = vmatpush1.msra.mxu0 0.0
    %2129 = vmatprep.subr.mxu0 0.0
    %2130 = vmatpush1.msra.mxu0 0.0
    %2131 = vmatprep.subr.mxu0 0.0
    %2132 = vmatpush1.msra.mxu0 0.0
    %2133 = vmatprep.subr.mxu0 0.0
    %2134 = vmatpush1.msra.mxu0 0.0
    %2135 = vmatprep.subr.mxu0 0.0
    %2136 = vmatpush1.msra.mxu0 0.0
    %2137 = vmatprep.subr.mxu0 0.0
    %2138 = vmatpush1.msra.mxu0 0.0
    %2139 = vmatprep.subr.mxu0 0.0
    %2140 = vmatpush1.msra.mxu0 0.0
    %2141 = vmatprep.subr.mxu0 0.0
    %2142 = vmatpush1.msra.mxu0 0.0
    %2143 = vmatprep.subr.mxu0 0.0
    %2144 = vmatpush1.msra.mxu0 0.0
    %2145 = vmatprep.subr.mxu0 0.0
    %2146 = vmatpush1.msra.mxu0 0.0
    %2147 = vmatprep.subr.mxu0 0.0
    %2148 = vmatpush1.msra.mxu0 0.0
    %2149 = vmatprep.subr.mxu0 0.0
    %2150 = vmatpush1.msra.mxu0 0.0
    %2151 = vmatprep.subr.mxu0 0.0
    %2152 = vmatpush1.msra.mxu0 0.0
    %2153 = vmatprep.subr.mxu0 0.0
    %2154 = vmatpush1.msra.mxu0 0.0
    %2155 = vmatprep.subr.mxu0 0.0
    %2156 = vmatpush1.msra.mxu0 0.0
    %2157 = vmatprep.subr.mxu0 0.0
    %2158 = vmatpush1.msra.mxu0 0.0
    %2159 = vmatprep.subr.mxu0 0.0
    %2160 = vmatpush1.msra.mxu0 0.0
    %2161 = vmatprep.subr.mxu0 0.0
    %2162 = vmatpush1.msra.mxu0 0.0
    %2163 = vmatprep.subr.mxu0 0.0
    %2164 = vmatpush1.msra.mxu0 0.0
    %2165 = vmatprep.subr.mxu0 0.0
    %2166 = vmatpush1.msra.mxu0 0.0
    %2167 = vmatprep.subr.mxu0 0.0
    %2168 = vmatpush1.msra.mxu0 0.0
    %2169 = vmatprep.subr.mxu0 0.0
    %2170 = vmatpush1.msra.mxu0 0.0
    %2171 = vmatprep.subr.mxu0 0.0
    %2172 = vmatpush1.msra.mxu0 0.0
    %2173 = vmatprep.mubr.f32.mxu0 0.0
    %2174 = vmatmul.mubr.f32.gmra.mrb[0].mxu0 %v2086
    %v2175 = vpop.f32.mrb[0].mxu0
    %v2176 = vadd.f32 0.0, %v2175
    %v2177 = vpop.f32.mrb[0].mxu0
    %2178 = vmatprep.mubr.f32.mxu0 0.0
    %2179 = vmatmul.mubr.f32.gmra.mrb[0].mxu0 %v2089
    %v2180 = vpop.f32.mrb[0].mxu0
    %v2181 = vadd.f32 0.0, %v2180
    %v2182 = vpop.f32.mrb[0].mxu0
    %2183 = vmatprep.mubr.f32.mxu0 0.0
    %2184 = vmatmul.mubr.f32.gmra.mrb[0].mxu0 %v2092
    %v2185 = vpop.f32.mrb[0].mxu0
    %v2186 = vadd.f32 0.0, %v2185
    %v2187 = vpop.f32.mrb[0].mxu0
    %2188 = vmatprep.mubr.f32.mxu0 0.0
    %2189 = vmatmul.mubr.f32.gmra.mrb[0].mxu0 %v2095
    %v2190 = vpop.f32.mrb[0].mxu0
    %v2191 = vadd.f32 0.0, %v2190
    %v2192 = vpop.f32.mrb[0].mxu0
    %2193 = vmatprep.mubr.f32.mxu0 0.0
    %2194 = vmatmul.mubr.f32.gmra.mrb[0].mxu0 %v2098
    %v2195 = vpop.f32.mrb[0].mxu0
    %v2196 = vadd.f32 0.0, %v2195
    %v2197 = vpop.f32.mrb[0].mxu0
    %2198 = vmatprep.mubr.f32.mxu0 0.0
    %2199 = vmatmul.mubr.f32.gmra.mrb[0].mxu0 %v2101
    %v2200 = vpop.f32.mrb[0].mxu0
    %v2201 = vadd.f32 0.0, %v2200
    %v2202 = vpop.f32.mrb[0].mxu0
    %2203 = vmatprep.mubr.f32.mxu0 0.0
    %2204 = vmatmul.mubr.f32.gmra.mrb[0].mxu0 %v2104
    %v2205 = vpop.f32.mrb[0].mxu0
    %v2206 = vadd.f32 0.0, %v2205
    %v2207 = vpop.f32.mrb[0].mxu0
    %2208 = vmatprep.mubr.f32.mxu0 0.0
    %2209 = vmatmul.mubr.f32.gmra.mrb[0].mxu0 %v2107
    %v2210 = vpop.f32.mrb[0].mxu0
    %v2211 = vadd.f32 0.0, %v2210
    %v2212 = vpop.f32.mrb[0].mxu0
    %2213 = vdwg.mxu0
    %v2214 = vld [vmem:[%s5 + $0x10] sm:$0xff]
    %v2216 = vsel %vm210, %v2176, 0
    %v2219 = vsel %vm210, %v2181, 0
    %v2222 = vsel %vm210, %v2186, 0
    %v2225 = vsel %vm210, %v2191, 0
    %v2228 = vsel %vm210, %v2196, 0
    %v2231 = vsel %vm210, %v2201, 0
    %v2234 = vsel %vm210, %v2206, 0
    %v2237 = vsel %vm210, %v2211, 0
    %2239 = vmatprep.subr.mxu0 0.0
    %2240 = vmatpush1.msra.mxu0 %v2214
    %2241 = vmatprep.subr.mxu0 0.0
    %2242 = vmatpush1.msra.mxu0 0.0
    %2243 = vmatprep.subr.mxu0 0.0
    %2244 = vmatpush1.msra.mxu0 0.0
    %2245 = vmatprep.subr.mxu0 0.0
    %2246 = vmatpush1.msra.mxu0 0.0
    %2247 = vmatprep.subr.mxu0 0.0
    %2248 = vmatpush1.msra.mxu0 0.0
    %2249 = vmatprep.subr.mxu0 0.0
    %2250 = vmatpush1.msra.mxu0 0.0
    %2251 = vmatprep.subr.mxu0 0.0
    %2252 = vmatpush1.msra.mxu0 0.0
    %2253 = vmatprep.subr.mxu0 0.0
    %2254 = vmatpush1.msra.mxu0 0.0
    %2255 = vmatprep.subr.mxu0 0.0
    %2256 = vmatpush1.msra.mxu0 0.0
    %2257 = vmatprep.subr.mxu0 0.0
    %2258 = vmatpush1.msra.mxu0 0.0
    %2259 = vmatprep.subr.mxu0 0.0
    %2260 = vmatpush1.msra.mxu0 0.0
    %2261 = vmatprep.subr.mxu0 0.0
    %2262 = vmatpush1.msra.mxu0 0.0
    %2263 = vmatprep.subr.mxu0 0.0
    %2264 = vmatpush1.msra.mxu0 0.0
    %2265 = vmatprep.subr.mxu0 0.0
    %2266 = vmatpush1.msra.mxu0 0.0
    %2267 = vmatprep.subr.mxu0 0.0
    %2268 = vmatpush1.msra.mxu0 0.0
    %2269 = vmatprep.subr.mxu0 0.0
    %2270 = vmatpush1.msra.mxu0 0.0
    %2271 = vmatprep.subr.mxu0 0.0
    %2272 = vmatpush1.msra.mxu0 0.0
    %2273 = vmatprep.subr.mxu0 0.0
    %2274 = vmatpush1.msra.mxu0 0.0
    %2275 = vmatprep.subr.mxu0 0.0
    %2276 = vmatpush1.msra.mxu0 0.0
    %2277 = vmatprep.subr.mxu0 0.0
    %2278 = vmatpush1.msra.mxu0 0.0
    %2279 = vmatprep.subr.mxu0 0.0
    %2280 = vmatpush1.msra.mxu0 0.0
    %2281 = vmatprep.subr.mxu0 0.0
    %2282 = vmatpush1.msra.mxu0 0.0
    %2283 = vmatprep.subr.mxu0 0.0
    %2284 = vmatpush1.msra.mxu0 0.0
    %2285 = vmatprep.subr.mxu0 0.0
    %2286 = vmatpush1.msra.mxu0 0.0
    %2287 = vmatprep.subr.mxu0 0.0
    %2288 = vmatpush1.msra.mxu0 0.0
    %2289 = vmatprep.subr.mxu0 0.0
    %2290 = vmatpush1.msra.mxu0 0.0
    %2291 = vmatprep.subr.mxu0 0.0
    %2292 = vmatpush1.msra.mxu0 0.0
    %2293 = vmatprep.subr.mxu0 0.0
    %2294 = vmatpush1.msra.mxu0 0.0
    %2295 = vmatprep.subr.mxu0 0.0
    %2296 = vmatpush1.msra.mxu0 0.0
    %2297 = vmatprep.subr.mxu0 0.0
    %2298 = vmatpush1.msra.mxu0 0.0
    %2299 = vmatprep.subr.mxu0 0.0
    %2300 = vmatpush1.msra.mxu0 0.0
    %2301 = vmatprep.subr.mxu0 0.0
    %2302 = vmatpush1.msra.mxu0 0.0
    %2303 = vmatprep.mubr.f32.mxu0 0.0
    %2304 = vmatmul.mubr.f32.gmra.mrb[0].mxu0 %v2216
    %v2305 = vpop.f32.mrb[0].mxu0
    %v2306 = vadd.f32 0.0, %v2305
    %v2307 = vpop.f32.mrb[0].mxu0
    %2308 = vmatprep.mubr.f32.mxu0 0.0
    %2309 = vmatmul.mubr.f32.gmra.mrb[0].mxu0 %v2219
    %v2310 = vpop.f32.mrb[0].mxu0
    %v2311 = vadd.f32 0.0, %v2310
    %v2312 = vpop.f32.mrb[0].mxu0
    %2313 = vmatprep.mubr.f32.mxu0 0.0
    %2314 = vmatmul.mubr.f32.gmra.mrb[0].mxu0 %v2222
    %v2315 = vpop.f32.mrb[0].mxu0
    %v2316 = vadd.f32 0.0, %v2315
    %v2317 = vpop.f32.mrb[0].mxu0
    %2318 = vmatprep.mubr.f32.mxu0 0.0
    %2319 = vmatmul.mubr.f32.gmra.mrb[0].mxu0 %v2225
    %v2320 = vpop.f32.mrb[0].mxu0
    %v2321 = vadd.f32 0.0, %v2320
    %v2322 = vpop.f32.mrb[0].mxu0
    %2323 = vmatprep.mubr.f32.mxu0 0.0
    %2324 = vmatmul.mubr.f32.gmra.mrb[0].mxu0 %v2228
    %v2325 = vpop.f32.mrb[0].mxu0
    %v2326 = vadd.f32 0.0, %v2325
    %v2327 = vpop.f32.mrb[0].mxu0
    %2328 = vmatprep.mubr.f32.mxu0 0.0
    %2329 = vmatmul.mubr.f32.gmra.mrb[0].mxu0 %v2231
    %v2330 = vpop.f32.mrb[0].mxu0
    %v2331 = vadd.f32 0.0, %v2330
    %v2332 = vpop.f32.mrb[0].mxu0
    %2333 = vmatprep.mubr.f32.mxu0 0.0
    %2334 = vmatmul.mubr.f32.gmra.mrb[0].mxu0 %v2234
    %v2335 = vpop.f32.mrb[0].mxu0
    %v2336 = vadd.f32 0.0, %v2335
    %v2337 = vpop.f32.mrb[0].mxu0
    %2338 = vmatprep.mubr.f32.mxu0 0.0
    %2339 = vmatmul.mubr.f32.gmra.mrb[0].mxu0 %v2237
    %v2340 = vpop.f32.mrb[0].mxu0
    %v2341 = vadd.f32 0.0, %v2340
    %v2342 = vpop.f32.mrb[0].mxu0
    %2343 = vdwg.mxu0
    %v2344 = vadd.f32 %v1587, %v2306
    %v2345 = vadd.f32 %v1592, %v2311
    %v2346 = vadd.f32 %v1597, %v2316
    %v2347 = vadd.f32 %v1602, %v2321
    %v2348 = vadd.f32 %v1607, %v2326
    %v2349 = vadd.f32 %v1612, %v2331
    %v2350 = vadd.f32 %v1617, %v2336
    %v2351 = vadd.f32 %v1622, %v2341
    %2352 = vrot.lane.b32.xlu0 %v202, 104
    %v2353 = vpop.permute.xlu0 %2352
    %2354 = vrot.lane.b32.xlu0 %v203, 104
    %v2355 = vpop.permute.xlu0 %2354
    %2356 = vrot.lane.b32.xlu0 %v204, 104
    %v2357 = vpop.permute.xlu0 %2356
    %2358 = vrot.lane.b32.xlu0 %v205, 104
    %v2359 = vpop.permute.xlu0 %2358
    %2360 = vrot.lane.b32.xlu0 %v206, 104
    %v2361 = vpop.permute.xlu0 %2360
    %2362 = vrot.lane.b32.xlu0 %v207, 104
    %v2363 = vpop.permute.xlu0 %2362
    %2364 = vrot.lane.b32.xlu0 %v208, 104
    %v2365 = vpop.permute.xlu0 %2364
    %2366 = vrot.lane.b32.xlu0 %v209, 104
    %v2367 = vpop.permute.xlu0 %2366
    %v2376 = vsel %vm210, %v2353, 0.0
    %2377 = vadd.xlane.f32.xlu0 %v2376
    %v2378 = vpop.xlane.xlu0 %2377
    %v2379 = vsel %vm210, %v2355, 0.0
    %2380 = vadd.xlane.f32.xlu0 %v2379
    %v2381 = vpop.xlane.xlu0 %2380
    %v2382 = vsel %vm210, %v2357, 0.0
    %2383 = vadd.xlane.f32.xlu0 %v2382
    %v2384 = vpop.xlane.xlu0 %2383
    %v2385 = vsel %vm210, %v2359, 0.0
    %2386 = vadd.xlane.f32.xlu0 %v2385
    %v2387 = vpop.xlane.xlu0 %2386
    %v2388 = vsel %vm210, %v2361, 0.0
    %2389 = vadd.xlane.f32.xlu0 %v2388
    %v2390 = vpop.xlane.xlu0 %2389
    %v2391 = vsel %vm210, %v2363, 0.0
    %2392 = vadd.xlane.f32.xlu0 %v2391
    %v2393 = vpop.xlane.xlu0 %2392
    %v2394 = vsel %vm210, %v2365, 0.0
    %2395 = vadd.xlane.f32.xlu0 %v2394
    %v2396 = vpop.xlane.xlu0 %2395
    %v2397 = vsel %vm210, %v2367, 0.0
    %2398 = vadd.xlane.f32.xlu0 %v2397
    %v2399 = vpop.xlane.xlu0 %2398
    %v2400 = vmax.f32 %v2378, 1e-24
    %v2401 = vmax.f32 %v2381, 1e-24
    %v2402 = vmax.f32 %v2384, 1e-24
    %v2403 = vmax.f32 %v2387, 1e-24
    %v2404 = vmax.f32 %v2390, 1e-24
    %v2405 = vmax.f32 %v2393, 1e-24
    %v2406 = vmax.f32 %v2396, 1e-24
    %v2407 = vmax.f32 %v2399, 1e-24
    %v2408 = vrsqrt.pop %v2400
    %v2409 = vrsqrt.pop %v2401
    %v2410 = vrsqrt.pop %v2402
    %v2411 = vrsqrt.pop %v2403
    %v2412 = vrsqrt.pop %v2404
    %v2413 = vrsqrt.pop %v2405
    %v2414 = vrsqrt.pop %v2406
    %v2415 = vrsqrt.pop %v2407
    %v2416 = vmul.f32 %v164, %v2408
    %v2417 = vmul.f32 %v169, %v2409
    %v2418 = vmul.f32 %v174, %v2410
    %v2419 = vmul.f32 %v179, %v2411
    %v2420 = vmul.f32 %v184, %v2412
    %v2421 = vmul.f32 %v189, %v2413
    %v2422 = vmul.f32 %v194, %v2414
    %v2423 = vmul.f32 %v199, %v2415
    %2424 = vrot.lane.b32.xlu0 %v202, 72
    %v2425 = vpop.permute.xlu0 %2424
    %2426 = vrot.lane.b32.xlu0 %v203, 72
    %v2427 = vpop.permute.xlu0 %2426
    %2428 = vrot.lane.b32.xlu0 %v204, 72
    %v2429 = vpop.permute.xlu0 %2428
    %2430 = vrot.lane.b32.xlu0 %v205, 72
    %v2431 = vpop.permute.xlu0 %2430
    %2432 = vrot.lane.b32.xlu0 %v206, 72
    %v2433 = vpop.permute.xlu0 %2432
    %2434 = vrot.lane.b32.xlu0 %v207, 72
    %v2435 = vpop.permute.xlu0 %2434
    %2436 = vrot.lane.b32.xlu0 %v208, 72
    %v2437 = vpop.permute.xlu0 %2436
    %2438 = vrot.lane.b32.xlu0 %v209, 72
    %v2439 = vpop.permute.xlu0 %2438
    %v2448 = vsel %vm210, %v2425, 0.0
    %2449 = vadd.xlane.f32.xlu0 %v2448
    %v2450 = vpop.xlane.xlu0 %2449
    %v2451 = vsel %vm210, %v2427, 0.0
    %2452 = vadd.xlane.f32.xlu0 %v2451
    %v2453 = vpop.xlane.xlu0 %2452
    %v2454 = vsel %vm210, %v2429, 0.0
    %2455 = vadd.xlane.f32.xlu0 %v2454
    %v2456 = vpop.xlane.xlu0 %2455
    %v2457 = vsel %vm210, %v2431, 0.0
    %2458 = vadd.xlane.f32.xlu0 %v2457
    %v2459 = vpop.xlane.xlu0 %2458
    %v2460 = vsel %vm210, %v2433, 0.0
    %2461 = vadd.xlane.f32.xlu0 %v2460
    %v2462 = vpop.xlane.xlu0 %2461
    %v2463 = vsel %vm210, %v2435, 0.0
    %2464 = vadd.xlane.f32.xlu0 %v2463
    %v2465 = vpop.xlane.xlu0 %2464
    %v2466 = vsel %vm210, %v2437, 0.0
    %2467 = vadd.xlane.f32.xlu0 %v2466
    %v2468 = vpop.xlane.xlu0 %2467
    %v2469 = vsel %vm210, %v2439, 0.0
    %2470 = vadd.xlane.f32.xlu0 %v2469
    %v2471 = vpop.xlane.xlu0 %2470
    %v2472 = vmax.f32 %v2450, 1e-24
    %v2473 = vmax.f32 %v2453, 1e-24
    %v2474 = vmax.f32 %v2456, 1e-24
    %v2475 = vmax.f32 %v2459, 1e-24
    %v2476 = vmax.f32 %v2462, 1e-24
    %v2477 = vmax.f32 %v2465, 1e-24
    %v2478 = vmax.f32 %v2468, 1e-24
    %v2479 = vmax.f32 %v2471, 1e-24
    %v2480 = vrsqrt.pop %v2472
    %v2481 = vrsqrt.pop %v2473
    %v2482 = vrsqrt.pop %v2474
    %v2483 = vrsqrt.pop %v2475
    %v2484 = vrsqrt.pop %v2476
    %v2485 = vrsqrt.pop %v2477
    %v2486 = vrsqrt.pop %v2478
    %v2487 = vrsqrt.pop %v2479
    %v2488 = vmul.f32 %v164, %v2480
    %v2489 = vmul.f32 %v169, %v2481
    %v2490 = vmul.f32 %v174, %v2482
    %v2491 = vmul.f32 %v179, %v2483
    %v2492 = vmul.f32 %v184, %v2484
    %v2493 = vmul.f32 %v189, %v2485
    %v2494 = vmul.f32 %v194, %v2486
    %v2495 = vmul.f32 %v199, %v2487
    %s2496 = sld [smem:[#allocation2 + $0x3]]
    %v2497 = vstv %s2496
    %v2498 = vmul.f32 %v2416, %v2497
    %v2499 = vmul.f32 %v2417, %v2497
    %v2500 = vmul.f32 %v2418, %v2497
    %v2501 = vmul.f32 %v2419, %v2497
    %v2502 = vmul.f32 %v2420, %v2497
    %v2503 = vmul.f32 %v2421, %v2497
    %v2504 = vmul.f32 %v2422, %v2497
    %v2505 = vmul.f32 %v2423, %v2497
    %s2506 = scalar_lea.vmem [#allocation5], 192
    %v2507 = vld [vmem:[%s2506] sm:$0xff]
    %v2508 = vld [vmem:[%s2506 + $0x8] sm:$0xff]
    %v2509 = vld [vmem:[%s2506 + $0x10] sm:$0xff]
    %v2510 = vld [vmem:[%s2506 + $0x18] sm:$0xff]
    %v2511 = vld [vmem:[%s2506 + $0x20] sm:$0xff]
    %v2512 = vld [vmem:[%s2506 + $0x28] sm:$0xff]
    %v2513 = vld [vmem:[%s2506 + $0x30] sm:$0xff]
    %v2514 = vld [vmem:[%s2506 + $0x38] sm:$0xff]
    %2523 = vrot.lane.b32.xlu0 %v2498, 104
    %v2524 = vpop.permute.xlu0 %2523
    %2525 = vrot.lane.b32.xlu0 %v2499, 104
    %v2526 = vpop.permute.xlu0 %2525
    %2527 = vrot.lane.b32.xlu0 %v2500, 104
    %v2528 = vpop.permute.xlu0 %2527
    %2529 = vrot.lane.b32.xlu0 %v2501, 104
    %v2530 = vpop.permute.xlu0 %2529
    %2531 = vrot.lane.b32.xlu0 %v2502, 104
    %v2532 = vpop.permute.xlu0 %2531
    %2533 = vrot.lane.b32.xlu0 %v2503, 104
    %v2534 = vpop.permute.xlu0 %2533
    %2535 = vrot.lane.b32.xlu0 %v2504, 104
    %v2536 = vpop.permute.xlu0 %2535
    %2537 = vrot.lane.b32.xlu0 %v2505, 104
    %v2538 = vpop.permute.xlu0 %2537
    %2547 = vrot.lane.b32.xlu0 %v2488, 72
    %v2548 = vpop.permute.xlu0 %2547
    %2549 = vrot.lane.b32.xlu0 %v2489, 72
    %v2550 = vpop.permute.xlu0 %2549
    %2551 = vrot.lane.b32.xlu0 %v2490, 72
    %v2552 = vpop.permute.xlu0 %2551
    %2553 = vrot.lane.b32.xlu0 %v2491, 72
    %v2554 = vpop.permute.xlu0 %2553
    %2555 = vrot.lane.b32.xlu0 %v2492, 72
    %v2556 = vpop.permute.xlu0 %2555
    %2557 = vrot.lane.b32.xlu0 %v2493, 72
    %v2558 = vpop.permute.xlu0 %2557
    %2559 = vrot.lane.b32.xlu0 %v2494, 72
    %v2560 = vpop.permute.xlu0 %2559
    %2561 = vrot.lane.b32.xlu0 %v2495, 72
    %v2562 = vpop.permute.xlu0 %2561
    %v2563 = vsel %vm210, %v2524, 0
    %v2565 = vsel %vm210, %v2526, 0
    %v2567 = vsel %vm210, %v2528, 0
    %v2569 = vsel %vm210, %v2530, 0
    %v2571 = vsel %vm210, %v2532, 0
    %v2573 = vsel %vm210, %v2534, 0
    %v2575 = vsel %vm210, %v2536, 0
    %v2577 = vsel %vm210, %v2538, 0
    %v2579 = vsel %vm210, %v2548, 0
    %v2581 = vsel %vm210, %v2550, 0
    %v2583 = vsel %vm210, %v2552, 0
    %v2585 = vsel %vm210, %v2554, 0
    %v2587 = vsel %vm210, %v2556, 0
    %v2589 = vsel %vm210, %v2558, 0
    %v2591 = vsel %vm210, %v2560, 0
    %v2593 = vsel %vm210, %v2562, 0
    %2595 = vmatprep.subr.mxu0 0.0
    %2596 = vmatpush1.xpose.msra.mxu0 %v2579
    %2597 = vmatprep.subr.mxu0 0.0
    %2598 = vmatpush1.xpose.msra.mxu0 %v2581
    %2599 = vmatprep.subr.mxu0 0.0
    %2600 = vmatpush1.xpose.msra.mxu0 %v2583
    %2601 = vmatprep.subr.mxu0 0.0
    %2602 = vmatpush1.xpose.msra.mxu0 %v2585
    %2603 = vmatprep.subr.mxu0 0.0
    %2604 = vmatpush1.xpose.msra.mxu0 %v2587
    %2605 = vmatprep.subr.mxu0 0.0
    %2606 = vmatpush1.xpose.msra.mxu0 %v2589
    %2607 = vmatprep.subr.mxu0 0.0
    %2608 = vmatpush1.xpose.msra.mxu0 %v2591
    %2609 = vmatprep.subr.mxu0 0.0
    %2610 = vmatpush1.xpose.msra.mxu0 %v2593
    %2611 = vmatprep.subr.mxu0 0.0
    %2612 = vmatpush1.xpose.msra.mxu0 0.0
    %2613 = vmatprep.subr.mxu0 0.0
    %2614 = vmatpush1.xpose.msra.mxu0 0.0
    %2615 = vmatprep.subr.mxu0 0.0
    %2616 = vmatpush1.xpose.msra.mxu0 0.0
    %2617 = vmatprep.subr.mxu0 0.0
    %2618 = vmatpush1.xpose.msra.mxu0 0.0
    %2619 = vmatprep.subr.mxu0 0.0
    %2620 = vmatpush1.xpose.msra.mxu0 0.0
    %2621 = vmatprep.subr.mxu0 0.0
    %2622 = vmatpush1.xpose.msra.mxu0 0.0
    %2623 = vmatprep.subr.mxu0 0.0
    %2624 = vmatpush1.xpose.msra.mxu0 0.0
    %2625 = vmatprep.subr.mxu0 0.0
    %2626 = vmatpush1.xpose.msra.mxu0 0.0
    %2627 = vmatprep.subr.mxu0 0.0
    %2628 = vmatpush1.xpose.msra.mxu0 0.0
    %2629 = vmatprep.subr.mxu0 0.0
    %2630 = vmatpush1.xpose.msra.mxu0 0.0
    %2631 = vmatprep.subr.mxu0 0.0
    %2632 = vmatpush1.xpose.msra.mxu0 0.0
    %2633 = vmatprep.subr.mxu0 0.0
    %2634 = vmatpush1.xpose.msra.mxu0 0.0
    %2635 = vmatprep.subr.mxu0 0.0
    %2636 = vmatpush1.xpose.msra.mxu0 0.0
    %2637 = vmatprep.subr.mxu0 0.0
    %2638 = vmatpush1.xpose.msra.mxu0 0.0
    %2639 = vmatprep.subr.mxu0 0.0
    %2640 = vmatpush1.xpose.msra.mxu0 0.0
    %2641 = vmatprep.subr.mxu0 0.0
    %2642 = vmatpush1.xpose.msra.mxu0 0.0
    %2643 = vmatprep.subr.mxu0 0.0
    %2644 = vmatpush1.xpose.msra.mxu0 0.0
    %2645 = vmatprep.subr.mxu0 0.0
    %2646 = vmatpush1.xpose.msra.mxu0 0.0
    %2647 = vmatprep.subr.mxu0 0.0
    %2648 = vmatpush1.xpose.msra.mxu0 0.0
    %2649 = vmatprep.subr.mxu0 0.0
    %2650 = vmatpush1.xpose.msra.mxu0 0.0
    %2651 = vmatprep.subr.mxu0 0.0
    %2652 = vmatpush1.xpose.msra.mxu0 0.0
    %2653 = vmatprep.subr.mxu0 0.0
    %2654 = vmatpush1.xpose.msra.mxu0 0.0
    %2655 = vmatprep.subr.mxu0 0.0
    %2656 = vmatpush1.xpose.msra.mxu0 0.0
    %2657 = vmatprep.subr.mxu0 0.0
    %2658 = vmatpush1.xpose.msra.mxu0 0.0
    %2659 = vmatprep.mubr.f32.mxu0 0.0
    %2660 = vmatmul.mubr.f32.gmra.mrb[0].mxu0 %v2563
    %v2661 = vpop.f32.mrb[0].mxu0
    %v2662 = vadd.f32 %v2507, %v2661
    %v2663 = vpop.f32.mrb[0].mxu0
    %2664 = vmatprep.mubr.f32.mxu0 0.0
    %2665 = vmatmul.mubr.f32.gmra.mrb[0].mxu0 %v2565
    %v2666 = vpop.f32.mrb[0].mxu0
    %v2667 = vadd.f32 %v2508, %v2666
    %v2668 = vpop.f32.mrb[0].mxu0
    %2669 = vmatprep.mubr.f32.mxu0 0.0
    %2670 = vmatmul.mubr.f32.gmra.mrb[0].mxu0 %v2567
    %v2671 = vpop.f32.mrb[0].mxu0
    %v2672 = vadd.f32 %v2509, %v2671
    %v2673 = vpop.f32.mrb[0].mxu0
    %2674 = vmatprep.mubr.f32.mxu0 0.0
    %2675 = vmatmul.mubr.f32.gmra.mrb[0].mxu0 %v2569
    %v2676 = vpop.f32.mrb[0].mxu0
    %v2677 = vadd.f32 %v2510, %v2676
    %v2678 = vpop.f32.mrb[0].mxu0
    %2679 = vmatprep.mubr.f32.mxu0 0.0
    %2680 = vmatmul.mubr.f32.gmra.mrb[0].mxu0 %v2571
    %v2681 = vpop.f32.mrb[0].mxu0
    %v2682 = vadd.f32 %v2511, %v2681
    %v2683 = vpop.f32.mrb[0].mxu0
    %2684 = vmatprep.mubr.f32.mxu0 0.0
    %2685 = vmatmul.mubr.f32.gmra.mrb[0].mxu0 %v2573
    %v2686 = vpop.f32.mrb[0].mxu0
    %v2687 = vadd.f32 %v2512, %v2686
    %v2688 = vpop.f32.mrb[0].mxu0
    %2689 = vmatprep.mubr.f32.mxu0 0.0
    %2690 = vmatmul.mubr.f32.gmra.mrb[0].mxu0 %v2575
    %v2691 = vpop.f32.mrb[0].mxu0
    %v2692 = vadd.f32 %v2513, %v2691
    %v2693 = vpop.f32.mrb[0].mxu0
    %2694 = vmatprep.mubr.f32.mxu0 0.0
    %2695 = vmatmul.mubr.f32.gmra.mrb[0].mxu0 %v2577
    %v2696 = vpop.f32.mrb[0].mxu0
    %v2697 = vadd.f32 %v2514, %v2696
    %v2698 = vpop.f32.mrb[0].mxu0
    %2699 = vdwg.mxu0
    %v2700 = vsel %vm526, %v2662, -inf
    %2701 = vmax.xlane.f32.xlu0 %v2700
    %v2702 = vpop.xlane.xlu0 %2701
    %v2703 = vsel %vm526, %v2667, -inf
    %2704 = vmax.xlane.f32.xlu0 %v2703
    %v2705 = vpop.xlane.xlu0 %2704
    %v2706 = vsel %vm526, %v2672, -inf
    %2707 = vmax.xlane.f32.xlu0 %v2706
    %v2708 = vpop.xlane.xlu0 %2707
    %v2709 = vsel %vm526, %v2677, -inf
    %2710 = vmax.xlane.f32.xlu0 %v2709
    %v2711 = vpop.xlane.xlu0 %2710
    %v2712 = vsel %vm526, %v2682, -inf
    %2713 = vmax.xlane.f32.xlu0 %v2712
    %v2714 = vpop.xlane.xlu0 %2713
    %v2715 = vsel %vm526, %v2687, -inf
    %2716 = vmax.xlane.f32.xlu0 %v2715
    %v2717 = vpop.xlane.xlu0 %2716
    %v2718 = vsel %vm526, %v2692, -inf
    %2719 = vmax.xlane.f32.xlu0 %v2718
    %v2720 = vpop.xlane.xlu0 %2719
    %v2721 = vsel %vm526, %v2697, -inf
    %2722 = vmax.xlane.f32.xlu0 %v2721
    %v2723 = vpop.xlane.xlu0 %2722
    %v2724 = vsub.f32 %v2662, %v2702
    %v2725 = vsub.f32 %v2667, %v2705
    %v2726 = vsub.f32 %v2672, %v2708
    %v2727 = vsub.f32 %v2677, %v2711
    %v2728 = vsub.f32 %v2682, %v2714
    %v2729 = vsub.f32 %v2687, %v2717
    %v2730 = vsub.f32 %v2692, %v2720
    %v2731 = vsub.f32 %v2697, %v2723
    %v2732 = vmul.f32 %v2724, 1.442695
    %v2733 = vpow.pop %v2732
    %v2734 = vmul.f32 %v2725, 1.442695
    %v2735 = vpow.pop %v2734
    %v2736 = vmul.f32 %v2726, 1.442695
    %v2737 = vpow.pop %v2736
    %v2738 = vmul.f32 %v2727, 1.442695
    %v2739 = vpow.pop %v2738
    %v2740 = vmul.f32 %v2728, 1.442695
    %v2741 = vpow.pop %v2740
    %v2742 = vmul.f32 %v2729, 1.442695
    %v2743 = vpow.pop %v2742
    %v2744 = vmul.f32 %v2730, 1.442695
    %v2745 = vpow.pop %v2744
    %v2746 = vmul.f32 %v2731, 1.442695
    %v2747 = vpow.pop %v2746
    %v2748 = vsel %vm526, %v2733, 0.0
    %2749 = vadd.xlane.f32.xlu0 %v2748
    %v2750 = vpop.xlane.xlu0 %2749
    %v2751 = vsel %vm526, %v2735, 0.0
    %2752 = vadd.xlane.f32.xlu0 %v2751
    %v2753 = vpop.xlane.xlu0 %2752
    %v2754 = vsel %vm526, %v2737, 0.0
    %2755 = vadd.xlane.f32.xlu0 %v2754
    %v2756 = vpop.xlane.xlu0 %2755
    %v2757 = vsel %vm526, %v2739, 0.0
    %2758 = vadd.xlane.f32.xlu0 %v2757
    %v2759 = vpop.xlane.xlu0 %2758
    %v2760 = vsel %vm526, %v2741, 0.0
    %2761 = vadd.xlane.f32.xlu0 %v2760
    %v2762 = vpop.xlane.xlu0 %2761
    %v2763 = vsel %vm526, %v2743, 0.0
    %2764 = vadd.xlane.f32.xlu0 %v2763
    %v2765 = vpop.xlane.xlu0 %2764
    %v2766 = vsel %vm526, %v2745, 0.0
    %2767 = vadd.xlane.f32.xlu0 %v2766
    %v2768 = vpop.xlane.xlu0 %2767
    %v2769 = vsel %vm526, %v2747, 0.0
    %2770 = vadd.xlane.f32.xlu0 %v2769
    %v2771 = vpop.xlane.xlu0 %2770
    %v2772 = vrcp.pop %v2750
    %v2773 = vmul.f32 %v2733, %v2772
    %v2774 = vrcp.pop %v2753
    %v2775 = vmul.f32 %v2735, %v2774
    %v2776 = vrcp.pop %v2756
    %v2777 = vmul.f32 %v2737, %v2776
    %v2778 = vrcp.pop %v2759
    %v2779 = vmul.f32 %v2739, %v2778
    %v2780 = vrcp.pop %v2762
    %v2781 = vmul.f32 %v2741, %v2780
    %v2782 = vrcp.pop %v2765
    %v2783 = vmul.f32 %v2743, %v2782
    %v2784 = vrcp.pop %v2768
    %v2785 = vmul.f32 %v2745, %v2784
    %v2786 = vrcp.pop %v2771
    %v2787 = vmul.f32 %v2747, %v2786
    %2788 = vrot.lane.b32.xlu0 %v164, 40
    %v2789 = vpop.permute.xlu0 %2788
    %2790 = vrot.lane.b32.xlu0 %v169, 40
    %v2791 = vpop.permute.xlu0 %2790
    %2792 = vrot.lane.b32.xlu0 %v174, 40
    %v2793 = vpop.permute.xlu0 %2792
    %2794 = vrot.lane.b32.xlu0 %v179, 40
    %v2795 = vpop.permute.xlu0 %2794
    %2796 = vrot.lane.b32.xlu0 %v184, 40
    %v2797 = vpop.permute.xlu0 %2796
    %2798 = vrot.lane.b32.xlu0 %v189, 40
    %v2799 = vpop.permute.xlu0 %2798
    %2800 = vrot.lane.b32.xlu0 %v194, 40
    %v2801 = vpop.permute.xlu0 %2800
    %2802 = vrot.lane.b32.xlu0 %v199, 40
    %v2803 = vpop.permute.xlu0 %2802
    %v2813 = vsel %vm526, %v2773, 0
    %v2816 = vsel %vm526, %v2775, 0
    %v2819 = vsel %vm526, %v2777, 0
    %v2822 = vsel %vm526, %v2779, 0
    %v2825 = vsel %vm526, %v2781, 0
    %v2828 = vsel %vm526, %v2783, 0
    %v2831 = vsel %vm526, %v2785, 0
    %v2834 = vsel %vm526, %v2787, 0
    %2836 = vmatprep.subr.mxu0 0.0
    %2837 = vmatpush1.msra.mxu0 %v2789
    %2838 = vmatprep.subr.mxu0 0.0
    %2839 = vmatpush1.msra.mxu0 %v2791
    %2840 = vmatprep.subr.mxu0 0.0
    %2841 = vmatpush1.msra.mxu0 %v2793
    %2842 = vmatprep.subr.mxu0 0.0
    %2843 = vmatpush1.msra.mxu0 %v2795
    %2844 = vmatprep.subr.mxu0 0.0
    %2845 = vmatpush1.msra.mxu0 %v2797
    %2846 = vmatprep.subr.mxu0 0.0
    %2847 = vmatpush1.msra.mxu0 %v2799
    %2848 = vmatprep.subr.mxu0 0.0
    %2849 = vmatpush1.msra.mxu0 %v2801
    %2850 = vmatprep.subr.mxu0 0.0
    %2851 = vmatpush1.msra.mxu0 %v2803
    %2852 = vmatprep.subr.mxu0 0.0
    %2853 = vmatpush1.msra.mxu0 0.0
    %2854 = vmatprep.subr.mxu0 0.0
    %2855 = vmatpush1.msra.mxu0 0.0
    %2856 = vmatprep.subr.mxu0 0.0
    %2857 = vmatpush1.msra.mxu0 0.0
    %2858 = vmatprep.subr.mxu0 0.0
    %2859 = vmatpush1.msra.mxu0 0.0
    %2860 = vmatprep.subr.mxu0 0.0
    %2861 = vmatpush1.msra.mxu0 0.0
    %2862 = vmatprep.subr.mxu0 0.0
    %2863 = vmatpush1.msra.mxu0 0.0
    %2864 = vmatprep.subr.mxu0 0.0
    %2865 = vmatpush1.msra.mxu0 0.0
    %2866 = vmatprep.subr.mxu0 0.0
    %2867 = vmatpush1.msra.mxu0 0.0
    %2868 = vmatprep.subr.mxu0 0.0
    %2869 = vmatpush1.msra.mxu0 0.0
    %2870 = vmatprep.subr.mxu0 0.0
    %2871 = vmatpush1.msra.mxu0 0.0
    %2872 = vmatprep.subr.mxu0 0.0
    %2873 = vmatpush1.msra.mxu0 0.0
    %2874 = vmatprep.subr.mxu0 0.0
    %2875 = vmatpush1.msra.mxu0 0.0
    %2876 = vmatprep.subr.mxu0 0.0
    %2877 = vmatpush1.msra.mxu0 0.0
    %2878 = vmatprep.subr.mxu0 0.0
    %2879 = vmatpush1.msra.mxu0 0.0
    %2880 = vmatprep.subr.mxu0 0.0
    %2881 = vmatpush1.msra.mxu0 0.0
    %2882 = vmatprep.subr.mxu0 0.0
    %2883 = vmatpush1.msra.mxu0 0.0
    %2884 = vmatprep.subr.mxu0 0.0
    %2885 = vmatpush1.msra.mxu0 0.0
    %2886 = vmatprep.subr.mxu0 0.0
    %2887 = vmatpush1.msra.mxu0 0.0
    %2888 = vmatprep.subr.mxu0 0.0
    %2889 = vmatpush1.msra.mxu0 0.0
    %2890 = vmatprep.subr.mxu0 0.0
    %2891 = vmatpush1.msra.mxu0 0.0
    %2892 = vmatprep.subr.mxu0 0.0
    %2893 = vmatpush1.msra.mxu0 0.0
    %2894 = vmatprep.subr.mxu0 0.0
    %2895 = vmatpush1.msra.mxu0 0.0
    %2896 = vmatprep.subr.mxu0 0.0
    %2897 = vmatpush1.msra.mxu0 0.0
    %2898 = vmatprep.subr.mxu0 0.0
    %2899 = vmatpush1.msra.mxu0 0.0
    %2900 = vmatprep.mubr.f32.mxu0 0.0
    %2901 = vmatmul.mubr.f32.gmra.mrb[0].mxu0 %v2813
    %v2902 = vpop.f32.mrb[0].mxu0
    %v2903 = vadd.f32 0.0, %v2902
    %v2904 = vpop.f32.mrb[0].mxu0
    %2905 = vmatprep.mubr.f32.mxu0 0.0
    %2906 = vmatmul.mubr.f32.gmra.mrb[0].mxu0 %v2816
    %v2907 = vpop.f32.mrb[0].mxu0
    %v2908 = vadd.f32 0.0, %v2907
    %v2909 = vpop.f32.mrb[0].mxu0
    %2910 = vmatprep.mubr.f32.mxu0 0.0
    %2911 = vmatmul.mubr.f32.gmra.mrb[0].mxu0 %v2819
    %v2912 = vpop.f32.mrb[0].mxu0
    %v2913 = vadd.f32 0.0, %v2912
    %v2914 = vpop.f32.mrb[0].mxu0
    %2915 = vmatprep.mubr.f32.mxu0 0.0
    %2916 = vmatmul.mubr.f32.gmra.mrb[0].mxu0 %v2822
    %v2917 = vpop.f32.mrb[0].mxu0
    %v2918 = vadd.f32 0.0, %v2917
    %v2919 = vpop.f32.mrb[0].mxu0
    %2920 = vmatprep.mubr.f32.mxu0 0.0
    %2921 = vmatmul.mubr.f32.gmra.mrb[0].mxu0 %v2825
    %v2922 = vpop.f32.mrb[0].mxu0
    %v2923 = vadd.f32 0.0, %v2922
    %v2924 = vpop.f32.mrb[0].mxu0
    %2925 = vmatprep.mubr.f32.mxu0 0.0
    %2926 = vmatmul.mubr.f32.gmra.mrb[0].mxu0 %v2828
    %v2927 = vpop.f32.mrb[0].mxu0
    %v2928 = vadd.f32 0.0, %v2927
    %v2929 = vpop.f32.mrb[0].mxu0
    %2930 = vmatprep.mubr.f32.mxu0 0.0
    %2931 = vmatmul.mubr.f32.gmra.mrb[0].mxu0 %v2831
    %v2932 = vpop.f32.mrb[0].mxu0
    %v2933 = vadd.f32 0.0, %v2932
    %v2934 = vpop.f32.mrb[0].mxu0
    %2935 = vmatprep.mubr.f32.mxu0 0.0
    %2936 = vmatmul.mubr.f32.gmra.mrb[0].mxu0 %v2834
    %v2937 = vpop.f32.mrb[0].mxu0
    %v2938 = vadd.f32 0.0, %v2937
    %v2939 = vpop.f32.mrb[0].mxu0
    %2940 = vdwg.mxu0
    %v2941 = vld [vmem:[%s5 + $0x18] sm:$0xff]
    %v2943 = vsel %vm210, %v2903, 0
    %v2946 = vsel %vm210, %v2908, 0
    %v2949 = vsel %vm210, %v2913, 0
    %v2952 = vsel %vm210, %v2918, 0
    %v2955 = vsel %vm210, %v2923, 0
    %v2958 = vsel %vm210, %v2928, 0
    %v2961 = vsel %vm210, %v2933, 0
    %v2964 = vsel %vm210, %v2938, 0
    %2966 = vmatprep.subr.mxu0 0.0
    %2967 = vmatpush1.msra.mxu0 %v2941
    %2968 = vmatprep.subr.mxu0 0.0
    %2969 = vmatpush1.msra.mxu0 0.0
    %2970 = vmatprep.subr.mxu0 0.0
    %2971 = vmatpush1.msra.mxu0 0.0
    %2972 = vmatprep.subr.mxu0 0.0
    %2973 = vmatpush1.msra.mxu0 0.0
    %2974 = vmatprep.subr.mxu0 0.0
    %2975 = vmatpush1.msra.mxu0 0.0
    %2976 = vmatprep.subr.mxu0 0.0
    %2977 = vmatpush1.msra.mxu0 0.0
    %2978 = vmatprep.subr.mxu0 0.0
    %2979 = vmatpush1.msra.mxu0 0.0
    %2980 = vmatprep.subr.mxu0 0.0
    %2981 = vmatpush1.msra.mxu0 0.0
    %2982 = vmatprep.subr.mxu0 0.0
    %2983 = vmatpush1.msra.mxu0 0.0
    %2984 = vmatprep.subr.mxu0 0.0
    %2985 = vmatpush1.msra.mxu0 0.0
    %2986 = vmatprep.subr.mxu0 0.0
    %2987 = vmatpush1.msra.mxu0 0.0
    %2988 = vmatprep.subr.mxu0 0.0
    %2989 = vmatpush1.msra.mxu0 0.0
    %2990 = vmatprep.subr.mxu0 0.0
    %2991 = vmatpush1.msra.mxu0 0.0
    %2992 = vmatprep.subr.mxu0 0.0
    %2993 = vmatpush1.msra.mxu0 0.0
    %2994 = vmatprep.subr.mxu0 0.0
    %2995 = vmatpush1.msra.mxu0 0.0
    %2996 = vmatprep.subr.mxu0 0.0
    %2997 = vmatpush1.msra.mxu0 0.0
    %2998 = vmatprep.subr.mxu0 0.0
    %2999 = vmatpush1.msra.mxu0 0.0
    %3000 = vmatprep.subr.mxu0 0.0
    %3001 = vmatpush1.msra.mxu0 0.0
    %3002 = vmatprep.subr.mxu0 0.0
    %3003 = vmatpush1.msra.mxu0 0.0
    %3004 = vmatprep.subr.mxu0 0.0
    %3005 = vmatpush1.msra.mxu0 0.0
    %3006 = vmatprep.subr.mxu0 0.0
    %3007 = vmatpush1.msra.mxu0 0.0
    %3008 = vmatprep.subr.mxu0 0.0
    %3009 = vmatpush1.msra.mxu0 0.0
    %3010 = vmatprep.subr.mxu0 0.0
    %3011 = vmatpush1.msra.mxu0 0.0
    %3012 = vmatprep.subr.mxu0 0.0
    %3013 = vmatpush1.msra.mxu0 0.0
    %3014 = vmatprep.subr.mxu0 0.0
    %3015 = vmatpush1.msra.mxu0 0.0
    %3016 = vmatprep.subr.mxu0 0.0
    %3017 = vmatpush1.msra.mxu0 0.0
    %3018 = vmatprep.subr.mxu0 0.0
    %3019 = vmatpush1.msra.mxu0 0.0
    %3020 = vmatprep.subr.mxu0 0.0
    %3021 = vmatpush1.msra.mxu0 0.0
    %3022 = vmatprep.subr.mxu0 0.0
    %3023 = vmatpush1.msra.mxu0 0.0
    %3024 = vmatprep.subr.mxu0 0.0
    %3025 = vmatpush1.msra.mxu0 0.0
    %3026 = vmatprep.subr.mxu0 0.0
    %3027 = vmatpush1.msra.mxu0 0.0
    %3028 = vmatprep.subr.mxu0 0.0
    %3029 = vmatpush1.msra.mxu0 0.0
    %3030 = vmatprep.mubr.f32.mxu0 0.0
    %3031 = vmatmul.mubr.f32.gmra.mrb[0].mxu0 %v2943
    %v3032 = vpop.f32.mrb[0].mxu0
    %v3033 = vadd.f32 0.0, %v3032
    %v3034 = vpop.f32.mrb[0].mxu0
    %3035 = vmatprep.mubr.f32.mxu0 0.0
    %3036 = vmatmul.mubr.f32.gmra.mrb[0].mxu0 %v2946
    %v3037 = vpop.f32.mrb[0].mxu0
    %v3038 = vadd.f32 0.0, %v3037
    %v3039 = vpop.f32.mrb[0].mxu0
    %3040 = vmatprep.mubr.f32.mxu0 0.0
    %3041 = vmatmul.mubr.f32.gmra.mrb[0].mxu0 %v2949
    %v3042 = vpop.f32.mrb[0].mxu0
    %v3043 = vadd.f32 0.0, %v3042
    %v3044 = vpop.f32.mrb[0].mxu0
    %3045 = vmatprep.mubr.f32.mxu0 0.0
    %3046 = vmatmul.mubr.f32.gmra.mrb[0].mxu0 %v2952
    %v3047 = vpop.f32.mrb[0].mxu0
    %v3048 = vadd.f32 0.0, %v3047
    %v3049 = vpop.f32.mrb[0].mxu0
    %3050 = vmatprep.mubr.f32.mxu0 0.0
    %3051 = vmatmul.mubr.f32.gmra.mrb[0].mxu0 %v2955
    %v3052 = vpop.f32.mrb[0].mxu0
    %v3053 = vadd.f32 0.0, %v3052
    %v3054 = vpop.f32.mrb[0].mxu0
    %3055 = vmatprep.mubr.f32.mxu0 0.0
    %3056 = vmatmul.mubr.f32.gmra.mrb[0].mxu0 %v2958
    %v3057 = vpop.f32.mrb[0].mxu0
    %v3058 = vadd.f32 0.0, %v3057
    %v3059 = vpop.f32.mrb[0].mxu0
    %3060 = vmatprep.mubr.f32.mxu0 0.0
    %3061 = vmatmul.mubr.f32.gmra.mrb[0].mxu0 %v2961
    %v3062 = vpop.f32.mrb[0].mxu0
    %v3063 = vadd.f32 0.0, %v3062
    %v3064 = vpop.f32.mrb[0].mxu0
    %3065 = vmatprep.mubr.f32.mxu0 0.0
    %3066 = vmatmul.mubr.f32.gmra.mrb[0].mxu0 %v2964
    %v3067 = vpop.f32.mrb[0].mxu0
    %v3068 = vadd.f32 0.0, %v3067
    %v3069 = vpop.f32.mrb[0].mxu0
    %3070 = vdwg.mxu0
    %v3071 = vadd.f32 %v2344, %v3033
    %v3072 = vadd.f32 %v2345, %v3038
    %v3073 = vadd.f32 %v2346, %v3043
    %v3074 = vadd.f32 %v2347, %v3048
    %v3075 = vadd.f32 %v2348, %v3053
    %v3076 = vadd.f32 %v2349, %v3058
    %v3077 = vadd.f32 %v2350, %v3063
    %v3078 = vadd.f32 %v2351, %v3068
    %v3079 = vld [vmem:[%s6] sm:$0x1]
    %v3081 = vlaneseq
    %v3082 = vshrl.u32 %v3081, 7
    %v3083 = vsub.s32 0, %v3082
    %v3084 = vrot.slane %v3079, %v3083
    %v3086 = vadd.f32 %v3071, %v3084
    %v3087 = vadd.f32 %v3072, %v3084
    %v3088 = vadd.f32 %v3073, %v3084
    %v3089 = vadd.f32 %v3074, %v3084
    %v3090 = vadd.f32 %v3075, %v3084
    %v3091 = vadd.f32 %v3076, %v3084
    %v3092 = vadd.f32 %v3077, %v3084
    %v3093 = vadd.f32 %v3078, %v3084
    %3094 = vst.msk [vmem:[%s7] sm:$0xff] %vm72, %v3086
    %3095 = vst.msk [vmem:[%s7 + $0x8] sm:$0xff] %vm72, %v3087
    %3096 = vst.msk [vmem:[%s7 + $0x10] sm:$0xff] %vm72, %v3088
    %3097 = vst.msk [vmem:[%s7 + $0x18] sm:$0xff] %vm72, %v3089
    %3098 = vst.msk [vmem:[%s7 + $0x20] sm:$0xff] %vm72, %v3090
    %3099 = vst.msk [vmem:[%s7 + $0x28] sm:$0xff] %vm72, %v3091
    %3100 = vst.msk [vmem:[%s7 + $0x30] sm:$0xff] %vm72, %v3092
    %3101 = vst.msk [vmem:[%s7 + $0x38] sm:$0xff] %vm72, %v3093
    // Predicated region
    $region38: #{tpu_custom_call.1} parent=1 // pred_check
      _
    $region39: #{tpu_custom_call.1} parent=1 // pred_check_branch
      %3103 = sbr.rel (0) target = $region41
    $region40: #{tpu_custom_call.1} parent=1 // pred_region
      _
    $region41: #{tpu_custom_call.1} parent=1 // pred_fallthru
      _
    // Predicated region
    $region42: #{tpu_custom_call.1} parent=1 // pred_check
      _
    $region43: #{tpu_custom_call.1} parent=1 // pred_check_branch
      %3105 = sbr.rel (0) target = $region45
    $region44: #{tpu_custom_call.1} parent=1 // pred_region
      _
    $region45: #{tpu_custom_call.1} parent=1 // pred_fallthru
      _
    %3106 = vsyncpa [#allocation3], 1
    %3107 = vsyncpa [#allocation4], 1

</llo_original>
